<compile_context>
chip_gen: v7x
topology: tpu7x:2x2x1
jax: 0.10.0
libtpu: 0.0.40
codegen_flags: <defaults>
</compile_context>

<pallas_src>
import numpy as np

import jax
import jax.numpy as jnp
from jax.experimental import pallas as pl
from jax.experimental.pallas import tpu as pltpu

VMEM_SPEC = pl.BlockSpec(memory_space=pltpu.MemorySpace.VMEM)


# ------------------------------ fused kernel --------------------------------

def _lenet5_kernel(x_ref,
                   w1e_ref, w1o_ref, b1_ref, s1e_ref, s1o_ref,
                   w2e_ref, w2o_ref, b2_ref, s2e_ref, s2o_ref,
                   wfc1_ref, bfc1_ref, wfc2_ref, bfc2_ref, wfc3_ref, bfc3_ref,
                   out_ref,
                   a1_ref, a2_ref):
    B = x_ref.shape[0]

    def bmm(a, b):
        # batched matmul: (B, m, k) x (B, k, n) -> (B, m, n), f32 accumulate.
        return jax.lax.dot_general(
            a, b, dimension_numbers=(((2,), (1,)), ((0,), (0,))),
            preferred_element_type=jnp.float32)

    def bcast(w):
        # broadcast a shared weight to the batch dimension.
        return jnp.broadcast_to(w, (B,) + w.shape)

    # ---- conv1 (5x5, 1->6) fused with the 2x2 max-pool -----------------------
    # W direction of conv+pool is folded into the prepacked weights (even/odd
    # output columns); H direction of the conv is the sum over kh of row-shifted
    # slabs; H direction of the pool is a 0/1 row-selection matmul.
    xs = x_ref[:, 0:24, :]                                       # (B, 24, 28)
    acc_e = bmm(xs, bcast(w1e_ref[0]))
    acc_o = bmm(xs, bcast(w1o_ref[0]))
    for kh in range(1, 5):
        xs = x_ref[:, kh:kh + 24, :]
        acc_e = acc_e + bmm(xs, bcast(w1e_ref[kh]))
        acc_o = acc_o + bmm(xs, bcast(w1o_ref[kh]))
    mw = jnp.maximum(acc_e, acc_o)                               # pool over W
    ph = jnp.maximum(bmm(bcast(s1e_ref[...]), mw),
                     bmm(bcast(s1o_ref[...]), mw))               # pool over H -> (B,12,72)
    # max-pool commutes with the per-channel bias and the monotone tanh.
    a1_ref[...] = jnp.tanh(ph + b1_ref[...])                     # (B, 12, 12*6)

    # ---- conv2 (5x5, 6->16) fused with the 2x2 max-pool ----------------------
    xs = a1_ref[:, 0:8, :]                                       # (B, 8, 72)
    acc_e = bmm(xs, bcast(w2e_ref[0]))
    acc_o = bmm(xs, bcast(w2o_ref[0]))
    for kh in range(1, 5):
        xs = a1_ref[:, kh:kh + 8, :]
        acc_e = acc_e + bmm(xs, bcast(w2e_ref[kh]))
        acc_o = acc_o + bmm(xs, bcast(w2o_ref[kh]))
    mw = jnp.maximum(acc_e, acc_o)
    ph = jnp.maximum(bmm(bcast(s2e_ref[...]), mw),
                     bmm(bcast(s2o_ref[...]), mw))               # (B, 4, 64)
    a2_ref[...] = jnp.tanh(ph + b2_ref[...])                     # (B, 4, 4*16)

    # ---- fc1 (256 -> 120): fc1 weight rows were pre-permuted at init to the
    # kernel's (h, w, c) flatten order, so no activation shuffle is needed.
    # TODO(synk): nn.Dropout(p=0.5) is identity in eval mode and is omitted.
    h1 = bmm(a2_ref[:, 0:1, :], bcast(wfc1_ref[0]))
    for h in range(1, 4):
        h1 = h1 + bmm(a2_ref[:, h:h + 1, :], bcast(wfc1_ref[h]))
    h1 = jnp.tanh(h1 + bfc1_ref[...])                            # (B, 1, 120)

    # ---- fc2 (120 -> 84) ------------------------------------------------------
    h2 = jnp.tanh(bmm(h1, bcast(wfc2_ref[...])) + bfc2_ref[...])  # (B, 1, 84)

    # ---- fc3 (84 -> 10) + softmax --------------------------------------------
    logits = bmm(h2, bcast(wfc3_ref[...])) + bfc3_ref[...]        # (B, 1, 10)
    z = logits - jnp.max(logits, axis=-1, keepdims=True)
    e = jnp.exp(z)
    out_ref[...] = e * pl.reciprocal(jnp.sum(e, axis=-1, keepdims=True),
                                     approx=False)


# ------------------------------ forward wrapper ------------------------------

@jax.jit
def lenet5_forward(packed, img_nchw):
    # img_nchw: (B, 1, 28, 28) float32 -- same input as the PyTorch module.
    B = img_nchw.shape[0]
    x = img_nchw.reshape(B, 28, 28)          # Cin == 1: free metadata reshape

    inputs = (x,
              packed["w1e"], packed["w1o"], packed["b1"], packed["s1e"], packed["s1o"],
              packed["w2e"], packed["w2o"], packed["b2"], packed["s2e"], packed["s2o"],
              packed["wfc1"], packed["bfc1"], packed["wfc2"], packed["bfc2"],
              packed["wfc3"], packed["bfc3"])

    out = pl.pallas_call(
        _lenet5_kernel,
        out_shape=jax.ShapeDtypeStruct((B, 1, 10), jnp.float32),
        in_specs=[VMEM_SPEC] * len(inputs),
        out_specs=VMEM_SPEC,
        scratch_shapes=[pltpu.VMEM((B, 12, 72), jnp.float32),   # pooled conv1 act
                        pltpu.VMEM((B, 4, 64), jnp.float32)],   # pooled conv2 act
    )(*inputs)
    return out.reshape(B, 10)                # free metadata reshape


# ------------------------------ weight packing -------------------------------

def _toeplitz_pooled_conv_weights(w, w_in):
    """w: (Cout, Cin, K, K).  Returns per-kh matrices of shape
    (K, w_in*Cin, (w_out//2)*Cout) producing the conv output at even / odd
    output columns in (w, c)-folded layout (c fastest)."""
    cout, cin, k, _ = w.shape
    w_out = w_in - k + 1
    wp = w_out // 2
    w_even = np.zeros((k, w_in * cin, wp * cout), np.float32)
    w_odd = np.zeros((k, w_in * cin, wp * cout), np.float32)
    wt = np.transpose(np.asarray(w, np.float32), (2, 3, 1, 0))   # (K, K, Cin, Cout)
    for kh in range(k):
        for kw in range(k):
            for j in range(wp):
                r_e = (2 * j + kw) * cin
                r_o = (2 * j + 1 + kw) * cin
                w_even[kh, r_e:r_e + cin, j * cout:(j + 1) * cout] = wt[kh, kw]
                w_odd[kh, r_o:r_o + cin, j * cout:(j + 1) * cout] = wt[kh, kw]
    return w_even, w_odd


def _hpool_selectors(h_out):
    """0/1 matrices (h_out//2, h_out) selecting even / odd rows."""
    hp = h_out // 2
    se = np.zeros((hp, h_out), np.float32)
    so = np.zeros((hp, h_out), np.float32)
    se[np.arange(hp), 2 * np.arange(hp)] = 1.0
    so[np.arange(hp), 2 * np.arange(hp) + 1] = 1.0
    return se, so


def pack_params(params):
    """One-time repack of PyTorch-layout params into the kernel's layouts."""
    w1 = np.asarray(params["w1"]); b1 = np.asarray(params["b1"])
    w2 = np.asarray(params["w2"]); b2 = np.asarray(params["b2"])

    w1e, w1o = _toeplitz_pooled_conv_weights(w1, 28)   # (5, 28, 72)
    w2e, w2o = _toeplitz_pooled_conv_weights(w2, 12)   # (5, 72, 64)
    s1e, s1o = _hpool_selectors(24)                    # (12, 24)
    s2e, s2o = _hpool_selectors(8)                     # (4, 8)

    # fc1: PyTorch flatten order is (c, h, w); the kernel's activation layout is
    # (h, w*16+c).  Permute fc1's input axis once here.
    fc1 = np.asarray(params["fc1_w"])                  # (120, 256)
    wfc1 = np.zeros((4, 64, 120), np.float32)
    for h in range(4):
        for w in range(4):
            for c in range(16):
                wfc1[h, w * 16 + c, :] = fc1[:, c * 16 + h * 4 + w]

    packed = {
        "w1e": w1e, "w1o": w1o,
        "b1": np.tile(b1, 12).reshape(1, 72).astype(np.float32),
        "s1e": s1e, "s1o": s1o,
        "w2e": w2e, "w2o": w2o,
        "b2": np.tile(b2, 4).reshape(1, 64).astype(np.float32),
        "s2e": s2e, "s2o": s2o,
        "wfc1": wfc1,
        "bfc1": np.asarray(params["fc1_b"]).reshape(1, 120).astype(np.float32),
        "wfc2": np.asarray(params["fc2_w"]).T.astype(np.float32).copy(),
        "bfc2": np.asarray(params["fc2_b"]).reshape(1, 84).astype(np.float32),
        "wfc3": np.asarray(params["fc3_w"]).T.astype(np.float32).copy(),
        "bfc3": np.asarray(params["fc3_b"]).reshape(1, 10).astype(np.float32),
    }
    return jax.tree_util.tree_map(jnp.asarray, packed)


# ------------------------------- parameters ----------------------------------

def init_params(key):
    # Deterministic init mimicking PyTorch's default U(-1/sqrt(fan_in), +1/sqrt(fan_in)).
    def uniform(k, shape, fan_in):
        bound = 1.0 / float(fan_in) ** 0.5
        return jax.random.uniform(k, shape, jnp.float32, -bound, bound)

    ks = jax.random.split(key, 10)
    return {
        "w1": uniform(ks[0], (6, 1, 5, 5), 1 * 5 * 5),
        "b1": uniform(ks[1], (6,), 1 * 5 * 5),
        "w2": uniform(ks[2], (16, 6, 5, 5), 6 * 5 * 5),
        "b2": uniform(ks[3], (16,), 6 * 5 * 5),
        "fc1_w": uniform(ks[4], (120, 256), 256),
        "fc1_b": uniform(ks[5], (120,), 256),
        "fc2_w": uniform(ks[6], (84, 120), 120),
        "fc2_b": uniform(ks[7], (84,), 120),
        "fc3_w": uniform(ks[8], (10, 84), 84),
        "fc3_b": uniform(ks[9], (10,), 84),
    }


# --------------------------- pure-JAX reference ------------------------------

def lenet5_reference(params, img):
    hi = jax.lax.Precision.HIGHEST
    dn = ("NCHW", "OIHW", "NCHW")
    x = jax.lax.conv_general_dilated(img, params["w1"], (1, 1), "VALID",
                                     dimension_numbers=dn, precision=hi)
    x = jnp.tanh(x + params["b1"][None, :, None, None])
    x = jax.lax.reduce_window(x, -jnp.inf, jax.lax.max,
                              (1, 1, 2, 2), (1, 1, 2, 2), "VALID")
    x = jax.lax.conv_general_dilated(x, params["w2"], (1, 1), "VALID",
                                     dimension_numbers=dn, precision=hi)
    x = jnp.tanh(x + params["b2"][None, :, None, None])
    x = jax.lax.reduce_window(x, -jnp.inf, jax.lax.max,
                              (1, 1, 2, 2), (1, 1, 2, 2), "VALID")
    x = x.reshape(x.shape[0], 16 * 4 * 4)
    x = jnp.tanh(jnp.dot(x, params["fc1_w"].T, precision=hi) + params["fc1_b"])
    x = jnp.tanh(jnp.dot(x, params["fc2_w"].T, precision=hi) + params["fc2_b"])
    logits = jnp.dot(x, params["fc3_w"].T, precision=hi) + params["fc3_b"]
    return jax.nn.softmax(logits, axis=-1)


# ----------------------------------- main ------------------------------------

if __name__ == "__main__":
    key = jax.random.PRNGKey(0)
    pkey, xkey = jax.random.split(key)
    params = init_params(pkey)
    packed = pack_params(params)
    # Spatial size 28 is dictated by fc1 expecting 16*4*4 features; small batch.
    img = jax.random.normal(xkey, (2, 1, 28, 28), jnp.float32)

    out = lenet5_forward(packed, img)
    out = jax.block_until_ready(out)

    ref = lenet5_reference(params, img)

    assert out.shape == (2, 10)
    assert bool(jnp.all(jnp.isfinite(out)))
    assert bool(jnp.allclose(jnp.sum(out, axis=1), 1.0, atol=1e-5))
    assert bool(jnp.allclose(out, ref, atol=2e-2)), "fused kernel disagrees with reference"
    print("KERNEL_OK")
</pallas_src>

<mosaic_0001>
module attributes {stable_mosaic.version = 11 : i64} {
  func.func @_lenet5_kernel(%arg0: memref<2x28x28xf32, #tpu.memory_space<vmem>>, %arg1: memref<5x28x72xf32, #tpu.memory_space<vmem>>, %arg2: memref<5x28x72xf32, #tpu.memory_space<vmem>>, %arg3: memref<1x72xf32, #tpu.memory_space<vmem>>, %arg4: memref<12x24xf32, #tpu.memory_space<vmem>>, %arg5: memref<12x24xf32, #tpu.memory_space<vmem>>, %arg6: memref<5x72x64xf32, #tpu.memory_space<vmem>>, %arg7: memref<5x72x64xf32, #tpu.memory_space<vmem>>, %arg8: memref<1x64xf32, #tpu.memory_space<vmem>>, %arg9: memref<4x8xf32, #tpu.memory_space<vmem>>, %arg10: memref<4x8xf32, #tpu.memory_space<vmem>>, %arg11: memref<4x64x120xf32, #tpu.memory_space<vmem>>, %arg12: memref<1x120xf32, #tpu.memory_space<vmem>>, %arg13: memref<120x84xf32, #tpu.memory_space<vmem>>, %arg14: memref<1x84xf32, #tpu.memory_space<vmem>>, %arg15: memref<84x10xf32, #tpu.memory_space<vmem>>, %arg16: memref<1x10xf32, #tpu.memory_space<vmem>>, %arg17: memref<2x1x10xf32, #tpu.memory_space<vmem>>, %arg18: memref<2x12x72xf32, #tpu.memory_space<vmem>>, %arg19: memref<2x4x64xf32, #tpu.memory_space<vmem>>) attributes {dimension_semantics = [], scalar_prefetch = 0 : i64, scratch_operands = 2 : i64, tpu.core_type = #tpu.core_type<tc>} {
    %c0 = arith.constant 0 : index
    %c0_0 = arith.constant 0 : index
    %c0_1 = arith.constant 0 : index
    %0 = vector.load %arg0[%c0, %c0_0, %c0_1] : memref<2x28x28xf32, #tpu.memory_space<vmem>>, vector<2x24x28xf32>
    %c0_2 = arith.constant 0 : index
    %c0_3 = arith.constant 0 : index
    %c0_4 = arith.constant 0 : index
    %1 = vector.load %arg1[%c0_2, %c0_3, %c0_4] : memref<5x28x72xf32, #tpu.memory_space<vmem>>, vector<1x28x72xf32>
    %2 = vector.shape_cast %1 : vector<1x28x72xf32> to vector<28x72xf32>
    %3 = vector.shape_cast %2 : vector<28x72xf32> to vector<1x28x72xf32>
    %4 = vector.broadcast %3 : vector<1x28x72xf32> to vector<2x28x72xf32>
    %cst = arith.constant dense<0.000000e+00> : vector<2x24x72xf32>
    %5 = tpu.matmul %0, %4, %cst {dimension_numbers = #tpu.dot_dimension_numbers<[2], [1], [1], [2], [0, 0, 0, 1, 1, 2], [0], [0]>} : vector<2x24x28xf32>, vector<2x28x72xf32>, vector<2x24x72xf32> -> vector<2x24x72xf32>
    %c0_5 = arith.constant 0 : index
    %c0_6 = arith.constant 0 : index
    %c0_7 = arith.constant 0 : index
    %6 = vector.load %arg2[%c0_5, %c0_6, %c0_7] : memref<5x28x72xf32, #tpu.memory_space<vmem>>, vector<1x28x72xf32>
    %7 = vector.shape_cast %6 : vector<1x28x72xf32> to vector<28x72xf32>
    %8 = vector.shape_cast %7 : vector<28x72xf32> to vector<1x28x72xf32>
    %9 = vector.broadcast %8 : vector<1x28x72xf32> to vector<2x28x72xf32>
    %cst_8 = arith.constant dense<0.000000e+00> : vector<2x24x72xf32>
    %10 = tpu.matmul %0, %9, %cst_8 {dimension_numbers = #tpu.dot_dimension_numbers<[2], [1], [1], [2], [0, 0, 0, 1, 1, 2], [0], [0]>} : vector<2x24x28xf32>, vector<2x28x72xf32>, vector<2x24x72xf32> -> vector<2x24x72xf32>
    %c0_9 = arith.constant 0 : index
    %c1 = arith.constant 1 : index
    %c0_10 = arith.constant 0 : index
    %11 = vector.load %arg0[%c0_9, %c1, %c0_10] : memref<2x28x28xf32, #tpu.memory_space<vmem>>, vector<2x24x28xf32>
    %c1_11 = arith.constant 1 : index
    %c0_12 = arith.constant 0 : index
    %c0_13 = arith.constant 0 : index
    %12 = vector.load %arg1[%c1_11, %c0_12, %c0_13] : memref<5x28x72xf32, #tpu.memory_space<vmem>>, vector<1x28x72xf32>
    %13 = vector.shape_cast %12 : vector<1x28x72xf32> to vector<28x72xf32>
    %14 = vector.shape_cast %13 : vector<28x72xf32> to vector<1x28x72xf32>
    %15 = vector.broadcast %14 : vector<1x28x72xf32> to vector<2x28x72xf32>
    %cst_14 = arith.constant dense<0.000000e+00> : vector<2x24x72xf32>
    %16 = tpu.matmul %11, %15, %cst_14 {dimension_numbers = #tpu.dot_dimension_numbers<[2], [1], [1], [2], [0, 0, 0, 1, 1, 2], [0], [0]>} : vector<2x24x28xf32>, vector<2x28x72xf32>, vector<2x24x72xf32> -> vector<2x24x72xf32>
    %17 = arith.addf %5, %16 : vector<2x24x72xf32>
    %c1_15 = arith.constant 1 : index
    %c0_16 = arith.constant 0 : index
    %c0_17 = arith.constant 0 : index
    %18 = vector.load %arg2[%c1_15, %c0_16, %c0_17] : memref<5x28x72xf32, #tpu.memory_space<vmem>>, vector<1x28x72xf32>
    %19 = vector.shape_cast %18 : vector<1x28x72xf32> to vector<28x72xf32>
    %20 = vector.shape_cast %19 : vector<28x72xf32> to vector<1x28x72xf32>
    %21 = vector.broadcast %20 : vector<1x28x72xf32> to vector<2x28x72xf32>
    %cst_18 = arith.constant dense<0.000000e+00> : vector<2x24x72xf32>
    %22 = tpu.matmul %11, %21, %cst_18 {dimension_numbers = #tpu.dot_dimension_numbers<[2], [1], [1], [2], [0, 0, 0, 1, 1, 2], [0], [0]>} : vector<2x24x28xf32>, vector<2x28x72xf32>, vector<2x24x72xf32> -> vector<2x24x72xf32>
    %23 = arith.addf %10, %22 : vector<2x24x72xf32>
    %c0_19 = arith.constant 0 : index
    %c2 = arith.constant 2 : index
    %c0_20 = arith.constant 0 : index
    %24 = vector.load %arg0[%c0_19, %c2, %c0_20] : memref<2x28x28xf32, #tpu.memory_space<vmem>>, vector<2x24x28xf32>
    %c2_21 = arith.constant 2 : index
    %c0_22 = arith.constant 0 : index
    %c0_23 = arith.constant 0 : index
    %25 = vector.load %arg1[%c2_21, %c0_22, %c0_23] : memref<5x28x72xf32, #tpu.memory_space<vmem>>, vector<1x28x72xf32>
    %26 = vector.shape_cast %25 : vector<1x28x72xf32> to vector<28x72xf32>
    %27 = vector.shape_cast %26 : vector<28x72xf32> to vector<1x28x72xf32>
    %28 = vector.broadcast %27 : vector<1x28x72xf32> to vector<2x28x72xf32>
    %cst_24 = arith.constant dense<0.000000e+00> : vector<2x24x72xf32>
    %29 = tpu.matmul %24, %28, %cst_24 {dimension_numbers = #tpu.dot_dimension_numbers<[2], [1], [1], [2], [0, 0, 0, 1, 1, 2], [0], [0]>} : vector<2x24x28xf32>, vector<2x28x72xf32>, vector<2x24x72xf32> -> vector<2x24x72xf32>
    %30 = arith.addf %17, %29 : vector<2x24x72xf32>
    %c2_25 = arith.constant 2 : index
    %c0_26 = arith.constant 0 : index
    %c0_27 = arith.constant 0 : index
    %31 = vector.load %arg2[%c2_25, %c0_26, %c0_27] : memref<5x28x72xf32, #tpu.memory_space<vmem>>, vector<1x28x72xf32>
    %32 = vector.shape_cast %31 : vector<1x28x72xf32> to vector<28x72xf32>
    %33 = vector.shape_cast %32 : vector<28x72xf32> to vector<1x28x72xf32>
    %34 = vector.broadcast %33 : vector<1x28x72xf32> to vector<2x28x72xf32>
    %cst_28 = arith.constant dense<0.000000e+00> : vector<2x24x72xf32>
    %35 = tpu.matmul %24, %34, %cst_28 {dimension_numbers = #tpu.dot_dimension_numbers<[2], [1], [1], [2], [0, 0, 0, 1, 1, 2], [0], [0]>} : vector<2x24x28xf32>, vector<2x28x72xf32>, vector<2x24x72xf32> -> vector<2x24x72xf32>
    %36 = arith.addf %23, %35 : vector<2x24x72xf32>
    %c0_29 = arith.constant 0 : index
    %c3 = arith.constant 3 : index
    %c0_30 = arith.constant 0 : index
    %37 = vector.load %arg0[%c0_29, %c3, %c0_30] : memref<2x28x28xf32, #tpu.memory_space<vmem>>, vector<2x24x28xf32>
    %c3_31 = arith.constant 3 : index
    %c0_32 = arith.constant 0 : index
    %c0_33 = arith.constant 0 : index
    %38 = vector.load %arg1[%c3_31, %c0_32, %c0_33] : memref<5x28x72xf32, #tpu.memory_space<vmem>>, vector<1x28x72xf32>
    %39 = vector.shape_cast %38 : vector<1x28x72xf32> to vector<28x72xf32>
    %40 = vector.shape_cast %39 : vector<28x72xf32> to vector<1x28x72xf32>
    %41 = vector.broadcast %40 : vector<1x28x72xf32> to vector<2x28x72xf32>
    %cst_34 = arith.constant dense<0.000000e+00> : vector<2x24x72xf32>
    %42 = tpu.matmul %37, %41, %cst_34 {dimension_numbers = #tpu.dot_dimension_numbers<[2], [1], [1], [2], [0, 0, 0, 1, 1, 2], [0], [0]>} : vector<2x24x28xf32>, vector<2x28x72xf32>, vector<2x24x72xf32> -> vector<2x24x72xf32>
    %43 = arith.addf %30, %42 : vector<2x24x72xf32>
    %c3_35 = arith.constant 3 : index
    %c0_36 = arith.constant 0 : index
    %c0_37 = arith.constant 0 : index
    %44 = vector.load %arg2[%c3_35, %c0_36, %c0_37] : memref<5x28x72xf32, #tpu.memory_space<vmem>>, vector<1x28x72xf32>
    %45 = vector.shape_cast %44 : vector<1x28x72xf32> to vector<28x72xf32>
    %46 = vector.shape_cast %45 : vector<28x72xf32> to vector<1x28x72xf32>
    %47 = vector.broadcast %46 : vector<1x28x72xf32> to vector<2x28x72xf32>
    %cst_38 = arith.constant dense<0.000000e+00> : vector<2x24x72xf32>
    %48 = tpu.matmul %37, %47, %cst_38 {dimension_numbers = #tpu.dot_dimension_numbers<[2], [1], [1], [2], [0, 0, 0, 1, 1, 2], [0], [0]>} : vector<2x24x28xf32>, vector<2x28x72xf32>, vector<2x24x72xf32> -> vector<2x24x72xf32>
    %49 = arith.addf %36, %48 : vector<2x24x72xf32>
    %c0_39 = arith.constant 0 : index
    %c4 = arith.constant 4 : index
    %c0_40 = arith.constant 0 : index
    %50 = vector.load %arg0[%c0_39, %c4, %c0_40] : memref<2x28x28xf32, #tpu.memory_space<vmem>>, vector<2x24x28xf32>
    %c4_41 = arith.constant 4 : index
    %c0_42 = arith.constant 0 : index
    %c0_43 = arith.constant 0 : index
    %51 = vector.load %arg1[%c4_41, %c0_42, %c0_43] : memref<5x28x72xf32, #tpu.memory_space<vmem>>, vector<1x28x72xf32>
    %52 = vector.shape_cast %51 : vector<1x28x72xf32> to vector<28x72xf32>
    %53 = vector.shape_cast %52 : vector<28x72xf32> to vector<1x28x72xf32>
    %54 = vector.broadcast %53 : vector<1x28x72xf32> to vector<2x28x72xf32>
    %cst_44 = arith.constant dense<0.000000e+00> : vector<2x24x72xf32>
    %55 = tpu.matmul %50, %54, %cst_44 {dimension_numbers = #tpu.dot_dimension_numbers<[2], [1], [1], [2], [0, 0, 0, 1, 1, 2], [0], [0]>} : vector<2x24x28xf32>, vector<2x28x72xf32>, vector<2x24x72xf32> -> vector<2x24x72xf32>
    %56 = arith.addf %43, %55 : vector<2x24x72xf32>
    %c4_45 = arith.constant 4 : index
    %c0_46 = arith.constant 0 : index
    %c0_47 = arith.constant 0 : index
    %57 = vector.load %arg2[%c4_45, %c0_46, %c0_47] : memref<5x28x72xf32, #tpu.memory_space<vmem>>, vector<1x28x72xf32>
    %58 = vector.shape_cast %57 : vector<1x28x72xf32> to vector<28x72xf32>
    %59 = vector.shape_cast %58 : vector<28x72xf32> to vector<1x28x72xf32>
    %60 = vector.broadcast %59 : vector<1x28x72xf32> to vector<2x28x72xf32>
    %cst_48 = arith.constant dense<0.000000e+00> : vector<2x24x72xf32>
    %61 = tpu.matmul %50, %60, %cst_48 {dimension_numbers = #tpu.dot_dimension_numbers<[2], [1], [1], [2], [0, 0, 0, 1, 1, 2], [0], [0]>} : vector<2x24x28xf32>, vector<2x28x72xf32>, vector<2x24x72xf32> -> vector<2x24x72xf32>
    %62 = arith.addf %49, %61 : vector<2x24x72xf32>
    %63 = arith.maximumf %56, %62 : vector<2x24x72xf32>
    %c0_49 = arith.constant 0 : index
    %c0_50 = arith.constant 0 : index
    %64 = vector.load %arg4[%c0_49, %c0_50] : memref<12x24xf32, #tpu.memory_space<vmem>>, vector<12x24xf32>
    %65 = vector.shape_cast %64 : vector<12x24xf32> to vector<1x12x24xf32>
    %66 = vector.broadcast %65 : vector<1x12x24xf32> to vector<2x12x24xf32>
    %cst_51 = arith.constant dense<0.000000e+00> : vector<2x12x72xf32>
    %67 = tpu.matmul %66, %63, %cst_51 {dimension_numbers = #tpu.dot_dimension_numbers<[2], [1], [1], [2], [0, 0, 0, 1, 1, 2], [0], [0]>} : vector<2x12x24xf32>, vector<2x24x72xf32>, vector<2x12x72xf32> -> vector<2x12x72xf32>
    %c0_52 = arith.constant 0 : index
    %c0_53 = arith.constant 0 : index
    %68 = vector.load %arg5[%c0_52, %c0_53] : memref<12x24xf32, #tpu.memory_space<vmem>>, vector<12x24xf32>
    %69 = vector.shape_cast %68 : vector<12x24xf32> to vector<1x12x24xf32>
    %70 = vector.broadcast %69 : vector<1x12x24xf32> to vector<2x12x24xf32>
    %cst_54 = arith.constant dense<0.000000e+00> : vector<2x12x72xf32>
    %71 = tpu.matmul %70, %63, %cst_54 {dimension_numbers = #tpu.dot_dimension_numbers<[2], [1], [1], [2], [0, 0, 0, 1, 1, 2], [0], [0]>} : vector<2x12x24xf32>, vector<2x24x72xf32>, vector<2x12x72xf32> -> vector<2x12x72xf32>
    %72 = arith.maximumf %67, %71 : vector<2x12x72xf32>
    %c0_55 = arith.constant 0 : index
    %c0_56 = arith.constant 0 : index
    %73 = vector.load %arg3[%c0_55, %c0_56] : memref<1x72xf32, #tpu.memory_space<vmem>>, vector<1x72xf32>
    %74 = vector.shape_cast %73 : vector<1x72xf32> to vector<1x1x72xf32>
    %75 = vector.broadcast %74 : vector<1x1x72xf32> to vector<2x12x72xf32>
    %76 = arith.addf %72, %75 : vector<2x12x72xf32>
    %77 = math.tanh %76 : vector<2x12x72xf32>
    %c0_57 = arith.constant 0 : index
    %c0_58 = arith.constant 0 : index
    %c0_59 = arith.constant 0 : index
    %78 = vector.load %arg18[%c0_57, %c0_58, %c0_59] : memref<2x12x72xf32, #tpu.memory_space<vmem>>, vector<2x12x72xf32>
    tpu.vector_store %arg18[%c0_57, %c0_58, %c0_59], %77 {strides = array<i32>} : memref<2x12x72xf32, #tpu.memory_space<vmem>>, vector<2x12x72xf32>,
    %c0_60 = arith.constant 0 : index
    %c0_61 = arith.constant 0 : index
    %c0_62 = arith.constant 0 : index
    %79 = vector.load %arg18[%c0_60, %c0_61, %c0_62] : memref<2x12x72xf32, #tpu.memory_space<vmem>>, vector<2x8x72xf32>
    %c0_63 = arith.constant 0 : index
    %c0_64 = arith.constant 0 : index
    %c0_65 = arith.constant 0 : index
    %80 = vector.load %arg6[%c0_63, %c0_64, %c0_65] : memref<5x72x64xf32, #tpu.memory_space<vmem>>, vector<1x72x64xf32>
    %81 = vector.shape_cast %80 : vector<1x72x64xf32> to vector<72x64xf32>
    %82 = vector.shape_cast %81 : vector<72x64xf32> to vector<1x72x64xf32>
    %83 = vector.broadcast %82 : vector<1x72x64xf32> to vector<2x72x64xf32>
    %cst_66 = arith.constant dense<0.000000e+00> : vector<2x8x64xf32>
    %84 = tpu.matmul %79, %83, %cst_66 {dimension_numbers = #tpu.dot_dimension_numbers<[2], [1], [1], [2], [0, 0, 0, 1, 1, 2], [0], [0]>} : vector<2x8x72xf32>, vector<2x72x64xf32>, vector<2x8x64xf32> -> vector<2x8x64xf32>
    %c0_67 = arith.constant 0 : index
    %c0_68 = arith.constant 0 : index
    %c0_69 = arith.constant 0 : index
    %85 = vector.load %arg7[%c0_67, %c0_68, %c0_69] : memref<5x72x64xf32, #tpu.memory_space<vmem>>, vector<1x72x64xf32>
    %86 = vector.shape_cast %85 : vector<1x72x64xf32> to vector<72x64xf32>
    %87 = vector.shape_cast %86 : vector<72x64xf32> to vector<1x72x64xf32>
    %88 = vector.broadcast %87 : vector<1x72x64xf32> to vector<2x72x64xf32>
    %cst_70 = arith.constant dense<0.000000e+00> : vector<2x8x64xf32>
    %89 = tpu.matmul %79, %88, %cst_70 {dimension_numbers = #tpu.dot_dimension_numbers<[2], [1], [1], [2], [0, 0, 0, 1, 1, 2], [0], [0]>} : vector<2x8x72xf32>, vector<2x72x64xf32>, vector<2x8x64xf32> -> vector<2x8x64xf32>
    %c0_71 = arith.constant 0 : index
    %c1_72 = arith.constant 1 : index
    %c0_73 = arith.constant 0 : index
    %90 = vector.load %arg18[%c0_71, %c1_72, %c0_73] : memref<2x12x72xf32, #tpu.memory_space<vmem>>, vector<2x8x72xf32>
    %c1_74 = arith.constant 1 : index
    %c0_75 = arith.constant 0 : index
    %c0_76 = arith.constant 0 : index
    %91 = vector.load %arg6[%c1_74, %c0_75, %c0_76] : memref<5x72x64xf32, #tpu.memory_space<vmem>>, vector<1x72x64xf32>
    %92 = vector.shape_cast %91 : vector<1x72x64xf32> to vector<72x64xf32>
    %93 = vector.shape_cast %92 : vector<72x64xf32> to vector<1x72x64xf32>
    %94 = vector.broadcast %93 : vector<1x72x64xf32> to vector<2x72x64xf32>
    %cst_77 = arith.constant dense<0.000000e+00> : vector<2x8x64xf32>
    %95 = tpu.matmul %90, %94, %cst_77 {dimension_numbers = #tpu.dot_dimension_numbers<[2], [1], [1], [2], [0, 0, 0, 1, 1, 2], [0], [0]>} : vector<2x8x72xf32>, vector<2x72x64xf32>, vector<2x8x64xf32> -> vector<2x8x64xf32>
    %96 = arith.addf %84, %95 : vector<2x8x64xf32>
    %c1_78 = arith.constant 1 : index
    %c0_79 = arith.constant 0 : index
    %c0_80 = arith.constant 0 : index
    %97 = vector.load %arg7[%c1_78, %c0_79, %c0_80] : memref<5x72x64xf32, #tpu.memory_space<vmem>>, vector<1x72x64xf32>
    %98 = vector.shape_cast %97 : vector<1x72x64xf32> to vector<72x64xf32>
    %99 = vector.shape_cast %98 : vector<72x64xf32> to vector<1x72x64xf32>
    %100 = vector.broadcast %99 : vector<1x72x64xf32> to vector<2x72x64xf32>
    %cst_81 = arith.constant dense<0.000000e+00> : vector<2x8x64xf32>
    %101 = tpu.matmul %90, %100, %cst_81 {dimension_numbers = #tpu.dot_dimension_numbers<[2], [1], [1], [2], [0, 0, 0, 1, 1, 2], [0], [0]>} : vector<2x8x72xf32>, vector<2x72x64xf32>, vector<2x8x64xf32> -> vector<2x8x64xf32>
    %102 = arith.addf %89, %101 : vector<2x8x64xf32>
    %c0_82 = arith.constant 0 : index
    %c2_83 = arith.constant 2 : index
    %c0_84 = arith.constant 0 : index
    %103 = vector.load %arg18[%c0_82, %c2_83, %c0_84] : memref<2x12x72xf32, #tpu.memory_space<vmem>>, vector<2x8x72xf32>
    %c2_85 = arith.constant 2 : index
    %c0_86 = arith.constant 0 : index
    %c0_87 = arith.constant 0 : index
    %104 = vector.load %arg6[%c2_85, %c0_86, %c0_87] : memref<5x72x64xf32, #tpu.memory_space<vmem>>, vector<1x72x64xf32>
    %105 = vector.shape_cast %104 : vector<1x72x64xf32> to vector<72x64xf32>
    %106 = vector.shape_cast %105 : vector<72x64xf32> to vector<1x72x64xf32>
    %107 = vector.broadcast %106 : vector<1x72x64xf32> to vector<2x72x64xf32>
    %cst_88 = arith.constant dense<0.000000e+00> : vector<2x8x64xf32>
    %108 = tpu.matmul %103, %107, %cst_88 {dimension_numbers = #tpu.dot_dimension_numbers<[2], [1], [1], [2], [0, 0, 0, 1, 1, 2], [0], [0]>} : vector<2x8x72xf32>, vector<2x72x64xf32>, vector<2x8x64xf32> -> vector<2x8x64xf32>
    %109 = arith.addf %96, %108 : vector<2x8x64xf32>
    %c2_89 = arith.constant 2 : index
    %c0_90 = arith.constant 0 : index
    %c0_91 = arith.constant 0 : index
    %110 = vector.load %arg7[%c2_89, %c0_90, %c0_91] : memref<5x72x64xf32, #tpu.memory_space<vmem>>, vector<1x72x64xf32>
    %111 = vector.shape_cast %110 : vector<1x72x64xf32> to vector<72x64xf32>
    %112 = vector.shape_cast %111 : vector<72x64xf32> to vector<1x72x64xf32>
    %113 = vector.broadcast %112 : vector<1x72x64xf32> to vector<2x72x64xf32>
    %cst_92 = arith.constant dense<0.000000e+00> : vector<2x8x64xf32>
    %114 = tpu.matmul %103, %113, %cst_92 {dimension_numbers = #tpu.dot_dimension_numbers<[2], [1], [1], [2], [0, 0, 0, 1, 1, 2], [0], [0]>} : vector<2x8x72xf32>, vector<2x72x64xf32>, vector<2x8x64xf32> -> vector<2x8x64xf32>
    %115 = arith.addf %102, %114 : vector<2x8x64xf32>
    %c0_93 = arith.constant 0 : index
    %c3_94 = arith.constant 3 : index
    %c0_95 = arith.constant 0 : index
    %116 = vector.load %arg18[%c0_93, %c3_94, %c0_95] : memref<2x12x72xf32, #tpu.memory_space<vmem>>, vector<2x8x72xf32>
    %c3_96 = arith.constant 3 : index
    %c0_97 = arith.constant 0 : index
    %c0_98 = arith.constant 0 : index
    %117 = vector.load %arg6[%c3_96, %c0_97, %c0_98] : memref<5x72x64xf32, #tpu.memory_space<vmem>>, vector<1x72x64xf32>
    %118 = vector.shape_cast %117 : vector<1x72x64xf32> to vector<72x64xf32>
    %119 = vector.shape_cast %118 : vector<72x64xf32> to vector<1x72x64xf32>
    %120 = vector.broadcast %119 : vector<1x72x64xf32> to vector<2x72x64xf32>
    %cst_99 = arith.constant dense<0.000000e+00> : vector<2x8x64xf32>
    %121 = tpu.matmul %116, %120, %cst_99 {dimension_numbers = #tpu.dot_dimension_numbers<[2], [1], [1], [2], [0, 0, 0, 1, 1, 2], [0], [0]>} : vector<2x8x72xf32>, vector<2x72x64xf32>, vector<2x8x64xf32> -> vector<2x8x64xf32>
    %122 = arith.addf %109, %121 : vector<2x8x64xf32>
    %c3_100 = arith.constant 3 : index
    %c0_101 = arith.constant 0 : index
    %c0_102 = arith.constant 0 : index
    %123 = vector.load %arg7[%c3_100, %c0_101, %c0_102] : memref<5x72x64xf32, #tpu.memory_space<vmem>>, vector<1x72x64xf32>
    %124 = vector.shape_cast %123 : vector<1x72x64xf32> to vector<72x64xf32>
    %125 = vector.shape_cast %124 : vector<72x64xf32> to vector<1x72x64xf32>
    %126 = vector.broadcast %125 : vector<1x72x64xf32> to vector<2x72x64xf32>
    %cst_103 = arith.constant dense<0.000000e+00> : vector<2x8x64xf32>
    %127 = tpu.matmul %116, %126, %cst_103 {dimension_numbers = #tpu.dot_dimension_numbers<[2], [1], [1], [2], [0, 0, 0, 1, 1, 2], [0], [0]>} : vector<2x8x72xf32>, vector<2x72x64xf32>, vector<2x8x64xf32> -> vector<2x8x64xf32>
    %128 = arith.addf %115, %127 : vector<2x8x64xf32>
    %c0_104 = arith.constant 0 : index
    %c4_105 = arith.constant 4 : index
    %c0_106 = arith.constant 0 : index
    %129 = vector.load %arg18[%c0_104, %c4_105, %c0_106] : memref<2x12x72xf32, #tpu.memory_space<vmem>>, vector<2x8x72xf32>
    %c4_107 = arith.constant 4 : index
    %c0_108 = arith.constant 0 : index
    %c0_109 = arith.constant 0 : index
    %130 = vector.load %arg6[%c4_107, %c0_108, %c0_109] : memref<5x72x64xf32, #tpu.memory_space<vmem>>, vector<1x72x64xf32>
    %131 = vector.shape_cast %130 : vector<1x72x64xf32> to vector<72x64xf32>
    %132 = vector.shape_cast %131 : vector<72x64xf32> to vector<1x72x64xf32>
    %133 = vector.broadcast %132 : vector<1x72x64xf32> to vector<2x72x64xf32>
    %cst_110 = arith.constant dense<0.000000e+00> : vector<2x8x64xf32>
    %134 = tpu.matmul %129, %133, %cst_110 {dimension_numbers = #tpu.dot_dimension_numbers<[2], [1], [1], [2], [0, 0, 0, 1, 1, 2], [0], [0]>} : vector<2x8x72xf32>, vector<2x72x64xf32>, vector<2x8x64xf32> -> vector<2x8x64xf32>
    %135 = arith.addf %122, %134 : vector<2x8x64xf32>
    %c4_111 = arith.constant 4 : index
    %c0_112 = arith.constant 0 : index
    %c0_113 = arith.constant 0 : index
    %136 = vector.load %arg7[%c4_111, %c0_112, %c0_113] : memref<5x72x64xf32, #tpu.memory_space<vmem>>, vector<1x72x64xf32>
    %137 = vector.shape_cast %136 : vector<1x72x64xf32> to vector<72x64xf32>
    %138 = vector.shape_cast %137 : vector<72x64xf32> to vector<1x72x64xf32>
    %139 = vector.broadcast %138 : vector<1x72x64xf32> to vector<2x72x64xf32>
    %cst_114 = arith.constant dense<0.000000e+00> : vector<2x8x64xf32>
    %140 = tpu.matmul %129, %139, %cst_114 {dimension_numbers = #tpu.dot_dimension_numbers<[2], [1], [1], [2], [0, 0, 0, 1, 1, 2], [0], [0]>} : vector<2x8x72xf32>, vector<2x72x64xf32>, vector<2x8x64xf32> -> vector<2x8x64xf32>
    %141 = arith.addf %128, %140 : vector<2x8x64xf32>
    %142 = arith.maximumf %135, %141 : vector<2x8x64xf32>
    %c0_115 = arith.constant 0 : index
    %c0_116 = arith.constant 0 : index
    %143 = vector.load %arg9[%c0_115, %c0_116] : memref<4x8xf32, #tpu.memory_space<vmem>>, vector<4x8xf32>
    %144 = vector.shape_cast %143 : vector<4x8xf32> to vector<1x4x8xf32>
    %145 = vector.broadcast %144 : vector<1x4x8xf32> to vector<2x4x8xf32>
    %cst_117 = arith.constant dense<0.000000e+00> : vector<2x4x64xf32>
    %146 = tpu.matmul %145, %142, %cst_117 {dimension_numbers = #tpu.dot_dimension_numbers<[2], [1], [1], [2], [0, 0, 0, 1, 1, 2], [0], [0]>} : vector<2x4x8xf32>, vector<2x8x64xf32>, vector<2x4x64xf32> -> vector<2x4x64xf32>
    %c0_118 = arith.constant 0 : index
    %c0_119 = arith.constant 0 : index
    %147 = vector.load %arg10[%c0_118, %c0_119] : memref<4x8xf32, #tpu.memory_space<vmem>>, vector<4x8xf32>
    %148 = vector.shape_cast %147 : vector<4x8xf32> to vector<1x4x8xf32>
    %149 = vector.broadcast %148 : vector<1x4x8xf32> to vector<2x4x8xf32>
    %cst_120 = arith.constant dense<0.000000e+00> : vector<2x4x64xf32>
    %150 = tpu.matmul %149, %142, %cst_120 {dimension_numbers = #tpu.dot_dimension_numbers<[2], [1], [1], [2], [0, 0, 0, 1, 1, 2], [0], [0]>} : vector<2x4x8xf32>, vector<2x8x64xf32>, vector<2x4x64xf32> -> vector<2x4x64xf32>
    %151 = arith.maximumf %146, %150 : vector<2x4x64xf32>
    %c0_121 = arith.constant 0 : index
    %c0_122 = arith.constant 0 : index
    %152 = vector.load %arg8[%c0_121, %c0_122] : memref<1x64xf32, #tpu.memory_space<vmem>>, vector<1x64xf32>
    %153 = vector.shape_cast %152 : vector<1x64xf32> to vector<1x1x64xf32>
    %154 = vector.broadcast %153 : vector<1x1x64xf32> to vector<2x4x64xf32>
    %155 = arith.addf %151, %154 : vector<2x4x64xf32>
    %156 = math.tanh %155 : vector<2x4x64xf32>
    %c0_123 = arith.constant 0 : index
    %c0_124 = arith.constant 0 : index
    %c0_125 = arith.constant 0 : index
    %157 = vector.load %arg19[%c0_123, %c0_124, %c0_125] : memref<2x4x64xf32, #tpu.memory_space<vmem>>, vector<2x4x64xf32>
    tpu.vector_store %arg19[%c0_123, %c0_124, %c0_125], %156 {strides = array<i32>} : memref<2x4x64xf32, #tpu.memory_space<vmem>>, vector<2x4x64xf32>,
    %c0_126 = arith.constant 0 : index
    %c0_127 = arith.constant 0 : index
    %c0_128 = arith.constant 0 : index
    %158 = vector.load %arg19[%c0_126, %c0_127, %c0_128] : memref<2x4x64xf32, #tpu.memory_space<vmem>>, vector<2x1x64xf32>
    %c0_129 = arith.constant 0 : index
    %c0_130 = arith.constant 0 : index
    %c0_131 = arith.constant 0 : index
    %159 = vector.load %arg11[%c0_129, %c0_130, %c0_131] : memref<4x64x120xf32, #tpu.memory_space<vmem>>, vector<1x64x120xf32>
    %160 = vector.shape_cast %159 : vector<1x64x120xf32> to vector<64x120xf32>
    %161 = vector.shape_cast %160 : vector<64x120xf32> to vector<1x64x120xf32>
    %162 = vector.broadcast %161 : vector<1x64x120xf32> to vector<2x64x120xf32>
    %cst_132 = arith.constant dense<0.000000e+00> : vector<2x1x120xf32>
    %163 = tpu.matmul %158, %162, %cst_132 {dimension_numbers = #tpu.dot_dimension_numbers<[2], [1], [1], [2], [0, 0, 0, 1, 1, 2], [0], [0]>} : vector<2x1x64xf32>, vector<2x64x120xf32>, vector<2x1x120xf32> -> vector<2x1x120xf32>
    %c0_133 = arith.constant 0 : index
    %c1_134 = arith.constant 1 : index
    %c0_135 = arith.constant 0 : index
    %164 = vector.load %arg19[%c0_133, %c1_134, %c0_135] : memref<2x4x64xf32, #tpu.memory_space<vmem>>, vector<2x1x64xf32>
    %c1_136 = arith.constant 1 : index
    %c0_137 = arith.constant 0 : index
    %c0_138 = arith.constant 0 : index
    %165 = vector.load %arg11[%c1_136, %c0_137, %c0_138] : memref<4x64x120xf32, #tpu.memory_space<vmem>>, vector<1x64x120xf32>
    %166 = vector.shape_cast %165 : vector<1x64x120xf32> to vector<64x120xf32>
    %167 = vector.shape_cast %166 : vector<64x120xf32> to vector<1x64x120xf32>
    %168 = vector.broadcast %167 : vector<1x64x120xf32> to vector<2x64x120xf32>
    %cst_139 = arith.constant dense<0.000000e+00> : vector<2x1x120xf32>
    %169 = tpu.matmul %164, %168, %cst_139 {dimension_numbers = #tpu.dot_dimension_numbers<[2], [1], [1], [2], [0, 0, 0, 1, 1, 2], [0], [0]>} : vector<2x1x64xf32>, vector<2x64x120xf32>, vector<2x1x120xf32> -> vector<2x1x120xf32>
    %170 = arith.addf %163, %169 : vector<2x1x120xf32>
    %c0_140 = arith.constant 0 : index
    %c2_141 = arith.constant 2 : index
    %c0_142 = arith.constant 0 : index
    %171 = vector.load %arg19[%c0_140, %c2_141, %c0_142] : memref<2x4x64xf32, #tpu.memory_space<vmem>>, vector<2x1x64xf32>
    %c2_143 = arith.constant 2 : index
    %c0_144 = arith.constant 0 : index
    %c0_145 = arith.constant 0 : index
    %172 = vector.load %arg11[%c2_143, %c0_144, %c0_145] : memref<4x64x120xf32, #tpu.memory_space<vmem>>, vector<1x64x120xf32>
    %173 = vector.shape_cast %172 : vector<1x64x120xf32> to vector<64x120xf32>
    %174 = vector.shape_cast %173 : vector<64x120xf32> to vector<1x64x120xf32>
    %175 = vector.broadcast %174 : vector<1x64x120xf32> to vector<2x64x120xf32>
    %cst_146 = arith.constant dense<0.000000e+00> : vector<2x1x120xf32>
    %176 = tpu.matmul %171, %175, %cst_146 {dimension_numbers = #tpu.dot_dimension_numbers<[2], [1], [1], [2], [0, 0, 0, 1, 1, 2], [0], [0]>} : vector<2x1x64xf32>, vector<2x64x120xf32>, vector<2x1x120xf32> -> vector<2x1x120xf32>
    %177 = arith.addf %170, %176 : vector<2x1x120xf32>
    %c0_147 = arith.constant 0 : index
    %c3_148 = arith.constant 3 : index
    %c0_149 = arith.constant 0 : index
    %178 = vector.load %arg19[%c0_147, %c3_148, %c0_149] : memref<2x4x64xf32, #tpu.memory_space<vmem>>, vector<2x1x64xf32>
    %c3_150 = arith.constant 3 : index
    %c0_151 = arith.constant 0 : index
    %c0_152 = arith.constant 0 : index
    %179 = vector.load %arg11[%c3_150, %c0_151, %c0_152] : memref<4x64x120xf32, #tpu.memory_space<vmem>>, vector<1x64x120xf32>
    %180 = vector.shape_cast %179 : vector<1x64x120xf32> to vector<64x120xf32>
    %181 = vector.shape_cast %180 : vector<64x120xf32> to vector<1x64x120xf32>
    %182 = vector.broadcast %181 : vector<1x64x120xf32> to vector<2x64x120xf32>
    %cst_153 = arith.constant dense<0.000000e+00> : vector<2x1x120xf32>
    %183 = tpu.matmul %178, %182, %cst_153 {dimension_numbers = #tpu.dot_dimension_numbers<[2], [1], [1], [2], [0, 0, 0, 1, 1, 2], [0], [0]>} : vector<2x1x64xf32>, vector<2x64x120xf32>, vector<2x1x120xf32> -> vector<2x1x120xf32>
    %184 = arith.addf %177, %183 : vector<2x1x120xf32>
    %c0_154 = arith.constant 0 : index
    %c0_155 = arith.constant 0 : index
    %185 = vector.load %arg12[%c0_154, %c0_155] : memref<1x120xf32, #tpu.memory_space<vmem>>, vector<1x120xf32>
    %186 = vector.shape_cast %185 : vector<1x120xf32> to vector<1x1x120xf32>
    %187 = vector.broadcast %186 : vector<1x1x120xf32> to vector<2x1x120xf32>
    %188 = arith.addf %184, %187 : vector<2x1x120xf32>
    %189 = math.tanh %188 : vector<2x1x120xf32>
    %c0_156 = arith.constant 0 : index
    %c0_157 = arith.constant 0 : index
    %190 = vector.load %arg13[%c0_156, %c0_157] : memref<120x84xf32, #tpu.memory_space<vmem>>, vector<120x84xf32>
    %191 = vector.shape_cast %190 : vector<120x84xf32> to vector<1x120x84xf32>
    %192 = vector.broadcast %191 : vector<1x120x84xf32> to vector<2x120x84xf32>
    %cst_158 = arith.constant dense<0.000000e+00> : vector<2x1x84xf32>
    %193 = tpu.matmul %189, %192, %cst_158 {dimension_numbers = #tpu.dot_dimension_numbers<[2], [1], [1], [2], [0, 0, 0, 1, 1, 2], [0], [0]>} : vector<2x1x120xf32>, vector<2x120x84xf32>, vector<2x1x84xf32> -> vector<2x1x84xf32>
    %c0_159 = arith.constant 0 : index
    %c0_160 = arith.constant 0 : index
    %194 = vector.load %arg14[%c0_159, %c0_160] : memref<1x84xf32, #tpu.memory_space<vmem>>, vector<1x84xf32>
    %195 = vector.shape_cast %194 : vector<1x84xf32> to vector<1x1x84xf32>
    %196 = vector.broadcast %195 : vector<1x1x84xf32> to vector<2x1x84xf32>
    %197 = arith.addf %193, %196 : vector<2x1x84xf32>
    %198 = math.tanh %197 : vector<2x1x84xf32>
    %c0_161 = arith.constant 0 : index
    %c0_162 = arith.constant 0 : index
    %199 = vector.load %arg15[%c0_161, %c0_162] : memref<84x10xf32, #tpu.memory_space<vmem>>, vector<84x10xf32>
    %200 = vector.shape_cast %199 : vector<84x10xf32> to vector<1x84x10xf32>
    %201 = vector.broadcast %200 : vector<1x84x10xf32> to vector<2x84x10xf32>
    %cst_163 = arith.constant dense<0.000000e+00> : vector<2x1x10xf32>
    %202 = tpu.matmul %198, %201, %cst_163 {dimension_numbers = #tpu.dot_dimension_numbers<[2], [1], [1], [2], [0, 0, 0, 1, 1, 2], [0], [0]>} : vector<2x1x84xf32>, vector<2x84x10xf32>, vector<2x1x10xf32> -> vector<2x1x10xf32>
    %c0_164 = arith.constant 0 : index
    %c0_165 = arith.constant 0 : index
    %203 = vector.load %arg16[%c0_164, %c0_165] : memref<1x10xf32, #tpu.memory_space<vmem>>, vector<1x10xf32>
    %204 = vector.shape_cast %203 : vector<1x10xf32> to vector<1x1x10xf32>
    %205 = vector.broadcast %204 : vector<1x1x10xf32> to vector<2x1x10xf32>
    %206 = arith.addf %202, %205 : vector<2x1x10xf32>
    %cst_166 = arith.constant dense<0xFF800000> : vector<2x1xf32>
    %207 = vector.multi_reduction <maximumf>, %206, %cst_166 [2] : vector<2x1x10xf32> to vector<2x1xf32>
    %208 = vector.shape_cast %207 : vector<2x1xf32> to vector<2x1x1xf32>
    %209 = vector.broadcast %208 : vector<2x1x1xf32> to vector<2x1x10xf32>
    %210 = arith.subf %206, %209 : vector<2x1x10xf32>
    %211 = math.exp %210 : vector<2x1x10xf32>
    %cst_167 = arith.constant dense<0.000000e+00> : vector<2x1xf32>
    %212 = vector.multi_reduction <add>, %211, %cst_167 [2] : vector<2x1x10xf32> to vector<2x1xf32>
    %213 = vector.shape_cast %212 : vector<2x1xf32> to vector<2x1x1xf32>
    %214 = tpu.reciprocal %213 : vector<2x1x1xf32> -> vector<2x1x1xf32>
    %215 = vector.broadcast %214 : vector<2x1x1xf32> to vector<2x1x10xf32>
    %216 = arith.mulf %211, %215 : vector<2x1x10xf32>
    %c0_168 = arith.constant 0 : index
    %c0_169 = arith.constant 0 : index
    %c0_170 = arith.constant 0 : index
    %217 = vector.load %arg17[%c0_168, %c0_169, %c0_170] : memref<2x1x10xf32, #tpu.memory_space<vmem>>, vector<2x1x10xf32>
    tpu.vector_store %arg17[%c0_168, %c0_169, %c0_170], %216 {strides = array<i32>} : memref<2x1x10xf32, #tpu.memory_space<vmem>>, vector<2x1x10xf32>,
    return
  }
}

</mosaic_0001>

<llo_original>
// kernel: lenet5_forward.1
$region0: #{lenet5_forward.1}
  #allocation0 [shape = 'u32[]', space=smem, size = 0x4, offset = 0x4, fixed_abs, tag = 'smem constant byte address 0x4 - core index']
  #allocation1 [shape = 'u32[144,128]{1,0:T(1,128)}', space=vmem, size = 0x12000, scoped, tag = 'internal scratch']
  #allocation2 [shape = 'f32[2,12,72]{2,1,0:T(8,128)}', space=vmem, size = 0x4000, scoped, tag = 'scratch operand']
  #allocation3 [shape = 'f32[2,4,64]{2,1,0:T(4,128)}', space=vmem, size = 0x1000, scoped, tag = 'scratch operand']
  %s0 = inlined_call_operand.vmem [shape: f32[2,28,28], index: 0, kind: input, shape index: {}]
  %s1 = inlined_call_operand.vmem [shape: f32[5,28,72], index: 1, kind: input, shape index: {}]
  %s2 = inlined_call_operand.vmem [shape: f32[5,28,72], index: 2, kind: input, shape index: {}]
  %s3 = inlined_call_operand.vmem [shape: f32[1,72], index: 3, kind: input, shape index: {}]
  %s4 = inlined_call_operand.vmem [shape: f32[12,24], index: 4, kind: input, shape index: {}]
  %s5 = inlined_call_operand.vmem [shape: f32[12,24], index: 5, kind: input, shape index: {}]
  %s6 = inlined_call_operand.vmem [shape: f32[5,72,64], index: 6, kind: input, shape index: {}]
  %s7 = inlined_call_operand.vmem [shape: f32[5,72,64], index: 7, kind: input, shape index: {}]
  %s8 = inlined_call_operand.vmem [shape: f32[1,64], index: 8, kind: input, shape index: {}]
  %s9 = inlined_call_operand.vmem [shape: f32[4,8], index: 9, kind: input, shape index: {}]
  %s10 = inlined_call_operand.vmem [shape: f32[4,8], index: 10, kind: input, shape index: {}]
  %s11 = inlined_call_operand.vmem [shape: f32[4,64,120], index: 11, kind: input, shape index: {}]
  %s12 = inlined_call_operand.vmem [shape: f32[1,120], index: 12, kind: input, shape index: {}]
  %s13 = inlined_call_operand.vmem [shape: f32[120,84], index: 13, kind: input, shape index: {}]
  %s14 = inlined_call_operand.vmem [shape: f32[1,84], index: 14, kind: input, shape index: {}]
  %s15 = inlined_call_operand.vmem [shape: f32[84,10], index: 15, kind: input, shape index: {}]
  %s16 = inlined_call_operand.vmem [shape: f32[1,10], index: 16, kind: input, shape index: {}]
  %s17 = inlined_call_operand.hbm [shape: f32[2,1,10], index: 17, kind: output, shape index: {}]
  %s18 = sld [smem:[#allocation0]]
  $region78: #{lenet5_forward.1} parent=0
    _
  %s20 = ssub.s32 1, %s18
  %s21 = scalar_select 0, %s20, %s18
  $region1: #{lenet5_forward.1} parent=0
    #allocation4 [shape = 'u8[1024]{0}', space=vmem, size = 0x400, scoped, tag = 'output window, operand 0, single buffered']
    #allocation5 [shape = 's32[1]{0}', space=sflag, size = 0x4, scoped, tag = 'scoped memory for lenet5_forward.1']
    %22 = vsyncpa [#allocation5], 0
    // Predicated region
    $region2: #{lenet5_forward.1} parent=1 // pred_check
      _
    $region3: #{lenet5_forward.1} parent=1 // pred_check_branch
      %24 = sbr.rel (0) target = $region5
    $region4: #{lenet5_forward.1} parent=1 // pred_region
      _
    $region5: #{lenet5_forward.1} parent=1 // pred_fallthru
      _
    // Predicated region
    $region6: #{lenet5_forward.1} parent=1 // pred_check
      _
    $region7: #{lenet5_forward.1} parent=1 // pred_check_branch
      %26 = sbr.rel (0) target = $region9
    $region8: #{lenet5_forward.1} parent=1 // pred_region
      _
    $region9: #{lenet5_forward.1} parent=1 // pred_fallthru
      _
    // Predicated region
    $region10: #{lenet5_forward.1} parent=1 // pred_check
      _
    $region11: #{lenet5_forward.1} parent=1 // pred_check_branch
      %28 = sbr.rel (0) target = $region13
    $region12: #{lenet5_forward.1} parent=1 // pred_region
      _
    $region13: #{lenet5_forward.1} parent=1 // pred_fallthru
      _
    // Predicated region
    $region14: #{lenet5_forward.1} parent=1 // pred_check
      _
    $region15: #{lenet5_forward.1} parent=1 // pred_check_branch
      %30 = sbr.rel (0) target = $region17
    $region16: #{lenet5_forward.1} parent=1 // pred_region
      _
    $region17: #{lenet5_forward.1} parent=1 // pred_fallthru
      _
    // Predicated region
    $region18: #{lenet5_forward.1} parent=1 // pred_check
      _
    $region19: #{lenet5_forward.1} parent=1 // pred_check_branch
      %32 = sbr.rel (0) target = $region21
    $region20: #{lenet5_forward.1} parent=1 // pred_region
      _
    $region21: #{lenet5_forward.1} parent=1 // pred_fallthru
      _
    // Predicated region
    $region22: #{lenet5_forward.1} parent=1 // pred_check
      _
    $region23: #{lenet5_forward.1} parent=1 // pred_check_branch
      %34 = sbr.rel (0) target = $region25
    $region24: #{lenet5_forward.1} parent=1 // pred_region
      _
    $region25: #{lenet5_forward.1} parent=1 // pred_fallthru
      _
    // Predicated region
    $region26: #{lenet5_forward.1} parent=1 // pred_check
      _
    $region27: #{lenet5_forward.1} parent=1 // pred_check_branch
      %36 = sbr.rel (0) target = $region29
    $region28: #{lenet5_forward.1} parent=1 // pred_region
      _
    $region29: #{lenet5_forward.1} parent=1 // pred_fallthru
      _
    // Predicated region
    $region30: #{lenet5_forward.1} parent=1 // pred_check
      _
    $region31: #{lenet5_forward.1} parent=1 // pred_check_branch
      %38 = sbr.rel (0) target = $region33
    $region32: #{lenet5_forward.1} parent=1 // pred_region
      _
    $region33: #{lenet5_forward.1} parent=1 // pred_fallthru
      _
    // Predicated region
    $region34: #{lenet5_forward.1} parent=1 // pred_check
      _
    $region35: #{lenet5_forward.1} parent=1 // pred_check_branch
      %40 = sbr.rel (0) target = $region37
    $region36: #{lenet5_forward.1} parent=1 // pred_region
      _
    $region37: #{lenet5_forward.1} parent=1 // pred_fallthru
      _
    // Predicated region
    $region38: #{lenet5_forward.1} parent=1 // pred_check
      _
    $region39: #{lenet5_forward.1} parent=1 // pred_check_branch
      %42 = sbr.rel (0) target = $region41
    $region40: #{lenet5_forward.1} parent=1 // pred_region
      _
    $region41: #{lenet5_forward.1} parent=1 // pred_fallthru
      _
    // Predicated region
    $region42: #{lenet5_forward.1} parent=1 // pred_check
      _
    $region43: #{lenet5_forward.1} parent=1 // pred_check_branch
      %44 = sbr.rel (0) target = $region45
    $region44: #{lenet5_forward.1} parent=1 // pred_region
      _
    $region45: #{lenet5_forward.1} parent=1 // pred_fallthru
      _
    // Predicated region
    $region46: #{lenet5_forward.1} parent=1 // pred_check
      _
    $region47: #{lenet5_forward.1} parent=1 // pred_check_branch
      %46 = sbr.rel (0) target = $region49
    $region48: #{lenet5_forward.1} parent=1 // pred_region
      _
    $region49: #{lenet5_forward.1} parent=1 // pred_fallthru
      _
    // Predicated region
    $region50: #{lenet5_forward.1} parent=1 // pred_check
      _
    $region51: #{lenet5_forward.1} parent=1 // pred_check_branch
      %48 = sbr.rel (0) target = $region53
    $region52: #{lenet5_forward.1} parent=1 // pred_region
      _
    $region53: #{lenet5_forward.1} parent=1 // pred_fallthru
      _
    // Predicated region
    $region54: #{lenet5_forward.1} parent=1 // pred_check
      _
    $region55: #{lenet5_forward.1} parent=1 // pred_check_branch
      %50 = sbr.rel (0) target = $region57
    $region56: #{lenet5_forward.1} parent=1 // pred_region
      _
    $region57: #{lenet5_forward.1} parent=1 // pred_fallthru
      _
    // Predicated region
    $region58: #{lenet5_forward.1} parent=1 // pred_check
      _
    $region59: #{lenet5_forward.1} parent=1 // pred_check_branch
      %52 = sbr.rel (0) target = $region61
    $region60: #{lenet5_forward.1} parent=1 // pred_region
      _
    $region61: #{lenet5_forward.1} parent=1 // pred_fallthru
      _
    // Predicated region
    $region62: #{lenet5_forward.1} parent=1 // pred_check
      _
    $region63: #{lenet5_forward.1} parent=1 // pred_check_branch
      %54 = sbr.rel (0) target = $region65
    $region64: #{lenet5_forward.1} parent=1 // pred_region
      _
    $region65: #{lenet5_forward.1} parent=1 // pred_fallthru
      _
    // Predicated region
    $region66: #{lenet5_forward.1} parent=1 // pred_check
      _
    $region67: #{lenet5_forward.1} parent=1 // pred_check_branch
      %56 = sbr.rel (0) target = $region69
    $region68: #{lenet5_forward.1} parent=1 // pred_region
      _
    $region69: #{lenet5_forward.1} parent=1 // pred_fallthru
      _
    %v57 = vld [vmem:[%s0] sm:$0xff]
    %v58 = vld [vmem:[%s0 + $0x8] sm:$0xff]
    %v59 = vld [vmem:[%s0 + $0x10] sm:$0xff]
    %v60 = vld [vmem:[%s0 + $0x20] sm:$0xff]
    %v61 = vld [vmem:[%s0 + $0x28] sm:$0xff]
    %v62 = vld [vmem:[%s0 + $0x30] sm:$0xff]
    %v63 = vld [vmem:[%s1] sm:$0xff]
    %v64 = vld [vmem:[%s1 + $0x8] sm:$0xff]
    %v65 = vld [vmem:[%s1 + $0x10] sm:$0xff]
    %v66 = vld [vmem:[%s1 + $0x18] sm:$0xf]
    %v67 = vld [vmem:[%s2] sm:$0xff]
    %v68 = vld [vmem:[%s2 + $0x8] sm:$0xff]
    %v69 = vld [vmem:[%s2 + $0x10] sm:$0xff]
    %v70 = vld [vmem:[%s2 + $0x18] sm:$0xf]
    %v71 = vld [vmem:[%s0 + $0x1] sm:$0xff]
    %v72 = vld [vmem:[%s0 + $0x9] sm:$0xff]
    %v73 = vld [vmem:[%s0 + $0x11] sm:$0xff]
    %v74 = vld [vmem:[%s0 + $0x21] sm:$0xff]
    %v75 = vld [vmem:[%s0 + $0x29] sm:$0xff]
    %v76 = vld [vmem:[%s0 + $0x31] sm:$0xff]
    %s77 = scalar_lea.vmem %s1, 32
    %v78 = vld [vmem:[%s77] sm:$0xff]
    %v79 = vld [vmem:[%s77 + $0x8] sm:$0xff]
    %v80 = vld [vmem:[%s77 + $0x10] sm:$0xff]
    %v81 = vld [vmem:[%s77 + $0x18] sm:$0xf]
    %vm82 = vcmask 228352
    %v84 = vsel %vm82, %v71, 0
    %v87 = vsel %vm82, %v72, 0
    %v90 = vsel %vm82, %v73, 0
    %vm92 = vcmask 1043456
    %v94 = vsel %vm92, %v81, 0
    %96 = vmatprep.subr.mxu0 0.0
    %97 = vmatpush1.msra.mxu0 %v78
    %98 = vmatprep.subr.mxu0 0.0
    %99 = vmatpush1.msra.mxu0 %v79
    %100 = vmatprep.subr.mxu0 0.0
    %101 = vmatpush1.msra.mxu0 %v80
    %102 = vmatprep.subr.mxu0 0.0
    %103 = vmatpush1.msra.mxu0 %v94
    %104 = vmatprep.subr.mxu0 0.0
    %105 = vmatpush1.msra.mxu0 0.0
    %106 = vmatprep.subr.mxu0 0.0
    %107 = vmatpush1.msra.mxu0 0.0
    %108 = vmatprep.subr.mxu0 0.0
    %109 = vmatpush1.msra.mxu0 0.0
    %110 = vmatprep.subr.mxu0 0.0
    %111 = vmatpush1.msra.mxu0 0.0
    %112 = vmatprep.subr.mxu0 0.0
    %113 = vmatpush1.msra.mxu0 0.0
    %114 = vmatprep.subr.mxu0 0.0
    %115 = vmatpush1.msra.mxu0 0.0
    %116 = vmatprep.subr.mxu0 0.0
    %117 = vmatpush1.msra.mxu0 0.0
    %118 = vmatprep.subr.mxu0 0.0
    %119 = vmatpush1.msra.mxu0 0.0
    %120 = vmatprep.subr.mxu0 0.0
    %121 = vmatpush1.msra.mxu0 0.0
    %122 = vmatprep.subr.mxu0 0.0
    %123 = vmatpush1.msra.mxu0 0.0
    %124 = vmatprep.subr.mxu0 0.0
    %125 = vmatpush1.msra.mxu0 0.0
    %126 = vmatprep.subr.mxu0 0.0
    %127 = vmatpush1.msra.mxu0 0.0
    %128 = vmatprep.subr.mxu0 0.0
    %129 = vmatpush1.msra.mxu0 0.0
    %130 = vmatprep.subr.mxu0 0.0
    %131 = vmatpush1.msra.mxu0 0.0
    %132 = vmatprep.subr.mxu0 0.0
    %133 = vmatpush1.msra.mxu0 0.0
    %134 = vmatprep.subr.mxu0 0.0
    %135 = vmatpush1.msra.mxu0 0.0
    %136 = vmatprep.subr.mxu0 0.0
    %137 = vmatpush1.msra.mxu0 0.0
    %138 = vmatprep.subr.mxu0 0.0
    %139 = vmatpush1.msra.mxu0 0.0
    %140 = vmatprep.subr.mxu0 0.0
    %141 = vmatpush1.msra.mxu0 0.0
    %142 = vmatprep.subr.mxu0 0.0
    %143 = vmatpush1.msra.mxu0 0.0
    %144 = vmatprep.subr.mxu0 0.0
    %145 = vmatpush1.msra.mxu0 0.0
    %146 = vmatprep.subr.mxu0 0.0
    %147 = vmatpush1.msra.mxu0 0.0
    %148 = vmatprep.subr.mxu0 0.0
    %149 = vmatpush1.msra.mxu0 0.0
    %150 = vmatprep.subr.mxu0 0.0
    %151 = vmatpush1.msra.mxu0 0.0
    %152 = vmatprep.subr.mxu0 0.0
    %153 = vmatpush1.msra.mxu0 0.0
    %154 = vmatprep.subr.mxu0 0.0
    %155 = vmatpush1.msra.mxu0 0.0
    %156 = vmatprep.subr.mxu0 0.0
    %157 = vmatpush1.msra.mxu0 0.0
    %158 = vmatprep.subr.mxu0 0.0
    %159 = vmatpush1.msra.mxu0 0.0
    %160 = vmatprep.mubr.f32.mxu0 0.0
    %161 = vmatmul.mubr.f32.gmra.mrb[0].mxu0 %v84
    %v162 = vpop.f32.mrb[0].mxu0
    %v163 = vadd.f32 0.0, %v162
    %v164 = vpop.f32.mrb[0].mxu0
    %165 = vmatprep.mubr.f32.mxu0 0.0
    %166 = vmatmul.mubr.f32.gmra.mrb[0].mxu0 %v87
    %v167 = vpop.f32.mrb[0].mxu0
    %v168 = vadd.f32 0.0, %v167
    %v169 = vpop.f32.mrb[0].mxu0
    %170 = vmatprep.mubr.f32.mxu0 0.0
    %171 = vmatmul.mubr.f32.gmra.mrb[0].mxu0 %v90
    %v172 = vpop.f32.mrb[0].mxu0
    %v173 = vadd.f32 0.0, %v172
    %v174 = vpop.f32.mrb[0].mxu0
    %175 = vdwg.mxu0
    %v177 = vsel %vm82, %v74, 0
    %v180 = vsel %vm82, %v75, 0
    %v183 = vsel %vm82, %v76, 0
    %185 = vmatprep.subr.mxu0 0.0
    %186 = vmatpush1.msra.mxu0 %v78
    %187 = vmatprep.subr.mxu0 0.0
    %188 = vmatpush1.msra.mxu0 %v79
    %189 = vmatprep.subr.mxu0 0.0
    %190 = vmatpush1.msra.mxu0 %v80
    %191 = vmatprep.subr.mxu0 0.0
    %192 = vmatpush1.msra.mxu0 %v94
    %193 = vmatprep.subr.mxu0 0.0
    %194 = vmatpush1.msra.mxu0 0.0
    %195 = vmatprep.subr.mxu0 0.0
    %196 = vmatpush1.msra.mxu0 0.0
    %197 = vmatprep.subr.mxu0 0.0
    %198 = vmatpush1.msra.mxu0 0.0
    %199 = vmatprep.subr.mxu0 0.0
    %200 = vmatpush1.msra.mxu0 0.0
    %201 = vmatprep.subr.mxu0 0.0
    %202 = vmatpush1.msra.mxu0 0.0
    %203 = vmatprep.subr.mxu0 0.0
    %204 = vmatpush1.msra.mxu0 0.0
    %205 = vmatprep.subr.mxu0 0.0
    %206 = vmatpush1.msra.mxu0 0.0
    %207 = vmatprep.subr.mxu0 0.0
    %208 = vmatpush1.msra.mxu0 0.0
    %209 = vmatprep.subr.mxu0 0.0
    %210 = vmatpush1.msra.mxu0 0.0
    %211 = vmatprep.subr.mxu0 0.0
    %212 = vmatpush1.msra.mxu0 0.0
    %213 = vmatprep.subr.mxu0 0.0
    %214 = vmatpush1.msra.mxu0 0.0
    %215 = vmatprep.subr.mxu0 0.0
    %216 = vmatpush1.msra.mxu0 0.0
    %217 = vmatprep.subr.mxu0 0.0
    %218 = vmatpush1.msra.mxu0 0.0
    %219 = vmatprep.subr.mxu0 0.0
    %220 = vmatpush1.msra.mxu0 0.0
    %221 = vmatprep.subr.mxu0 0.0
    %222 = vmatpush1.msra.mxu0 0.0
    %223 = vmatprep.subr.mxu0 0.0
    %224 = vmatpush1.msra.mxu0 0.0
    %225 = vmatprep.subr.mxu0 0.0
    %226 = vmatpush1.msra.mxu0 0.0
    %227 = vmatprep.subr.mxu0 0.0
    %228 = vmatpush1.msra.mxu0 0.0
    %229 = vmatprep.subr.mxu0 0.0
    %230 = vmatpush1.msra.mxu0 0.0
    %231 = vmatprep.subr.mxu0 0.0
    %232 = vmatpush1.msra.mxu0 0.0
    %233 = vmatprep.subr.mxu0 0.0
    %234 = vmatpush1.msra.mxu0 0.0
    %235 = vmatprep.subr.mxu0 0.0
    %236 = vmatpush1.msra.mxu0 0.0
    %237 = vmatprep.subr.mxu0 0.0
    %238 = vmatpush1.msra.mxu0 0.0
    %239 = vmatprep.subr.mxu0 0.0
    %240 = vmatpush1.msra.mxu0 0.0
    %241 = vmatprep.subr.mxu0 0.0
    %242 = vmatpush1.msra.mxu0 0.0
    %243 = vmatprep.subr.mxu0 0.0
    %244 = vmatpush1.msra.mxu0 0.0
    %245 = vmatprep.subr.mxu0 0.0
    %246 = vmatpush1.msra.mxu0 0.0
    %247 = vmatprep.subr.mxu0 0.0
    %248 = vmatpush1.msra.mxu0 0.0
    %249 = vmatprep.mubr.f32.mxu0 0.0
    %250 = vmatmul.mubr.f32.gmra.mrb[0].mxu0 %v177
    %v251 = vpop.f32.mrb[0].mxu0
    %v252 = vadd.f32 0.0, %v251
    %v253 = vpop.f32.mrb[0].mxu0
    %254 = vmatprep.mubr.f32.mxu0 0.0
    %255 = vmatmul.mubr.f32.gmra.mrb[0].mxu0 %v180
    %v256 = vpop.f32.mrb[0].mxu0
    %v257 = vadd.f32 0.0, %v256
    %v258 = vpop.f32.mrb[0].mxu0
    %259 = vmatprep.mubr.f32.mxu0 0.0
    %260 = vmatmul.mubr.f32.gmra.mrb[0].mxu0 %v183
    %v261 = vpop.f32.mrb[0].mxu0
    %v262 = vadd.f32 0.0, %v261
    %v263 = vpop.f32.mrb[0].mxu0
    %264 = vdwg.mxu0
    %v266 = vsel %vm82, %v57, 0
    %v269 = vsel %vm82, %v58, 0
    %v272 = vsel %vm82, %v59, 0
    %v275 = vsel %vm92, %v66, 0
    %277 = vmatprep.subr.mxu0 0.0
    %278 = vmatpush1.msra.mxu0 %v63
    %279 = vmatprep.subr.mxu0 0.0
    %280 = vmatpush1.msra.mxu0 %v64
    %281 = vmatprep.subr.mxu0 0.0
    %282 = vmatpush1.msra.mxu0 %v65
    %283 = vmatprep.subr.mxu0 0.0
    %284 = vmatpush1.msra.mxu0 %v275
    %285 = vmatprep.subr.mxu0 0.0
    %286 = vmatpush1.msra.mxu0 0.0
    %287 = vmatprep.subr.mxu0 0.0
    %288 = vmatpush1.msra.mxu0 0.0
    %289 = vmatprep.subr.mxu0 0.0
    %290 = vmatpush1.msra.mxu0 0.0
    %291 = vmatprep.subr.mxu0 0.0
    %292 = vmatpush1.msra.mxu0 0.0
    %293 = vmatprep.subr.mxu0 0.0
    %294 = vmatpush1.msra.mxu0 0.0
    %295 = vmatprep.subr.mxu0 0.0
    %296 = vmatpush1.msra.mxu0 0.0
    %297 = vmatprep.subr.mxu0 0.0
    %298 = vmatpush1.msra.mxu0 0.0
    %299 = vmatprep.subr.mxu0 0.0
    %300 = vmatpush1.msra.mxu0 0.0
    %301 = vmatprep.subr.mxu0 0.0
    %302 = vmatpush1.msra.mxu0 0.0
    %303 = vmatprep.subr.mxu0 0.0
    %304 = vmatpush1.msra.mxu0 0.0
    %305 = vmatprep.subr.mxu0 0.0
    %306 = vmatpush1.msra.mxu0 0.0
    %307 = vmatprep.subr.mxu0 0.0
    %308 = vmatpush1.msra.mxu0 0.0
    %309 = vmatprep.subr.mxu0 0.0
    %310 = vmatpush1.msra.mxu0 0.0
    %311 = vmatprep.subr.mxu0 0.0
    %312 = vmatpush1.msra.mxu0 0.0
    %313 = vmatprep.subr.mxu0 0.0
    %314 = vmatpush1.msra.mxu0 0.0
    %315 = vmatprep.subr.mxu0 0.0
    %316 = vmatpush1.msra.mxu0 0.0
    %317 = vmatprep.subr.mxu0 0.0
    %318 = vmatpush1.msra.mxu0 0.0
    %319 = vmatprep.subr.mxu0 0.0
    %320 = vmatpush1.msra.mxu0 0.0
    %321 = vmatprep.subr.mxu0 0.0
    %322 = vmatpush1.msra.mxu0 0.0
    %323 = vmatprep.subr.mxu0 0.0
    %324 = vmatpush1.msra.mxu0 0.0
    %325 = vmatprep.subr.mxu0 0.0
    %326 = vmatpush1.msra.mxu0 0.0
    %327 = vmatprep.subr.mxu0 0.0
    %328 = vmatpush1.msra.mxu0 0.0
    %329 = vmatprep.subr.mxu0 0.0
    %330 = vmatpush1.msra.mxu0 0.0
    %331 = vmatprep.subr.mxu0 0.0
    %332 = vmatpush1.msra.mxu0 0.0
    %333 = vmatprep.subr.mxu0 0.0
    %334 = vmatpush1.msra.mxu0 0.0
    %335 = vmatprep.subr.mxu0 0.0
    %336 = vmatpush1.msra.mxu0 0.0
    %337 = vmatprep.subr.mxu0 0.0
    %338 = vmatpush1.msra.mxu0 0.0
    %339 = vmatprep.subr.mxu0 0.0
    %340 = vmatpush1.msra.mxu0 0.0
    %341 = vmatprep.mubr.f32.mxu0 0.0
    %342 = vmatmul.mubr.f32.gmra.mrb[0].mxu0 %v266
    %v343 = vpop.f32.mrb[0].mxu0
    %v344 = vadd.f32 %v163, %v343
    %v345 = vpop.f32.mrb[0].mxu0
    %346 = vmatprep.mubr.f32.mxu0 0.0
    %347 = vmatmul.mubr.f32.gmra.mrb[0].mxu0 %v269
    %v348 = vpop.f32.mrb[0].mxu0
    %v349 = vadd.f32 %v168, %v348
    %v350 = vpop.f32.mrb[0].mxu0
    %351 = vmatprep.mubr.f32.mxu0 0.0
    %352 = vmatmul.mubr.f32.gmra.mrb[0].mxu0 %v272
    %v353 = vpop.f32.mrb[0].mxu0
    %v354 = vadd.f32 %v173, %v353
    %v355 = vpop.f32.mrb[0].mxu0
    %356 = vdwg.mxu0
    %v358 = vsel %vm82, %v60, 0
    %v361 = vsel %vm82, %v61, 0
    %v364 = vsel %vm82, %v62, 0
    %366 = vmatprep.subr.mxu0 0.0
    %367 = vmatpush1.msra.mxu0 %v63
    %368 = vmatprep.subr.mxu0 0.0
    %369 = vmatpush1.msra.mxu0 %v64
    %370 = vmatprep.subr.mxu0 0.0
    %371 = vmatpush1.msra.mxu0 %v65
    %372 = vmatprep.subr.mxu0 0.0
    %373 = vmatpush1.msra.mxu0 %v275
    %374 = vmatprep.subr.mxu0 0.0
    %375 = vmatpush1.msra.mxu0 0.0
    %376 = vmatprep.subr.mxu0 0.0
    %377 = vmatpush1.msra.mxu0 0.0
    %378 = vmatprep.subr.mxu0 0.0
    %379 = vmatpush1.msra.mxu0 0.0
    %380 = vmatprep.subr.mxu0 0.0
    %381 = vmatpush1.msra.mxu0 0.0
    %382 = vmatprep.subr.mxu0 0.0
    %383 = vmatpush1.msra.mxu0 0.0
    %384 = vmatprep.subr.mxu0 0.0
    %385 = vmatpush1.msra.mxu0 0.0
    %386 = vmatprep.subr.mxu0 0.0
    %387 = vmatpush1.msra.mxu0 0.0
    %388 = vmatprep.subr.mxu0 0.0
    %389 = vmatpush1.msra.mxu0 0.0
    %390 = vmatprep.subr.mxu0 0.0
    %391 = vmatpush1.msra.mxu0 0.0
    %392 = vmatprep.subr.mxu0 0.0
    %393 = vmatpush1.msra.mxu0 0.0
    %394 = vmatprep.subr.mxu0 0.0
    %395 = vmatpush1.msra.mxu0 0.0
    %396 = vmatprep.subr.mxu0 0.0
    %397 = vmatpush1.msra.mxu0 0.0
    %398 = vmatprep.subr.mxu0 0.0
    %399 = vmatpush1.msra.mxu0 0.0
    %400 = vmatprep.subr.mxu0 0.0
    %401 = vmatpush1.msra.mxu0 0.0
    %402 = vmatprep.subr.mxu0 0.0
    %403 = vmatpush1.msra.mxu0 0.0
    %404 = vmatprep.subr.mxu0 0.0
    %405 = vmatpush1.msra.mxu0 0.0
    %406 = vmatprep.subr.mxu0 0.0
    %407 = vmatpush1.msra.mxu0 0.0
    %408 = vmatprep.subr.mxu0 0.0
    %409 = vmatpush1.msra.mxu0 0.0
    %410 = vmatprep.subr.mxu0 0.0
    %411 = vmatpush1.msra.mxu0 0.0
    %412 = vmatprep.subr.mxu0 0.0
    %413 = vmatpush1.msra.mxu0 0.0
    %414 = vmatprep.subr.mxu0 0.0
    %415 = vmatpush1.msra.mxu0 0.0
    %416 = vmatprep.subr.mxu0 0.0
    %417 = vmatpush1.msra.mxu0 0.0
    %418 = vmatprep.subr.mxu0 0.0
    %419 = vmatpush1.msra.mxu0 0.0
    %420 = vmatprep.subr.mxu0 0.0
    %421 = vmatpush1.msra.mxu0 0.0
    %422 = vmatprep.subr.mxu0 0.0
    %423 = vmatpush1.msra.mxu0 0.0
    %424 = vmatprep.subr.mxu0 0.0
    %425 = vmatpush1.msra.mxu0 0.0
    %426 = vmatprep.subr.mxu0 0.0
    %427 = vmatpush1.msra.mxu0 0.0
    %428 = vmatprep.subr.mxu0 0.0
    %429 = vmatpush1.msra.mxu0 0.0
    %430 = vmatprep.mubr.f32.mxu0 0.0
    %431 = vmatmul.mubr.f32.gmra.mrb[0].mxu0 %v358
    %v432 = vpop.f32.mrb[0].mxu0
    %v433 = vadd.f32 %v252, %v432
    %v434 = vpop.f32.mrb[0].mxu0
    %435 = vmatprep.mubr.f32.mxu0 0.0
    %436 = vmatmul.mubr.f32.gmra.mrb[0].mxu0 %v361
    %v437 = vpop.f32.mrb[0].mxu0
    %v438 = vadd.f32 %v257, %v437
    %v439 = vpop.f32.mrb[0].mxu0
    %440 = vmatprep.mubr.f32.mxu0 0.0
    %441 = vmatmul.mubr.f32.gmra.mrb[0].mxu0 %v364
    %v442 = vpop.f32.mrb[0].mxu0
    %v443 = vadd.f32 %v262, %v442
    %v444 = vpop.f32.mrb[0].mxu0
    %445 = vdwg.mxu0
    %s446 = scalar_lea.vmem %s2, 32
    %v447 = vld [vmem:[%s446] sm:$0xff]
    %v448 = vld [vmem:[%s446 + $0x8] sm:$0xff]
    %v449 = vld [vmem:[%s446 + $0x10] sm:$0xff]
    %v450 = vld [vmem:[%s446 + $0x18] sm:$0xf]
    %v452 = vsel %vm92, %v450, 0
    %454 = vmatprep.subr.mxu0 0.0
    %455 = vmatpush1.msra.mxu0 %v447
    %456 = vmatprep.subr.mxu0 0.0
    %457 = vmatpush1.msra.mxu0 %v448
    %458 = vmatprep.subr.mxu0 0.0
    %459 = vmatpush1.msra.mxu0 %v449
    %460 = vmatprep.subr.mxu0 0.0
    %461 = vmatpush1.msra.mxu0 %v452
    %462 = vmatprep.subr.mxu0 0.0
    %463 = vmatpush1.msra.mxu0 0.0
    %464 = vmatprep.subr.mxu0 0.0
    %465 = vmatpush1.msra.mxu0 0.0
    %466 = vmatprep.subr.mxu0 0.0
    %467 = vmatpush1.msra.mxu0 0.0
    %468 = vmatprep.subr.mxu0 0.0
    %469 = vmatpush1.msra.mxu0 0.0
    %470 = vmatprep.subr.mxu0 0.0
    %471 = vmatpush1.msra.mxu0 0.0
    %472 = vmatprep.subr.mxu0 0.0
    %473 = vmatpush1.msra.mxu0 0.0
    %474 = vmatprep.subr.mxu0 0.0
    %475 = vmatpush1.msra.mxu0 0.0
    %476 = vmatprep.subr.mxu0 0.0
    %477 = vmatpush1.msra.mxu0 0.0
    %478 = vmatprep.subr.mxu0 0.0
    %479 = vmatpush1.msra.mxu0 0.0
    %480 = vmatprep.subr.mxu0 0.0
    %481 = vmatpush1.msra.mxu0 0.0
    %482 = vmatprep.subr.mxu0 0.0
    %483 = vmatpush1.msra.mxu0 0.0
    %484 = vmatprep.subr.mxu0 0.0
    %485 = vmatpush1.msra.mxu0 0.0
    %486 = vmatprep.subr.mxu0 0.0
    %487 = vmatpush1.msra.mxu0 0.0
    %488 = vmatprep.subr.mxu0 0.0
    %489 = vmatpush1.msra.mxu0 0.0
    %490 = vmatprep.subr.mxu0 0.0
    %491 = vmatpush1.msra.mxu0 0.0
    %492 = vmatprep.subr.mxu0 0.0
    %493 = vmatpush1.msra.mxu0 0.0
    %494 = vmatprep.subr.mxu0 0.0
    %495 = vmatpush1.msra.mxu0 0.0
    %496 = vmatprep.subr.mxu0 0.0
    %497 = vmatpush1.msra.mxu0 0.0
    %498 = vmatprep.subr.mxu0 0.0
    %499 = vmatpush1.msra.mxu0 0.0
    %500 = vmatprep.subr.mxu0 0.0
    %501 = vmatpush1.msra.mxu0 0.0
    %502 = vmatprep.subr.mxu0 0.0
    %503 = vmatpush1.msra.mxu0 0.0
    %504 = vmatprep.subr.mxu0 0.0
    %505 = vmatpush1.msra.mxu0 0.0
    %506 = vmatprep.subr.mxu0 0.0
    %507 = vmatpush1.msra.mxu0 0.0
    %508 = vmatprep.subr.mxu0 0.0
    %509 = vmatpush1.msra.mxu0 0.0
    %510 = vmatprep.subr.mxu0 0.0
    %511 = vmatpush1.msra.mxu0 0.0
    %512 = vmatprep.subr.mxu0 0.0
    %513 = vmatpush1.msra.mxu0 0.0
    %514 = vmatprep.subr.mxu0 0.0
    %515 = vmatpush1.msra.mxu0 0.0
    %516 = vmatprep.subr.mxu0 0.0
    %517 = vmatpush1.msra.mxu0 0.0
    %518 = vmatprep.mubr.f32.mxu0 0.0
    %519 = vmatmul.mubr.f32.gmra.mrb[0].mxu0 %v84
    %v520 = vpop.f32.mrb[0].mxu0
    %v521 = vadd.f32 0.0, %v520
    %v522 = vpop.f32.mrb[0].mxu0
    %523 = vmatprep.mubr.f32.mxu0 0.0
    %524 = vmatmul.mubr.f32.gmra.mrb[0].mxu0 %v87
    %v525 = vpop.f32.mrb[0].mxu0
    %v526 = vadd.f32 0.0, %v525
    %v527 = vpop.f32.mrb[0].mxu0
    %528 = vmatprep.mubr.f32.mxu0 0.0
    %529 = vmatmul.mubr.f32.gmra.mrb[0].mxu0 %v90
    %v530 = vpop.f32.mrb[0].mxu0
    %v531 = vadd.f32 0.0, %v530
    %v532 = vpop.f32.mrb[0].mxu0
    %533 = vdwg.mxu0
    %534 = vmatprep.subr.mxu0 0.0
    %535 = vmatpush1.msra.mxu0 %v447
    %536 = vmatprep.subr.mxu0 0.0
    %537 = vmatpush1.msra.mxu0 %v448
    %538 = vmatprep.subr.mxu0 0.0
    %539 = vmatpush1.msra.mxu0 %v449
    %540 = vmatprep.subr.mxu0 0.0
    %541 = vmatpush1.msra.mxu0 %v452
    %542 = vmatprep.subr.mxu0 0.0
    %543 = vmatpush1.msra.mxu0 0.0
    %544 = vmatprep.subr.mxu0 0.0
    %545 = vmatpush1.msra.mxu0 0.0
    %546 = vmatprep.subr.mxu0 0.0
    %547 = vmatpush1.msra.mxu0 0.0
    %548 = vmatprep.subr.mxu0 0.0
    %549 = vmatpush1.msra.mxu0 0.0
    %550 = vmatprep.subr.mxu0 0.0
    %551 = vmatpush1.msra.mxu0 0.0
    %552 = vmatprep.subr.mxu0 0.0
    %553 = vmatpush1.msra.mxu0 0.0
    %554 = vmatprep.subr.mxu0 0.0
    %555 = vmatpush1.msra.mxu0 0.0
    %556 = vmatprep.subr.mxu0 0.0
    %557 = vmatpush1.msra.mxu0 0.0
    %558 = vmatprep.subr.mxu0 0.0
    %559 = vmatpush1.msra.mxu0 0.0
    %560 = vmatprep.subr.mxu0 0.0
    %561 = vmatpush1.msra.mxu0 0.0
    %562 = vmatprep.subr.mxu0 0.0
    %563 = vmatpush1.msra.mxu0 0.0
    %564 = vmatprep.subr.mxu0 0.0
    %565 = vmatpush1.msra.mxu0 0.0
    %566 = vmatprep.subr.mxu0 0.0
    %567 = vmatpush1.msra.mxu0 0.0
    %568 = vmatprep.subr.mxu0 0.0
    %569 = vmatpush1.msra.mxu0 0.0
    %570 = vmatprep.subr.mxu0 0.0
    %571 = vmatpush1.msra.mxu0 0.0
    %572 = vmatprep.subr.mxu0 0.0
    %573 = vmatpush1.msra.mxu0 0.0
    %574 = vmatprep.subr.mxu0 0.0
    %575 = vmatpush1.msra.mxu0 0.0
    %576 = vmatprep.subr.mxu0 0.0
    %577 = vmatpush1.msra.mxu0 0.0
    %578 = vmatprep.subr.mxu0 0.0
    %579 = vmatpush1.msra.mxu0 0.0
    %580 = vmatprep.subr.mxu0 0.0
    %581 = vmatpush1.msra.mxu0 0.0
    %582 = vmatprep.subr.mxu0 0.0
    %583 = vmatpush1.msra.mxu0 0.0
    %584 = vmatprep.subr.mxu0 0.0
    %585 = vmatpush1.msra.mxu0 0.0
    %586 = vmatprep.subr.mxu0 0.0
    %587 = vmatpush1.msra.mxu0 0.0
    %588 = vmatprep.subr.mxu0 0.0
    %589 = vmatpush1.msra.mxu0 0.0
    %590 = vmatprep.subr.mxu0 0.0
    %591 = vmatpush1.msra.mxu0 0.0
    %592 = vmatprep.subr.mxu0 0.0
    %593 = vmatpush1.msra.mxu0 0.0
    %594 = vmatprep.subr.mxu0 0.0
    %595 = vmatpush1.msra.mxu0 0.0
    %596 = vmatprep.subr.mxu0 0.0
    %597 = vmatpush1.msra.mxu0 0.0
    %598 = vmatprep.mubr.f32.mxu0 0.0
    %599 = vmatmul.mubr.f32.gmra.mrb[0].mxu0 %v177
    %v600 = vpop.f32.mrb[0].mxu0
    %v601 = vadd.f32 0.0, %v600
    %v602 = vpop.f32.mrb[0].mxu0
    %603 = vmatprep.mubr.f32.mxu0 0.0
    %604 = vmatmul.mubr.f32.gmra.mrb[0].mxu0 %v180
    %v605 = vpop.f32.mrb[0].mxu0
    %v606 = vadd.f32 0.0, %v605
    %v607 = vpop.f32.mrb[0].mxu0
    %608 = vmatprep.mubr.f32.mxu0 0.0
    %609 = vmatmul.mubr.f32.gmra.mrb[0].mxu0 %v183
    %v610 = vpop.f32.mrb[0].mxu0
    %v611 = vadd.f32 0.0, %v610
    %v612 = vpop.f32.mrb[0].mxu0
    %613 = vdwg.mxu0
    %v615 = vsel %vm92, %v70, 0
    %617 = vmatprep.subr.mxu0 0.0
    %618 = vmatpush1.msra.mxu0 %v67
    %619 = vmatprep.subr.mxu0 0.0
    %620 = vmatpush1.msra.mxu0 %v68
    %621 = vmatprep.subr.mxu0 0.0
    %622 = vmatpush1.msra.mxu0 %v69
    %623 = vmatprep.subr.mxu0 0.0
    %624 = vmatpush1.msra.mxu0 %v615
    %625 = vmatprep.subr.mxu0 0.0
    %626 = vmatpush1.msra.mxu0 0.0
    %627 = vmatprep.subr.mxu0 0.0
    %628 = vmatpush1.msra.mxu0 0.0
    %629 = vmatprep.subr.mxu0 0.0
    %630 = vmatpush1.msra.mxu0 0.0
    %631 = vmatprep.subr.mxu0 0.0
    %632 = vmatpush1.msra.mxu0 0.0
    %633 = vmatprep.subr.mxu0 0.0
    %634 = vmatpush1.msra.mxu0 0.0
    %635 = vmatprep.subr.mxu0 0.0
    %636 = vmatpush1.msra.mxu0 0.0
    %637 = vmatprep.subr.mxu0 0.0
    %638 = vmatpush1.msra.mxu0 0.0
    %639 = vmatprep.subr.mxu0 0.0
    %640 = vmatpush1.msra.mxu0 0.0
    %641 = vmatprep.subr.mxu0 0.0
    %642 = vmatpush1.msra.mxu0 0.0
    %643 = vmatprep.subr.mxu0 0.0
    %644 = vmatpush1.msra.mxu0 0.0
    %645 = vmatprep.subr.mxu0 0.0
    %646 = vmatpush1.msra.mxu0 0.0
    %647 = vmatprep.subr.mxu0 0.0
    %648 = vmatpush1.msra.mxu0 0.0
    %649 = vmatprep.subr.mxu0 0.0
    %650 = vmatpush1.msra.mxu0 0.0
    %651 = vmatprep.subr.mxu0 0.0
    %652 = vmatpush1.msra.mxu0 0.0
    %653 = vmatprep.subr.mxu0 0.0
    %654 = vmatpush1.msra.mxu0 0.0
    %655 = vmatprep.subr.mxu0 0.0
    %656 = vmatpush1.msra.mxu0 0.0
    %657 = vmatprep.subr.mxu0 0.0
    %658 = vmatpush1.msra.mxu0 0.0
    %659 = vmatprep.subr.mxu0 0.0
    %660 = vmatpush1.msra.mxu0 0.0
    %661 = vmatprep.subr.mxu0 0.0
    %662 = vmatpush1.msra.mxu0 0.0
    %663 = vmatprep.subr.mxu0 0.0
    %664 = vmatpush1.msra.mxu0 0.0
    %665 = vmatprep.subr.mxu0 0.0
    %666 = vmatpush1.msra.mxu0 0.0
    %667 = vmatprep.subr.mxu0 0.0
    %668 = vmatpush1.msra.mxu0 0.0
    %669 = vmatprep.subr.mxu0 0.0
    %670 = vmatpush1.msra.mxu0 0.0
    %671 = vmatprep.subr.mxu0 0.0
    %672 = vmatpush1.msra.mxu0 0.0
    %673 = vmatprep.subr.mxu0 0.0
    %674 = vmatpush1.msra.mxu0 0.0
    %675 = vmatprep.subr.mxu0 0.0
    %676 = vmatpush1.msra.mxu0 0.0
    %677 = vmatprep.subr.mxu0 0.0
    %678 = vmatpush1.msra.mxu0 0.0
    %679 = vmatprep.subr.mxu0 0.0
    %680 = vmatpush1.msra.mxu0 0.0
    %681 = vmatprep.mubr.f32.mxu0 0.0
    %682 = vmatmul.mubr.f32.gmra.mrb[0].mxu0 %v266
    %v683 = vpop.f32.mrb[0].mxu0
    %v684 = vadd.f32 %v521, %v683
    %v685 = vpop.f32.mrb[0].mxu0
    %686 = vmatprep.mubr.f32.mxu0 0.0
    %687 = vmatmul.mubr.f32.gmra.mrb[0].mxu0 %v269
    %v688 = vpop.f32.mrb[0].mxu0
    %v689 = vadd.f32 %v526, %v688
    %v690 = vpop.f32.mrb[0].mxu0
    %691 = vmatprep.mubr.f32.mxu0 0.0
    %692 = vmatmul.mubr.f32.gmra.mrb[0].mxu0 %v272
    %v693 = vpop.f32.mrb[0].mxu0
    %v694 = vadd.f32 %v531, %v693
    %v695 = vpop.f32.mrb[0].mxu0
    %696 = vdwg.mxu0
    %697 = vmatprep.subr.mxu0 0.0
    %698 = vmatpush1.msra.mxu0 %v67
    %699 = vmatprep.subr.mxu0 0.0
    %700 = vmatpush1.msra.mxu0 %v68
    %701 = vmatprep.subr.mxu0 0.0
    %702 = vmatpush1.msra.mxu0 %v69
    %703 = vmatprep.subr.mxu0 0.0
    %704 = vmatpush1.msra.mxu0 %v615
    %705 = vmatprep.subr.mxu0 0.0
    %706 = vmatpush1.msra.mxu0 0.0
    %707 = vmatprep.subr.mxu0 0.0
    %708 = vmatpush1.msra.mxu0 0.0
    %709 = vmatprep.subr.mxu0 0.0
    %710 = vmatpush1.msra.mxu0 0.0
    %711 = vmatprep.subr.mxu0 0.0
    %712 = vmatpush1.msra.mxu0 0.0
    %713 = vmatprep.subr.mxu0 0.0
    %714 = vmatpush1.msra.mxu0 0.0
    %715 = vmatprep.subr.mxu0 0.0
    %716 = vmatpush1.msra.mxu0 0.0
    %717 = vmatprep.subr.mxu0 0.0
    %718 = vmatpush1.msra.mxu0 0.0
    %719 = vmatprep.subr.mxu0 0.0
    %720 = vmatpush1.msra.mxu0 0.0
    %721 = vmatprep.subr.mxu0 0.0
    %722 = vmatpush1.msra.mxu0 0.0
    %723 = vmatprep.subr.mxu0 0.0
    %724 = vmatpush1.msra.mxu0 0.0
    %725 = vmatprep.subr.mxu0 0.0
    %726 = vmatpush1.msra.mxu0 0.0
    %727 = vmatprep.subr.mxu0 0.0
    %728 = vmatpush1.msra.mxu0 0.0
    %729 = vmatprep.subr.mxu0 0.0
    %730 = vmatpush1.msra.mxu0 0.0
    %731 = vmatprep.subr.mxu0 0.0
    %732 = vmatpush1.msra.mxu0 0.0
    %733 = vmatprep.subr.mxu0 0.0
    %734 = vmatpush1.msra.mxu0 0.0
    %735 = vmatprep.subr.mxu0 0.0
    %736 = vmatpush1.msra.mxu0 0.0
    %737 = vmatprep.subr.mxu0 0.0
    %738 = vmatpush1.msra.mxu0 0.0
    %739 = vmatprep.subr.mxu0 0.0
    %740 = vmatpush1.msra.mxu0 0.0
    %741 = vmatprep.subr.mxu0 0.0
    %742 = vmatpush1.msra.mxu0 0.0
    %743 = vmatprep.subr.mxu0 0.0
    %744 = vmatpush1.msra.mxu0 0.0
    %745 = vmatprep.subr.mxu0 0.0
    %746 = vmatpush1.msra.mxu0 0.0
    %747 = vmatprep.subr.mxu0 0.0
    %748 = vmatpush1.msra.mxu0 0.0
    %749 = vmatprep.subr.mxu0 0.0
    %750 = vmatpush1.msra.mxu0 0.0
    %751 = vmatprep.subr.mxu0 0.0
    %752 = vmatpush1.msra.mxu0 0.0
    %753 = vmatprep.subr.mxu0 0.0
    %754 = vmatpush1.msra.mxu0 0.0
    %755 = vmatprep.subr.mxu0 0.0
    %756 = vmatpush1.msra.mxu0 0.0
    %757 = vmatprep.subr.mxu0 0.0
    %758 = vmatpush1.msra.mxu0 0.0
    %759 = vmatprep.subr.mxu0 0.0
    %760 = vmatpush1.msra.mxu0 0.0
    %761 = vmatprep.mubr.f32.mxu0 0.0
    %762 = vmatmul.mubr.f32.gmra.mrb[0].mxu0 %v358
    %v763 = vpop.f32.mrb[0].mxu0
    %v764 = vadd.f32 %v601, %v763
    %v765 = vpop.f32.mrb[0].mxu0
    %766 = vmatprep.mubr.f32.mxu0 0.0
    %767 = vmatmul.mubr.f32.gmra.mrb[0].mxu0 %v361
    %v768 = vpop.f32.mrb[0].mxu0
    %v769 = vadd.f32 %v606, %v768
    %v770 = vpop.f32.mrb[0].mxu0
    %771 = vmatprep.mubr.f32.mxu0 0.0
    %772 = vmatmul.mubr.f32.gmra.mrb[0].mxu0 %v364
    %v773 = vpop.f32.mrb[0].mxu0
    %v774 = vadd.f32 %v611, %v773
    %v775 = vpop.f32.mrb[0].mxu0
    %776 = vdwg.mxu0
    %v777 = vld [vmem:[%s0 + $0x2] sm:$0xff]
    %v778 = vld [vmem:[%s0 + $0xa] sm:$0xff]
    %v779 = vld [vmem:[%s0 + $0x12] sm:$0xff]
    %v780 = vld [vmem:[%s0 + $0x22] sm:$0xff]
    %v781 = vld [vmem:[%s0 + $0x2a] sm:$0xff]
    %v782 = vld [vmem:[%s0 + $0x32] sm:$0xff]
    %s783 = scalar_lea.vmem %s1, 64
    %v784 = vld [vmem:[%s783] sm:$0xff]
    %v785 = vld [vmem:[%s783 + $0x8] sm:$0xff]
    %v786 = vld [vmem:[%s783 + $0x10] sm:$0xff]
    %v787 = vld [vmem:[%s783 + $0x18] sm:$0xf]
    %v789 = vsel %vm82, %v777, 0
    %v792 = vsel %vm82, %v778, 0
    %v795 = vsel %vm82, %v779, 0
    %v798 = vsel %vm92, %v787, 0
    %800 = vmatprep.subr.mxu0 0.0
    %801 = vmatpush1.msra.mxu0 %v784
    %802 = vmatprep.subr.mxu0 0.0
    %803 = vmatpush1.msra.mxu0 %v785
    %804 = vmatprep.subr.mxu0 0.0
    %805 = vmatpush1.msra.mxu0 %v786
    %806 = vmatprep.subr.mxu0 0.0
    %807 = vmatpush1.msra.mxu0 %v798
    %808 = vmatprep.subr.mxu0 0.0
    %809 = vmatpush1.msra.mxu0 0.0
    %810 = vmatprep.subr.mxu0 0.0
    %811 = vmatpush1.msra.mxu0 0.0
    %812 = vmatprep.subr.mxu0 0.0
    %813 = vmatpush1.msra.mxu0 0.0
    %814 = vmatprep.subr.mxu0 0.0
    %815 = vmatpush1.msra.mxu0 0.0
    %816 = vmatprep.subr.mxu0 0.0
    %817 = vmatpush1.msra.mxu0 0.0
    %818 = vmatprep.subr.mxu0 0.0
    %819 = vmatpush1.msra.mxu0 0.0
    %820 = vmatprep.subr.mxu0 0.0
    %821 = vmatpush1.msra.mxu0 0.0
    %822 = vmatprep.subr.mxu0 0.0
    %823 = vmatpush1.msra.mxu0 0.0
    %824 = vmatprep.subr.mxu0 0.0
    %825 = vmatpush1.msra.mxu0 0.0
    %826 = vmatprep.subr.mxu0 0.0
    %827 = vmatpush1.msra.mxu0 0.0
    %828 = vmatprep.subr.mxu0 0.0
    %829 = vmatpush1.msra.mxu0 0.0
    %830 = vmatprep.subr.mxu0 0.0
    %831 = vmatpush1.msra.mxu0 0.0
    %832 = vmatprep.subr.mxu0 0.0
    %833 = vmatpush1.msra.mxu0 0.0
    %834 = vmatprep.subr.mxu0 0.0
    %835 = vmatpush1.msra.mxu0 0.0
    %836 = vmatprep.subr.mxu0 0.0
    %837 = vmatpush1.msra.mxu0 0.0
    %838 = vmatprep.subr.mxu0 0.0
    %839 = vmatpush1.msra.mxu0 0.0
    %840 = vmatprep.subr.mxu0 0.0
    %841 = vmatpush1.msra.mxu0 0.0
    %842 = vmatprep.subr.mxu0 0.0
    %843 = vmatpush1.msra.mxu0 0.0
    %844 = vmatprep.subr.mxu0 0.0
    %845 = vmatpush1.msra.mxu0 0.0
    %846 = vmatprep.subr.mxu0 0.0
    %847 = vmatpush1.msra.mxu0 0.0
    %848 = vmatprep.subr.mxu0 0.0
    %849 = vmatpush1.msra.mxu0 0.0
    %850 = vmatprep.subr.mxu0 0.0
    %851 = vmatpush1.msra.mxu0 0.0
    %852 = vmatprep.subr.mxu0 0.0
    %853 = vmatpush1.msra.mxu0 0.0
    %854 = vmatprep.subr.mxu0 0.0
    %855 = vmatpush1.msra.mxu0 0.0
    %856 = vmatprep.subr.mxu0 0.0
    %857 = vmatpush1.msra.mxu0 0.0
    %858 = vmatprep.subr.mxu0 0.0
    %859 = vmatpush1.msra.mxu0 0.0
    %860 = vmatprep.subr.mxu0 0.0
    %861 = vmatpush1.msra.mxu0 0.0
    %862 = vmatprep.subr.mxu0 0.0
    %863 = vmatpush1.msra.mxu0 0.0
    %864 = vmatprep.mubr.f32.mxu0 0.0
    %865 = vmatmul.mubr.f32.gmra.mrb[0].mxu0 %v789
    %v866 = vpop.f32.mrb[0].mxu0
    %v867 = vadd.f32 0.0, %v866
    %v868 = vpop.f32.mrb[0].mxu0
    %869 = vmatprep.mubr.f32.mxu0 0.0
    %870 = vmatmul.mubr.f32.gmra.mrb[0].mxu0 %v792
    %v871 = vpop.f32.mrb[0].mxu0
    %v872 = vadd.f32 0.0, %v871
    %v873 = vpop.f32.mrb[0].mxu0
    %874 = vmatprep.mubr.f32.mxu0 0.0
    %875 = vmatmul.mubr.f32.gmra.mrb[0].mxu0 %v795
    %v876 = vpop.f32.mrb[0].mxu0
    %v877 = vadd.f32 0.0, %v876
    %v878 = vpop.f32.mrb[0].mxu0
    %879 = vdwg.mxu0
    %v881 = vsel %vm82, %v780, 0
    %v884 = vsel %vm82, %v781, 0
    %v887 = vsel %vm82, %v782, 0
    %889 = vmatprep.subr.mxu0 0.0
    %890 = vmatpush1.msra.mxu0 %v784
    %891 = vmatprep.subr.mxu0 0.0
    %892 = vmatpush1.msra.mxu0 %v785
    %893 = vmatprep.subr.mxu0 0.0
    %894 = vmatpush1.msra.mxu0 %v786
    %895 = vmatprep.subr.mxu0 0.0
    %896 = vmatpush1.msra.mxu0 %v798
    %897 = vmatprep.subr.mxu0 0.0
    %898 = vmatpush1.msra.mxu0 0.0
    %899 = vmatprep.subr.mxu0 0.0
    %900 = vmatpush1.msra.mxu0 0.0
    %901 = vmatprep.subr.mxu0 0.0
    %902 = vmatpush1.msra.mxu0 0.0
    %903 = vmatprep.subr.mxu0 0.0
    %904 = vmatpush1.msra.mxu0 0.0
    %905 = vmatprep.subr.mxu0 0.0
    %906 = vmatpush1.msra.mxu0 0.0
    %907 = vmatprep.subr.mxu0 0.0
    %908 = vmatpush1.msra.mxu0 0.0
    %909 = vmatprep.subr.mxu0 0.0
    %910 = vmatpush1.msra.mxu0 0.0
    %911 = vmatprep.subr.mxu0 0.0
    %912 = vmatpush1.msra.mxu0 0.0
    %913 = vmatprep.subr.mxu0 0.0
    %914 = vmatpush1.msra.mxu0 0.0
    %915 = vmatprep.subr.mxu0 0.0
    %916 = vmatpush1.msra.mxu0 0.0
    %917 = vmatprep.subr.mxu0 0.0
    %918 = vmatpush1.msra.mxu0 0.0
    %919 = vmatprep.subr.mxu0 0.0
    %920 = vmatpush1.msra.mxu0 0.0
    %921 = vmatprep.subr.mxu0 0.0
    %922 = vmatpush1.msra.mxu0 0.0
    %923 = vmatprep.subr.mxu0 0.0
    %924 = vmatpush1.msra.mxu0 0.0
    %925 = vmatprep.subr.mxu0 0.0
    %926 = vmatpush1.msra.mxu0 0.0
    %927 = vmatprep.subr.mxu0 0.0
    %928 = vmatpush1.msra.mxu0 0.0
    %929 = vmatprep.subr.mxu0 0.0
    %930 = vmatpush1.msra.mxu0 0.0
    %931 = vmatprep.subr.mxu0 0.0
    %932 = vmatpush1.msra.mxu0 0.0
    %933 = vmatprep.subr.mxu0 0.0
    %934 = vmatpush1.msra.mxu0 0.0
    %935 = vmatprep.subr.mxu0 0.0
    %936 = vmatpush1.msra.mxu0 0.0
    %937 = vmatprep.subr.mxu0 0.0
    %938 = vmatpush1.msra.mxu0 0.0
    %939 = vmatprep.subr.mxu0 0.0
    %940 = vmatpush1.msra.mxu0 0.0
    %941 = vmatprep.subr.mxu0 0.0
    %942 = vmatpush1.msra.mxu0 0.0
    %943 = vmatprep.subr.mxu0 0.0
    %944 = vmatpush1.msra.mxu0 0.0
    %945 = vmatprep.subr.mxu0 0.0
    %946 = vmatpush1.msra.mxu0 0.0
    %947 = vmatprep.subr.mxu0 0.0
    %948 = vmatpush1.msra.mxu0 0.0
    %949 = vmatprep.subr.mxu0 0.0
    %950 = vmatpush1.msra.mxu0 0.0
    %951 = vmatprep.subr.mxu0 0.0
    %952 = vmatpush1.msra.mxu0 0.0
    %953 = vmatprep.mubr.f32.mxu0 0.0
    %954 = vmatmul.mubr.f32.gmra.mrb[0].mxu0 %v881
    %v955 = vpop.f32.mrb[0].mxu0
    %v956 = vadd.f32 0.0, %v955
    %v957 = vpop.f32.mrb[0].mxu0
    %958 = vmatprep.mubr.f32.mxu0 0.0
    %959 = vmatmul.mubr.f32.gmra.mrb[0].mxu0 %v884
    %v960 = vpop.f32.mrb[0].mxu0
    %v961 = vadd.f32 0.0, %v960
    %v962 = vpop.f32.mrb[0].mxu0
    %963 = vmatprep.mubr.f32.mxu0 0.0
    %964 = vmatmul.mubr.f32.gmra.mrb[0].mxu0 %v887
    %v965 = vpop.f32.mrb[0].mxu0
    %v966 = vadd.f32 0.0, %v965
    %v967 = vpop.f32.mrb[0].mxu0
    %968 = vdwg.mxu0
    %v969 = vadd.f32 %v344, %v867
    %v970 = vadd.f32 %v349, %v872
    %v971 = vadd.f32 %v354, %v877
    %v972 = vadd.f32 %v433, %v956
    %v973 = vadd.f32 %v438, %v961
    %v974 = vadd.f32 %v443, %v966
    %s975 = scalar_lea.vmem %s2, 64
    %v976 = vld [vmem:[%s975] sm:$0xff]
    %v977 = vld [vmem:[%s975 + $0x8] sm:$0xff]
    %v978 = vld [vmem:[%s975 + $0x10] sm:$0xff]
    %v979 = vld [vmem:[%s975 + $0x18] sm:$0xf]
    %v981 = vsel %vm92, %v979, 0
    %983 = vmatprep.subr.mxu0 0.0
    %984 = vmatpush1.msra.mxu0 %v976
    %985 = vmatprep.subr.mxu0 0.0
    %986 = vmatpush1.msra.mxu0 %v977
    %987 = vmatprep.subr.mxu0 0.0
    %988 = vmatpush1.msra.mxu0 %v978
    %989 = vmatprep.subr.mxu0 0.0
    %990 = vmatpush1.msra.mxu0 %v981
    %991 = vmatprep.subr.mxu0 0.0
    %992 = vmatpush1.msra.mxu0 0.0
    %993 = vmatprep.subr.mxu0 0.0
    %994 = vmatpush1.msra.mxu0 0.0
    %995 = vmatprep.subr.mxu0 0.0
    %996 = vmatpush1.msra.mxu0 0.0
    %997 = vmatprep.subr.mxu0 0.0
    %998 = vmatpush1.msra.mxu0 0.0
    %999 = vmatprep.subr.mxu0 0.0
    %1000 = vmatpush1.msra.mxu0 0.0
    %1001 = vmatprep.subr.mxu0 0.0
    %1002 = vmatpush1.msra.mxu0 0.0
    %1003 = vmatprep.subr.mxu0 0.0
    %1004 = vmatpush1.msra.mxu0 0.0
    %1005 = vmatprep.subr.mxu0 0.0
    %1006 = vmatpush1.msra.mxu0 0.0
    %1007 = vmatprep.subr.mxu0 0.0
    %1008 = vmatpush1.msra.mxu0 0.0
    %1009 = vmatprep.subr.mxu0 0.0
    %1010 = vmatpush1.msra.mxu0 0.0
    %1011 = vmatprep.subr.mxu0 0.0
    %1012 = vmatpush1.msra.mxu0 0.0
    %1013 = vmatprep.subr.mxu0 0.0
    %1014 = vmatpush1.msra.mxu0 0.0
    %1015 = vmatprep.subr.mxu0 0.0
    %1016 = vmatpush1.msra.mxu0 0.0
    %1017 = vmatprep.subr.mxu0 0.0
    %1018 = vmatpush1.msra.mxu0 0.0
    %1019 = vmatprep.subr.mxu0 0.0
    %1020 = vmatpush1.msra.mxu0 0.0
    %1021 = vmatprep.subr.mxu0 0.0
    %1022 = vmatpush1.msra.mxu0 0.0
    %1023 = vmatprep.subr.mxu0 0.0
    %1024 = vmatpush1.msra.mxu0 0.0
    %1025 = vmatprep.subr.mxu0 0.0
    %1026 = vmatpush1.msra.mxu0 0.0
    %1027 = vmatprep.subr.mxu0 0.0
    %1028 = vmatpush1.msra.mxu0 0.0
    %1029 = vmatprep.subr.mxu0 0.0
    %1030 = vmatpush1.msra.mxu0 0.0
    %1031 = vmatprep.subr.mxu0 0.0
    %1032 = vmatpush1.msra.mxu0 0.0
    %1033 = vmatprep.subr.mxu0 0.0
    %1034 = vmatpush1.msra.mxu0 0.0
    %1035 = vmatprep.subr.mxu0 0.0
    %1036 = vmatpush1.msra.mxu0 0.0
    %1037 = vmatprep.subr.mxu0 0.0
    %1038 = vmatpush1.msra.mxu0 0.0
    %1039 = vmatprep.subr.mxu0 0.0
    %1040 = vmatpush1.msra.mxu0 0.0
    %1041 = vmatprep.subr.mxu0 0.0
    %1042 = vmatpush1.msra.mxu0 0.0
    %1043 = vmatprep.subr.mxu0 0.0
    %1044 = vmatpush1.msra.mxu0 0.0
    %1045 = vmatprep.subr.mxu0 0.0
    %1046 = vmatpush1.msra.mxu0 0.0
    %1047 = vmatprep.mubr.f32.mxu0 0.0
    %1048 = vmatmul.mubr.f32.gmra.mrb[0].mxu0 %v789
    %v1049 = vpop.f32.mrb[0].mxu0
    %v1050 = vadd.f32 0.0, %v1049
    %v1051 = vpop.f32.mrb[0].mxu0
    %1052 = vmatprep.mubr.f32.mxu0 0.0
    %1053 = vmatmul.mubr.f32.gmra.mrb[0].mxu0 %v792
    %v1054 = vpop.f32.mrb[0].mxu0
    %v1055 = vadd.f32 0.0, %v1054
    %v1056 = vpop.f32.mrb[0].mxu0
    %1057 = vmatprep.mubr.f32.mxu0 0.0
    %1058 = vmatmul.mubr.f32.gmra.mrb[0].mxu0 %v795
    %v1059 = vpop.f32.mrb[0].mxu0
    %v1060 = vadd.f32 0.0, %v1059
    %v1061 = vpop.f32.mrb[0].mxu0
    %1062 = vdwg.mxu0
    %1063 = vmatprep.subr.mxu0 0.0
    %1064 = vmatpush1.msra.mxu0 %v976
    %1065 = vmatprep.subr.mxu0 0.0
    %1066 = vmatpush1.msra.mxu0 %v977
    %1067 = vmatprep.subr.mxu0 0.0
    %1068 = vmatpush1.msra.mxu0 %v978
    %1069 = vmatprep.subr.mxu0 0.0
    %1070 = vmatpush1.msra.mxu0 %v981
    %1071 = vmatprep.subr.mxu0 0.0
    %1072 = vmatpush1.msra.mxu0 0.0
    %1073 = vmatprep.subr.mxu0 0.0
    %1074 = vmatpush1.msra.mxu0 0.0
    %1075 = vmatprep.subr.mxu0 0.0
    %1076 = vmatpush1.msra.mxu0 0.0
    %1077 = vmatprep.subr.mxu0 0.0
    %1078 = vmatpush1.msra.mxu0 0.0
    %1079 = vmatprep.subr.mxu0 0.0
    %1080 = vmatpush1.msra.mxu0 0.0
    %1081 = vmatprep.subr.mxu0 0.0
    %1082 = vmatpush1.msra.mxu0 0.0
    %1083 = vmatprep.subr.mxu0 0.0
    %1084 = vmatpush1.msra.mxu0 0.0
    %1085 = vmatprep.subr.mxu0 0.0
    %1086 = vmatpush1.msra.mxu0 0.0
    %1087 = vmatprep.subr.mxu0 0.0
    %1088 = vmatpush1.msra.mxu0 0.0
    %1089 = vmatprep.subr.mxu0 0.0
    %1090 = vmatpush1.msra.mxu0 0.0
    %1091 = vmatprep.subr.mxu0 0.0
    %1092 = vmatpush1.msra.mxu0 0.0
    %1093 = vmatprep.subr.mxu0 0.0
    %1094 = vmatpush1.msra.mxu0 0.0
    %1095 = vmatprep.subr.mxu0 0.0
    %1096 = vmatpush1.msra.mxu0 0.0
    %1097 = vmatprep.subr.mxu0 0.0
    %1098 = vmatpush1.msra.mxu0 0.0
    %1099 = vmatprep.subr.mxu0 0.0
    %1100 = vmatpush1.msra.mxu0 0.0
    %1101 = vmatprep.subr.mxu0 0.0
    %1102 = vmatpush1.msra.mxu0 0.0
    %1103 = vmatprep.subr.mxu0 0.0
    %1104 = vmatpush1.msra.mxu0 0.0
    %1105 = vmatprep.subr.mxu0 0.0
    %1106 = vmatpush1.msra.mxu0 0.0
    %1107 = vmatprep.subr.mxu0 0.0
    %1108 = vmatpush1.msra.mxu0 0.0
    %1109 = vmatprep.subr.mxu0 0.0
    %1110 = vmatpush1.msra.mxu0 0.0
    %1111 = vmatprep.subr.mxu0 0.0
    %1112 = vmatpush1.msra.mxu0 0.0
    %1113 = vmatprep.subr.mxu0 0.0
    %1114 = vmatpush1.msra.mxu0 0.0
    %1115 = vmatprep.subr.mxu0 0.0
    %1116 = vmatpush1.msra.mxu0 0.0
    %1117 = vmatprep.subr.mxu0 0.0
    %1118 = vmatpush1.msra.mxu0 0.0
    %1119 = vmatprep.subr.mxu0 0.0
    %1120 = vmatpush1.msra.mxu0 0.0
    %1121 = vmatprep.subr.mxu0 0.0
    %1122 = vmatpush1.msra.mxu0 0.0
    %1123 = vmatprep.subr.mxu0 0.0
    %1124 = vmatpush1.msra.mxu0 0.0
    %1125 = vmatprep.subr.mxu0 0.0
    %1126 = vmatpush1.msra.mxu0 0.0
    %1127 = vmatprep.mubr.f32.mxu0 0.0
    %1128 = vmatmul.mubr.f32.gmra.mrb[0].mxu0 %v881
    %v1129 = vpop.f32.mrb[0].mxu0
    %v1130 = vadd.f32 0.0, %v1129
    %v1131 = vpop.f32.mrb[0].mxu0
    %1132 = vmatprep.mubr.f32.mxu0 0.0
    %1133 = vmatmul.mubr.f32.gmra.mrb[0].mxu0 %v884
    %v1134 = vpop.f32.mrb[0].mxu0
    %v1135 = vadd.f32 0.0, %v1134
    %v1136 = vpop.f32.mrb[0].mxu0
    %1137 = vmatprep.mubr.f32.mxu0 0.0
    %1138 = vmatmul.mubr.f32.gmra.mrb[0].mxu0 %v887
    %v1139 = vpop.f32.mrb[0].mxu0
    %v1140 = vadd.f32 0.0, %v1139
    %v1141 = vpop.f32.mrb[0].mxu0
    %1142 = vdwg.mxu0
    %v1143 = vadd.f32 %v684, %v1050
    %v1144 = vadd.f32 %v689, %v1055
    %v1145 = vadd.f32 %v694, %v1060
    %v1146 = vadd.f32 %v764, %v1130
    %v1147 = vadd.f32 %v769, %v1135
    %v1148 = vadd.f32 %v774, %v1140
    %v1149 = vld [vmem:[%s0 + $0x3] sm:$0xff]
    %v1150 = vld [vmem:[%s0 + $0xb] sm:$0xff]
    %v1151 = vld [vmem:[%s0 + $0x13] sm:$0xff]
    %v1152 = vld [vmem:[%s0 + $0x23] sm:$0xff]
    %v1153 = vld [vmem:[%s0 + $0x2b] sm:$0xff]
    %v1154 = vld [vmem:[%s0 + $0x33] sm:$0xff]
    %s1155 = scalar_lea.vmem %s1, 96
    %v1156 = vld [vmem:[%s1155] sm:$0xff]
    %v1157 = vld [vmem:[%s1155 + $0x8] sm:$0xff]
    %v1158 = vld [vmem:[%s1155 + $0x10] sm:$0xff]
    %v1159 = vld [vmem:[%s1155 + $0x18] sm:$0xf]
    %v1161 = vsel %vm82, %v1149, 0
    %v1164 = vsel %vm82, %v1150, 0
    %v1167 = vsel %vm82, %v1151, 0
    %v1170 = vsel %vm92, %v1159, 0
    %1172 = vmatprep.subr.mxu0 0.0
    %1173 = vmatpush1.msra.mxu0 %v1156
    %1174 = vmatprep.subr.mxu0 0.0
    %1175 = vmatpush1.msra.mxu0 %v1157
    %1176 = vmatprep.subr.mxu0 0.0
    %1177 = vmatpush1.msra.mxu0 %v1158
    %1178 = vmatprep.subr.mxu0 0.0
    %1179 = vmatpush1.msra.mxu0 %v1170
    %1180 = vmatprep.subr.mxu0 0.0
    %1181 = vmatpush1.msra.mxu0 0.0
    %1182 = vmatprep.subr.mxu0 0.0
    %1183 = vmatpush1.msra.mxu0 0.0
    %1184 = vmatprep.subr.mxu0 0.0
    %1185 = vmatpush1.msra.mxu0 0.0
    %1186 = vmatprep.subr.mxu0 0.0
    %1187 = vmatpush1.msra.mxu0 0.0
    %1188 = vmatprep.subr.mxu0 0.0
    %1189 = vmatpush1.msra.mxu0 0.0
    %1190 = vmatprep.subr.mxu0 0.0
    %1191 = vmatpush1.msra.mxu0 0.0
    %1192 = vmatprep.subr.mxu0 0.0
    %1193 = vmatpush1.msra.mxu0 0.0
    %1194 = vmatprep.subr.mxu0 0.0
    %1195 = vmatpush1.msra.mxu0 0.0
    %1196 = vmatprep.subr.mxu0 0.0
    %1197 = vmatpush1.msra.mxu0 0.0
    %1198 = vmatprep.subr.mxu0 0.0
    %1199 = vmatpush1.msra.mxu0 0.0
    %1200 = vmatprep.subr.mxu0 0.0
    %1201 = vmatpush1.msra.mxu0 0.0
    %1202 = vmatprep.subr.mxu0 0.0
    %1203 = vmatpush1.msra.mxu0 0.0
    %1204 = vmatprep.subr.mxu0 0.0
    %1205 = vmatpush1.msra.mxu0 0.0
    %1206 = vmatprep.subr.mxu0 0.0
    %1207 = vmatpush1.msra.mxu0 0.0
    %1208 = vmatprep.subr.mxu0 0.0
    %1209 = vmatpush1.msra.mxu0 0.0
    %1210 = vmatprep.subr.mxu0 0.0
    %1211 = vmatpush1.msra.mxu0 0.0
    %1212 = vmatprep.subr.mxu0 0.0
    %1213 = vmatpush1.msra.mxu0 0.0
    %1214 = vmatprep.subr.mxu0 0.0
    %1215 = vmatpush1.msra.mxu0 0.0
    %1216 = vmatprep.subr.mxu0 0.0
    %1217 = vmatpush1.msra.mxu0 0.0
    %1218 = vmatprep.subr.mxu0 0.0
    %1219 = vmatpush1.msra.mxu0 0.0
    %1220 = vmatprep.subr.mxu0 0.0
    %1221 = vmatpush1.msra.mxu0 0.0
    %1222 = vmatprep.subr.mxu0 0.0
    %1223 = vmatpush1.msra.mxu0 0.0
    %1224 = vmatprep.subr.mxu0 0.0
    %1225 = vmatpush1.msra.mxu0 0.0
    %1226 = vmatprep.subr.mxu0 0.0
    %1227 = vmatpush1.msra.mxu0 0.0
    %1228 = vmatprep.subr.mxu0 0.0
    %1229 = vmatpush1.msra.mxu0 0.0
    %1230 = vmatprep.subr.mxu0 0.0
    %1231 = vmatpush1.msra.mxu0 0.0
    %1232 = vmatprep.subr.mxu0 0.0
    %1233 = vmatpush1.msra.mxu0 0.0
    %1234 = vmatprep.subr.mxu0 0.0
    %1235 = vmatpush1.msra.mxu0 0.0
    %1236 = vmatprep.mubr.f32.mxu0 0.0
    %1237 = vmatmul.mubr.f32.gmra.mrb[0].mxu0 %v1161
    %v1238 = vpop.f32.mrb[0].mxu0
    %v1239 = vadd.f32 0.0, %v1238
    %v1240 = vpop.f32.mrb[0].mxu0
    %1241 = vmatprep.mubr.f32.mxu0 0.0
    %1242 = vmatmul.mubr.f32.gmra.mrb[0].mxu0 %v1164
    %v1243 = vpop.f32.mrb[0].mxu0
    %v1244 = vadd.f32 0.0, %v1243
    %v1245 = vpop.f32.mrb[0].mxu0
    %1246 = vmatprep.mubr.f32.mxu0 0.0
    %1247 = vmatmul.mubr.f32.gmra.mrb[0].mxu0 %v1167
    %v1248 = vpop.f32.mrb[0].mxu0
    %v1249 = vadd.f32 0.0, %v1248
    %v1250 = vpop.f32.mrb[0].mxu0
    %1251 = vdwg.mxu0
    %v1253 = vsel %vm82, %v1152, 0
    %v1256 = vsel %vm82, %v1153, 0
    %v1259 = vsel %vm82, %v1154, 0
    %1261 = vmatprep.subr.mxu0 0.0
    %1262 = vmatpush1.msra.mxu0 %v1156
    %1263 = vmatprep.subr.mxu0 0.0
    %1264 = vmatpush1.msra.mxu0 %v1157
    %1265 = vmatprep.subr.mxu0 0.0
    %1266 = vmatpush1.msra.mxu0 %v1158
    %1267 = vmatprep.subr.mxu0 0.0
    %1268 = vmatpush1.msra.mxu0 %v1170
    %1269 = vmatprep.subr.mxu0 0.0
    %1270 = vmatpush1.msra.mxu0 0.0
    %1271 = vmatprep.subr.mxu0 0.0
    %1272 = vmatpush1.msra.mxu0 0.0
    %1273 = vmatprep.subr.mxu0 0.0
    %1274 = vmatpush1.msra.mxu0 0.0
    %1275 = vmatprep.subr.mxu0 0.0
    %1276 = vmatpush1.msra.mxu0 0.0
    %1277 = vmatprep.subr.mxu0 0.0
    %1278 = vmatpush1.msra.mxu0 0.0
    %1279 = vmatprep.subr.mxu0 0.0
    %1280 = vmatpush1.msra.mxu0 0.0
    %1281 = vmatprep.subr.mxu0 0.0
    %1282 = vmatpush1.msra.mxu0 0.0
    %1283 = vmatprep.subr.mxu0 0.0
    %1284 = vmatpush1.msra.mxu0 0.0
    %1285 = vmatprep.subr.mxu0 0.0
    %1286 = vmatpush1.msra.mxu0 0.0
    %1287 = vmatprep.subr.mxu0 0.0
    %1288 = vmatpush1.msra.mxu0 0.0
    %1289 = vmatprep.subr.mxu0 0.0
    %1290 = vmatpush1.msra.mxu0 0.0
    %1291 = vmatprep.subr.mxu0 0.0
    %1292 = vmatpush1.msra.mxu0 0.0
    %1293 = vmatprep.subr.mxu0 0.0
    %1294 = vmatpush1.msra.mxu0 0.0
    %1295 = vmatprep.subr.mxu0 0.0
    %1296 = vmatpush1.msra.mxu0 0.0
    %1297 = vmatprep.subr.mxu0 0.0
    %1298 = vmatpush1.msra.mxu0 0.0
    %1299 = vmatprep.subr.mxu0 0.0
    %1300 = vmatpush1.msra.mxu0 0.0
    %1301 = vmatprep.subr.mxu0 0.0
    %1302 = vmatpush1.msra.mxu0 0.0
    %1303 = vmatprep.subr.mxu0 0.0
    %1304 = vmatpush1.msra.mxu0 0.0
    %1305 = vmatprep.subr.mxu0 0.0
    %1306 = vmatpush1.msra.mxu0 0.0
    %1307 = vmatprep.subr.mxu0 0.0
    %1308 = vmatpush1.msra.mxu0 0.0
    %1309 = vmatprep.subr.mxu0 0.0
    %1310 = vmatpush1.msra.mxu0 0.0
    %1311 = vmatprep.subr.mxu0 0.0
    %1312 = vmatpush1.msra.mxu0 0.0
    %1313 = vmatprep.subr.mxu0 0.0
    %1314 = vmatpush1.msra.mxu0 0.0
    %1315 = vmatprep.subr.mxu0 0.0
    %1316 = vmatpush1.msra.mxu0 0.0
    %1317 = vmatprep.subr.mxu0 0.0
    %1318 = vmatpush1.msra.mxu0 0.0
    %1319 = vmatprep.subr.mxu0 0.0
    %1320 = vmatpush1.msra.mxu0 0.0
    %1321 = vmatprep.subr.mxu0 0.0
    %1322 = vmatpush1.msra.mxu0 0.0
    %1323 = vmatprep.subr.mxu0 0.0
    %1324 = vmatpush1.msra.mxu0 0.0
    %1325 = vmatprep.mubr.f32.mxu0 0.0
    %1326 = vmatmul.mubr.f32.gmra.mrb[0].mxu0 %v1253
    %v1327 = vpop.f32.mrb[0].mxu0
    %v1328 = vadd.f32 0.0, %v1327
    %v1329 = vpop.f32.mrb[0].mxu0
    %1330 = vmatprep.mubr.f32.mxu0 0.0
    %1331 = vmatmul.mubr.f32.gmra.mrb[0].mxu0 %v1256
    %v1332 = vpop.f32.mrb[0].mxu0
    %v1333 = vadd.f32 0.0, %v1332
    %v1334 = vpop.f32.mrb[0].mxu0
    %1335 = vmatprep.mubr.f32.mxu0 0.0
    %1336 = vmatmul.mubr.f32.gmra.mrb[0].mxu0 %v1259
    %v1337 = vpop.f32.mrb[0].mxu0
    %v1338 = vadd.f32 0.0, %v1337
    %v1339 = vpop.f32.mrb[0].mxu0
    %1340 = vdwg.mxu0
    %v1341 = vadd.f32 %v969, %v1239
    %v1342 = vadd.f32 %v970, %v1244
    %v1343 = vadd.f32 %v971, %v1249
    %v1344 = vadd.f32 %v972, %v1328
    %v1345 = vadd.f32 %v973, %v1333
    %v1346 = vadd.f32 %v974, %v1338
    %s1347 = scalar_lea.vmem %s2, 96
    %v1348 = vld [vmem:[%s1347] sm:$0xff]
    %v1349 = vld [vmem:[%s1347 + $0x8] sm:$0xff]
    %v1350 = vld [vmem:[%s1347 + $0x10] sm:$0xff]
    %v1351 = vld [vmem:[%s1347 + $0x18] sm:$0xf]
    %v1353 = vsel %vm92, %v1351, 0
    %1355 = vmatprep.subr.mxu0 0.0
    %1356 = vmatpush1.msra.mxu0 %v1348
    %1357 = vmatprep.subr.mxu0 0.0
    %1358 = vmatpush1.msra.mxu0 %v1349
    %1359 = vmatprep.subr.mxu0 0.0
    %1360 = vmatpush1.msra.mxu0 %v1350
    %1361 = vmatprep.subr.mxu0 0.0
    %1362 = vmatpush1.msra.mxu0 %v1353
    %1363 = vmatprep.subr.mxu0 0.0
    %1364 = vmatpush1.msra.mxu0 0.0
    %1365 = vmatprep.subr.mxu0 0.0
    %1366 = vmatpush1.msra.mxu0 0.0
    %1367 = vmatprep.subr.mxu0 0.0
    %1368 = vmatpush1.msra.mxu0 0.0
    %1369 = vmatprep.subr.mxu0 0.0
    %1370 = vmatpush1.msra.mxu0 0.0
    %1371 = vmatprep.subr.mxu0 0.0
    %1372 = vmatpush1.msra.mxu0 0.0
    %1373 = vmatprep.subr.mxu0 0.0
    %1374 = vmatpush1.msra.mxu0 0.0
    %1375 = vmatprep.subr.mxu0 0.0
    %1376 = vmatpush1.msra.mxu0 0.0
    %1377 = vmatprep.subr.mxu0 0.0
    %1378 = vmatpush1.msra.mxu0 0.0
    %1379 = vmatprep.subr.mxu0 0.0
    %1380 = vmatpush1.msra.mxu0 0.0
    %1381 = vmatprep.subr.mxu0 0.0
    %1382 = vmatpush1.msra.mxu0 0.0
    %1383 = vmatprep.subr.mxu0 0.0
    %1384 = vmatpush1.msra.mxu0 0.0
    %1385 = vmatprep.subr.mxu0 0.0
    %1386 = vmatpush1.msra.mxu0 0.0
    %1387 = vmatprep.subr.mxu0 0.0
    %1388 = vmatpush1.msra.mxu0 0.0
    %1389 = vmatprep.subr.mxu0 0.0
    %1390 = vmatpush1.msra.mxu0 0.0
    %1391 = vmatprep.subr.mxu0 0.0
    %1392 = vmatpush1.msra.mxu0 0.0
    %1393 = vmatprep.subr.mxu0 0.0
    %1394 = vmatpush1.msra.mxu0 0.0
    %1395 = vmatprep.subr.mxu0 0.0
    %1396 = vmatpush1.msra.mxu0 0.0
    %1397 = vmatprep.subr.mxu0 0.0
    %1398 = vmatpush1.msra.mxu0 0.0
    %1399 = vmatprep.subr.mxu0 0.0
    %1400 = vmatpush1.msra.mxu0 0.0
    %1401 = vmatprep.subr.mxu0 0.0
    %1402 = vmatpush1.msra.mxu0 0.0
    %1403 = vmatprep.subr.mxu0 0.0
    %1404 = vmatpush1.msra.mxu0 0.0
    %1405 = vmatprep.subr.mxu0 0.0
    %1406 = vmatpush1.msra.mxu0 0.0
    %1407 = vmatprep.subr.mxu0 0.0
    %1408 = vmatpush1.msra.mxu0 0.0
    %1409 = vmatprep.subr.mxu0 0.0
    %1410 = vmatpush1.msra.mxu0 0.0
    %1411 = vmatprep.subr.mxu0 0.0
    %1412 = vmatpush1.msra.mxu0 0.0
    %1413 = vmatprep.subr.mxu0 0.0
    %1414 = vmatpush1.msra.mxu0 0.0
    %1415 = vmatprep.subr.mxu0 0.0
    %1416 = vmatpush1.msra.mxu0 0.0
    %1417 = vmatprep.subr.mxu0 0.0
    %1418 = vmatpush1.msra.mxu0 0.0
    %1419 = vmatprep.mubr.f32.mxu0 0.0
    %1420 = vmatmul.mubr.f32.gmra.mrb[0].mxu0 %v1161
    %v1421 = vpop.f32.mrb[0].mxu0
    %v1422 = vadd.f32 0.0, %v1421
    %v1423 = vpop.f32.mrb[0].mxu0
    %1424 = vmatprep.mubr.f32.mxu0 0.0
    %1425 = vmatmul.mubr.f32.gmra.mrb[0].mxu0 %v1164
    %v1426 = vpop.f32.mrb[0].mxu0
    %v1427 = vadd.f32 0.0, %v1426
    %v1428 = vpop.f32.mrb[0].mxu0
    %1429 = vmatprep.mubr.f32.mxu0 0.0
    %1430 = vmatmul.mubr.f32.gmra.mrb[0].mxu0 %v1167
    %v1431 = vpop.f32.mrb[0].mxu0
    %v1432 = vadd.f32 0.0, %v1431
    %v1433 = vpop.f32.mrb[0].mxu0
    %1434 = vdwg.mxu0
    %1435 = vmatprep.subr.mxu0 0.0
    %1436 = vmatpush1.msra.mxu0 %v1348
    %1437 = vmatprep.subr.mxu0 0.0
    %1438 = vmatpush1.msra.mxu0 %v1349
    %1439 = vmatprep.subr.mxu0 0.0
    %1440 = vmatpush1.msra.mxu0 %v1350
    %1441 = vmatprep.subr.mxu0 0.0
    %1442 = vmatpush1.msra.mxu0 %v1353
    %1443 = vmatprep.subr.mxu0 0.0
    %1444 = vmatpush1.msra.mxu0 0.0
    %1445 = vmatprep.subr.mxu0 0.0
    %1446 = vmatpush1.msra.mxu0 0.0
    %1447 = vmatprep.subr.mxu0 0.0
    %1448 = vmatpush1.msra.mxu0 0.0
    %1449 = vmatprep.subr.mxu0 0.0
    %1450 = vmatpush1.msra.mxu0 0.0
    %1451 = vmatprep.subr.mxu0 0.0
    %1452 = vmatpush1.msra.mxu0 0.0
    %1453 = vmatprep.subr.mxu0 0.0
    %1454 = vmatpush1.msra.mxu0 0.0
    %1455 = vmatprep.subr.mxu0 0.0
    %1456 = vmatpush1.msra.mxu0 0.0
    %1457 = vmatprep.subr.mxu0 0.0
    %1458 = vmatpush1.msra.mxu0 0.0
    %1459 = vmatprep.subr.mxu0 0.0
    %1460 = vmatpush1.msra.mxu0 0.0
    %1461 = vmatprep.subr.mxu0 0.0
    %1462 = vmatpush1.msra.mxu0 0.0
    %1463 = vmatprep.subr.mxu0 0.0
    %1464 = vmatpush1.msra.mxu0 0.0
    %1465 = vmatprep.subr.mxu0 0.0
    %1466 = vmatpush1.msra.mxu0 0.0
    %1467 = vmatprep.subr.mxu0 0.0
    %1468 = vmatpush1.msra.mxu0 0.0
    %1469 = vmatprep.subr.mxu0 0.0
    %1470 = vmatpush1.msra.mxu0 0.0
    %1471 = vmatprep.subr.mxu0 0.0
    %1472 = vmatpush1.msra.mxu0 0.0
    %1473 = vmatprep.subr.mxu0 0.0
    %1474 = vmatpush1.msra.mxu0 0.0
    %1475 = vmatprep.subr.mxu0 0.0
    %1476 = vmatpush1.msra.mxu0 0.0
    %1477 = vmatprep.subr.mxu0 0.0
    %1478 = vmatpush1.msra.mxu0 0.0
    %1479 = vmatprep.subr.mxu0 0.0
    %1480 = vmatpush1.msra.mxu0 0.0
    %1481 = vmatprep.subr.mxu0 0.0
    %1482 = vmatpush1.msra.mxu0 0.0
    %1483 = vmatprep.subr.mxu0 0.0
    %1484 = vmatpush1.msra.mxu0 0.0
    %1485 = vmatprep.subr.mxu0 0.0
    %1486 = vmatpush1.msra.mxu0 0.0
    %1487 = vmatprep.subr.mxu0 0.0
    %1488 = vmatpush1.msra.mxu0 0.0
    %1489 = vmatprep.subr.mxu0 0.0
    %1490 = vmatpush1.msra.mxu0 0.0
    %1491 = vmatprep.subr.mxu0 0.0
    %1492 = vmatpush1.msra.mxu0 0.0
    %1493 = vmatprep.subr.mxu0 0.0
    %1494 = vmatpush1.msra.mxu0 0.0
    %1495 = vmatprep.subr.mxu0 0.0
    %1496 = vmatpush1.msra.mxu0 0.0
    %1497 = vmatprep.subr.mxu0 0.0
    %1498 = vmatpush1.msra.mxu0 0.0
    %1499 = vmatprep.mubr.f32.mxu0 0.0
    %1500 = vmatmul.mubr.f32.gmra.mrb[0].mxu0 %v1253
    %v1501 = vpop.f32.mrb[0].mxu0
    %v1502 = vadd.f32 0.0, %v1501
    %v1503 = vpop.f32.mrb[0].mxu0
    %1504 = vmatprep.mubr.f32.mxu0 0.0
    %1505 = vmatmul.mubr.f32.gmra.mrb[0].mxu0 %v1256
    %v1506 = vpop.f32.mrb[0].mxu0
    %v1507 = vadd.f32 0.0, %v1506
    %v1508 = vpop.f32.mrb[0].mxu0
    %1509 = vmatprep.mubr.f32.mxu0 0.0
    %1510 = vmatmul.mubr.f32.gmra.mrb[0].mxu0 %v1259
    %v1511 = vpop.f32.mrb[0].mxu0
    %v1512 = vadd.f32 0.0, %v1511
    %v1513 = vpop.f32.mrb[0].mxu0
    %1514 = vdwg.mxu0
    %v1515 = vadd.f32 %v1143, %v1422
    %v1516 = vadd.f32 %v1144, %v1427
    %v1517 = vadd.f32 %v1145, %v1432
    %v1518 = vadd.f32 %v1146, %v1502
    %v1519 = vadd.f32 %v1147, %v1507
    %v1520 = vadd.f32 %v1148, %v1512
    %v1521 = vld [vmem:[%s0 + $0x4] sm:$0xff]
    %v1522 = vld [vmem:[%s0 + $0xc] sm:$0xff]
    %v1523 = vld [vmem:[%s0 + $0x14] sm:$0xff]
    %v1524 = vld [vmem:[%s0 + $0x24] sm:$0xff]
    %v1525 = vld [vmem:[%s0 + $0x2c] sm:$0xff]
    %v1526 = vld [vmem:[%s0 + $0x34] sm:$0xff]
    %s1527 = scalar_lea.vmem %s1, 128
    %v1528 = vld [vmem:[%s1527] sm:$0xff]
    %v1529 = vld [vmem:[%s1527 + $0x8] sm:$0xff]
    %v1530 = vld [vmem:[%s1527 + $0x10] sm:$0xff]
    %v1531 = vld [vmem:[%s1527 + $0x18] sm:$0xf]
    %v1533 = vsel %vm82, %v1521, 0
    %v1536 = vsel %vm82, %v1522, 0
    %v1539 = vsel %vm82, %v1523, 0
    %v1542 = vsel %vm92, %v1531, 0
    %1544 = vmatprep.subr.mxu0 0.0
    %1545 = vmatpush1.msra.mxu0 %v1528
    %1546 = vmatprep.subr.mxu0 0.0
    %1547 = vmatpush1.msra.mxu0 %v1529
    %1548 = vmatprep.subr.mxu0 0.0
    %1549 = vmatpush1.msra.mxu0 %v1530
    %1550 = vmatprep.subr.mxu0 0.0
    %1551 = vmatpush1.msra.mxu0 %v1542
    %1552 = vmatprep.subr.mxu0 0.0
    %1553 = vmatpush1.msra.mxu0 0.0
    %1554 = vmatprep.subr.mxu0 0.0
    %1555 = vmatpush1.msra.mxu0 0.0
    %1556 = vmatprep.subr.mxu0 0.0
    %1557 = vmatpush1.msra.mxu0 0.0
    %1558 = vmatprep.subr.mxu0 0.0
    %1559 = vmatpush1.msra.mxu0 0.0
    %1560 = vmatprep.subr.mxu0 0.0
    %1561 = vmatpush1.msra.mxu0 0.0
    %1562 = vmatprep.subr.mxu0 0.0
    %1563 = vmatpush1.msra.mxu0 0.0
    %1564 = vmatprep.subr.mxu0 0.0
    %1565 = vmatpush1.msra.mxu0 0.0
    %1566 = vmatprep.subr.mxu0 0.0
    %1567 = vmatpush1.msra.mxu0 0.0
    %1568 = vmatprep.subr.mxu0 0.0
    %1569 = vmatpush1.msra.mxu0 0.0
    %1570 = vmatprep.subr.mxu0 0.0
    %1571 = vmatpush1.msra.mxu0 0.0
    %1572 = vmatprep.subr.mxu0 0.0
    %1573 = vmatpush1.msra.mxu0 0.0
    %1574 = vmatprep.subr.mxu0 0.0
    %1575 = vmatpush1.msra.mxu0 0.0
    %1576 = vmatprep.subr.mxu0 0.0
    %1577 = vmatpush1.msra.mxu0 0.0
    %1578 = vmatprep.subr.mxu0 0.0
    %1579 = vmatpush1.msra.mxu0 0.0
    %1580 = vmatprep.subr.mxu0 0.0
    %1581 = vmatpush1.msra.mxu0 0.0
    %1582 = vmatprep.subr.mxu0 0.0
    %1583 = vmatpush1.msra.mxu0 0.0
    %1584 = vmatprep.subr.mxu0 0.0
    %1585 = vmatpush1.msra.mxu0 0.0
    %1586 = vmatprep.subr.mxu0 0.0
    %1587 = vmatpush1.msra.mxu0 0.0
    %1588 = vmatprep.subr.mxu0 0.0
    %1589 = vmatpush1.msra.mxu0 0.0
    %1590 = vmatprep.subr.mxu0 0.0
    %1591 = vmatpush1.msra.mxu0 0.0
    %1592 = vmatprep.subr.mxu0 0.0
    %1593 = vmatpush1.msra.mxu0 0.0
    %1594 = vmatprep.subr.mxu0 0.0
    %1595 = vmatpush1.msra.mxu0 0.0
    %1596 = vmatprep.subr.mxu0 0.0
    %1597 = vmatpush1.msra.mxu0 0.0
    %1598 = vmatprep.subr.mxu0 0.0
    %1599 = vmatpush1.msra.mxu0 0.0
    %1600 = vmatprep.subr.mxu0 0.0
    %1601 = vmatpush1.msra.mxu0 0.0
    %1602 = vmatprep.subr.mxu0 0.0
    %1603 = vmatpush1.msra.mxu0 0.0
    %1604 = vmatprep.subr.mxu0 0.0
    %1605 = vmatpush1.msra.mxu0 0.0
    %1606 = vmatprep.subr.mxu0 0.0
    %1607 = vmatpush1.msra.mxu0 0.0
    %1608 = vmatprep.mubr.f32.mxu0 0.0
    %1609 = vmatmul.mubr.f32.gmra.mrb[0].mxu0 %v1533
    %v1610 = vpop.f32.mrb[0].mxu0
    %v1611 = vadd.f32 0.0, %v1610
    %v1612 = vpop.f32.mrb[0].mxu0
    %1613 = vmatprep.mubr.f32.mxu0 0.0
    %1614 = vmatmul.mubr.f32.gmra.mrb[0].mxu0 %v1536
    %v1615 = vpop.f32.mrb[0].mxu0
    %v1616 = vadd.f32 0.0, %v1615
    %v1617 = vpop.f32.mrb[0].mxu0
    %1618 = vmatprep.mubr.f32.mxu0 0.0
    %1619 = vmatmul.mubr.f32.gmra.mrb[0].mxu0 %v1539
    %v1620 = vpop.f32.mrb[0].mxu0
    %v1621 = vadd.f32 0.0, %v1620
    %v1622 = vpop.f32.mrb[0].mxu0
    %1623 = vdwg.mxu0
    %v1625 = vsel %vm82, %v1524, 0
    %v1628 = vsel %vm82, %v1525, 0
    %v1631 = vsel %vm82, %v1526, 0
    %1633 = vmatprep.subr.mxu0 0.0
    %1634 = vmatpush1.msra.mxu0 %v1528
    %1635 = vmatprep.subr.mxu0 0.0
    %1636 = vmatpush1.msra.mxu0 %v1529
    %1637 = vmatprep.subr.mxu0 0.0
    %1638 = vmatpush1.msra.mxu0 %v1530
    %1639 = vmatprep.subr.mxu0 0.0
    %1640 = vmatpush1.msra.mxu0 %v1542
    %1641 = vmatprep.subr.mxu0 0.0
    %1642 = vmatpush1.msra.mxu0 0.0
    %1643 = vmatprep.subr.mxu0 0.0
    %1644 = vmatpush1.msra.mxu0 0.0
    %1645 = vmatprep.subr.mxu0 0.0
    %1646 = vmatpush1.msra.mxu0 0.0
    %1647 = vmatprep.subr.mxu0 0.0
    %1648 = vmatpush1.msra.mxu0 0.0
    %1649 = vmatprep.subr.mxu0 0.0
    %1650 = vmatpush1.msra.mxu0 0.0
    %1651 = vmatprep.subr.mxu0 0.0
    %1652 = vmatpush1.msra.mxu0 0.0
    %1653 = vmatprep.subr.mxu0 0.0
    %1654 = vmatpush1.msra.mxu0 0.0
    %1655 = vmatprep.subr.mxu0 0.0
    %1656 = vmatpush1.msra.mxu0 0.0
    %1657 = vmatprep.subr.mxu0 0.0
    %1658 = vmatpush1.msra.mxu0 0.0
    %1659 = vmatprep.subr.mxu0 0.0
    %1660 = vmatpush1.msra.mxu0 0.0
    %1661 = vmatprep.subr.mxu0 0.0
    %1662 = vmatpush1.msra.mxu0 0.0
    %1663 = vmatprep.subr.mxu0 0.0
    %1664 = vmatpush1.msra.mxu0 0.0
    %1665 = vmatprep.subr.mxu0 0.0
    %1666 = vmatpush1.msra.mxu0 0.0
    %1667 = vmatprep.subr.mxu0 0.0
    %1668 = vmatpush1.msra.mxu0 0.0
    %1669 = vmatprep.subr.mxu0 0.0
    %1670 = vmatpush1.msra.mxu0 0.0
    %1671 = vmatprep.subr.mxu0 0.0
    %1672 = vmatpush1.msra.mxu0 0.0
    %1673 = vmatprep.subr.mxu0 0.0
    %1674 = vmatpush1.msra.mxu0 0.0
    %1675 = vmatprep.subr.mxu0 0.0
    %1676 = vmatpush1.msra.mxu0 0.0
    %1677 = vmatprep.subr.mxu0 0.0
    %1678 = vmatpush1.msra.mxu0 0.0
    %1679 = vmatprep.subr.mxu0 0.0
    %1680 = vmatpush1.msra.mxu0 0.0
    %1681 = vmatprep.subr.mxu0 0.0
    %1682 = vmatpush1.msra.mxu0 0.0
    %1683 = vmatprep.subr.mxu0 0.0
    %1684 = vmatpush1.msra.mxu0 0.0
    %1685 = vmatprep.subr.mxu0 0.0
    %1686 = vmatpush1.msra.mxu0 0.0
    %1687 = vmatprep.subr.mxu0 0.0
    %1688 = vmatpush1.msra.mxu0 0.0
    %1689 = vmatprep.subr.mxu0 0.0
    %1690 = vmatpush1.msra.mxu0 0.0
    %1691 = vmatprep.subr.mxu0 0.0
    %1692 = vmatpush1.msra.mxu0 0.0
    %1693 = vmatprep.subr.mxu0 0.0
    %1694 = vmatpush1.msra.mxu0 0.0
    %1695 = vmatprep.subr.mxu0 0.0
    %1696 = vmatpush1.msra.mxu0 0.0
    %1697 = vmatprep.mubr.f32.mxu0 0.0
    %1698 = vmatmul.mubr.f32.gmra.mrb[0].mxu0 %v1625
    %v1699 = vpop.f32.mrb[0].mxu0
    %v1700 = vadd.f32 0.0, %v1699
    %v1701 = vpop.f32.mrb[0].mxu0
    %1702 = vmatprep.mubr.f32.mxu0 0.0
    %1703 = vmatmul.mubr.f32.gmra.mrb[0].mxu0 %v1628
    %v1704 = vpop.f32.mrb[0].mxu0
    %v1705 = vadd.f32 0.0, %v1704
    %v1706 = vpop.f32.mrb[0].mxu0
    %1707 = vmatprep.mubr.f32.mxu0 0.0
    %1708 = vmatmul.mubr.f32.gmra.mrb[0].mxu0 %v1631
    %v1709 = vpop.f32.mrb[0].mxu0
    %v1710 = vadd.f32 0.0, %v1709
    %v1711 = vpop.f32.mrb[0].mxu0
    %1712 = vdwg.mxu0
    %v1713 = vadd.f32 %v1341, %v1611
    %v1714 = vadd.f32 %v1342, %v1616
    %v1715 = vadd.f32 %v1343, %v1621
    %v1716 = vadd.f32 %v1344, %v1700
    %v1717 = vadd.f32 %v1345, %v1705
    %v1718 = vadd.f32 %v1346, %v1710
    %s1719 = scalar_lea.vmem %s2, 128
    %v1720 = vld [vmem:[%s1719] sm:$0xff]
    %v1721 = vld [vmem:[%s1719 + $0x8] sm:$0xff]
    %v1722 = vld [vmem:[%s1719 + $0x10] sm:$0xff]
    %v1723 = vld [vmem:[%s1719 + $0x18] sm:$0xf]
    %v1725 = vsel %vm92, %v1723, 0
    %1727 = vmatprep.subr.mxu0 0.0
    %1728 = vmatpush1.msra.mxu0 %v1720
    %1729 = vmatprep.subr.mxu0 0.0
    %1730 = vmatpush1.msra.mxu0 %v1721
    %1731 = vmatprep.subr.mxu0 0.0
    %1732 = vmatpush1.msra.mxu0 %v1722
    %1733 = vmatprep.subr.mxu0 0.0
    %1734 = vmatpush1.msra.mxu0 %v1725
    %1735 = vmatprep.subr.mxu0 0.0
    %1736 = vmatpush1.msra.mxu0 0.0
    %1737 = vmatprep.subr.mxu0 0.0
    %1738 = vmatpush1.msra.mxu0 0.0
    %1739 = vmatprep.subr.mxu0 0.0
    %1740 = vmatpush1.msra.mxu0 0.0
    %1741 = vmatprep.subr.mxu0 0.0
    %1742 = vmatpush1.msra.mxu0 0.0
    %1743 = vmatprep.subr.mxu0 0.0
    %1744 = vmatpush1.msra.mxu0 0.0
    %1745 = vmatprep.subr.mxu0 0.0
    %1746 = vmatpush1.msra.mxu0 0.0
    %1747 = vmatprep.subr.mxu0 0.0
    %1748 = vmatpush1.msra.mxu0 0.0
    %1749 = vmatprep.subr.mxu0 0.0
    %1750 = vmatpush1.msra.mxu0 0.0
    %1751 = vmatprep.subr.mxu0 0.0
    %1752 = vmatpush1.msra.mxu0 0.0
    %1753 = vmatprep.subr.mxu0 0.0
    %1754 = vmatpush1.msra.mxu0 0.0
    %1755 = vmatprep.subr.mxu0 0.0
    %1756 = vmatpush1.msra.mxu0 0.0
    %1757 = vmatprep.subr.mxu0 0.0
    %1758 = vmatpush1.msra.mxu0 0.0
    %1759 = vmatprep.subr.mxu0 0.0
    %1760 = vmatpush1.msra.mxu0 0.0
    %1761 = vmatprep.subr.mxu0 0.0
    %1762 = vmatpush1.msra.mxu0 0.0
    %1763 = vmatprep.subr.mxu0 0.0
    %1764 = vmatpush1.msra.mxu0 0.0
    %1765 = vmatprep.subr.mxu0 0.0
    %1766 = vmatpush1.msra.mxu0 0.0
    %1767 = vmatprep.subr.mxu0 0.0
    %1768 = vmatpush1.msra.mxu0 0.0
    %1769 = vmatprep.subr.mxu0 0.0
    %1770 = vmatpush1.msra.mxu0 0.0
    %1771 = vmatprep.subr.mxu0 0.0
    %1772 = vmatpush1.msra.mxu0 0.0
    %1773 = vmatprep.subr.mxu0 0.0
    %1774 = vmatpush1.msra.mxu0 0.0
    %1775 = vmatprep.subr.mxu0 0.0
    %1776 = vmatpush1.msra.mxu0 0.0
    %1777 = vmatprep.subr.mxu0 0.0
    %1778 = vmatpush1.msra.mxu0 0.0
    %1779 = vmatprep.subr.mxu0 0.0
    %1780 = vmatpush1.msra.mxu0 0.0
    %1781 = vmatprep.subr.mxu0 0.0
    %1782 = vmatpush1.msra.mxu0 0.0
    %1783 = vmatprep.subr.mxu0 0.0
    %1784 = vmatpush1.msra.mxu0 0.0
    %1785 = vmatprep.subr.mxu0 0.0
    %1786 = vmatpush1.msra.mxu0 0.0
    %1787 = vmatprep.subr.mxu0 0.0
    %1788 = vmatpush1.msra.mxu0 0.0
    %1789 = vmatprep.subr.mxu0 0.0
    %1790 = vmatpush1.msra.mxu0 0.0
    %1791 = vmatprep.mubr.f32.mxu0 0.0
    %1792 = vmatmul.mubr.f32.gmra.mrb[0].mxu0 %v1533
    %v1793 = vpop.f32.mrb[0].mxu0
    %v1794 = vadd.f32 0.0, %v1793
    %v1795 = vpop.f32.mrb[0].mxu0
    %1796 = vmatprep.mubr.f32.mxu0 0.0
    %1797 = vmatmul.mubr.f32.gmra.mrb[0].mxu0 %v1536
    %v1798 = vpop.f32.mrb[0].mxu0
    %v1799 = vadd.f32 0.0, %v1798
    %v1800 = vpop.f32.mrb[0].mxu0
    %1801 = vmatprep.mubr.f32.mxu0 0.0
    %1802 = vmatmul.mubr.f32.gmra.mrb[0].mxu0 %v1539
    %v1803 = vpop.f32.mrb[0].mxu0
    %v1804 = vadd.f32 0.0, %v1803
    %v1805 = vpop.f32.mrb[0].mxu0
    %1806 = vdwg.mxu0
    %1807 = vmatprep.subr.mxu0 0.0
    %1808 = vmatpush1.msra.mxu0 %v1720
    %1809 = vmatprep.subr.mxu0 0.0
    %1810 = vmatpush1.msra.mxu0 %v1721
    %1811 = vmatprep.subr.mxu0 0.0
    %1812 = vmatpush1.msra.mxu0 %v1722
    %1813 = vmatprep.subr.mxu0 0.0
    %1814 = vmatpush1.msra.mxu0 %v1725
    %1815 = vmatprep.subr.mxu0 0.0
    %1816 = vmatpush1.msra.mxu0 0.0
    %1817 = vmatprep.subr.mxu0 0.0
    %1818 = vmatpush1.msra.mxu0 0.0
    %1819 = vmatprep.subr.mxu0 0.0
    %1820 = vmatpush1.msra.mxu0 0.0
    %1821 = vmatprep.subr.mxu0 0.0
    %1822 = vmatpush1.msra.mxu0 0.0
    %1823 = vmatprep.subr.mxu0 0.0
    %1824 = vmatpush1.msra.mxu0 0.0
    %1825 = vmatprep.subr.mxu0 0.0
    %1826 = vmatpush1.msra.mxu0 0.0
    %1827 = vmatprep.subr.mxu0 0.0
    %1828 = vmatpush1.msra.mxu0 0.0
    %1829 = vmatprep.subr.mxu0 0.0
    %1830 = vmatpush1.msra.mxu0 0.0
    %1831 = vmatprep.subr.mxu0 0.0
    %1832 = vmatpush1.msra.mxu0 0.0
    %1833 = vmatprep.subr.mxu0 0.0
    %1834 = vmatpush1.msra.mxu0 0.0
    %1835 = vmatprep.subr.mxu0 0.0
    %1836 = vmatpush1.msra.mxu0 0.0
    %1837 = vmatprep.subr.mxu0 0.0
    %1838 = vmatpush1.msra.mxu0 0.0
    %1839 = vmatprep.subr.mxu0 0.0
    %1840 = vmatpush1.msra.mxu0 0.0
    %1841 = vmatprep.subr.mxu0 0.0
    %1842 = vmatpush1.msra.mxu0 0.0
    %1843 = vmatprep.subr.mxu0 0.0
    %1844 = vmatpush1.msra.mxu0 0.0
    %1845 = vmatprep.subr.mxu0 0.0
    %1846 = vmatpush1.msra.mxu0 0.0
    %1847 = vmatprep.subr.mxu0 0.0
    %1848 = vmatpush1.msra.mxu0 0.0
    %1849 = vmatprep.subr.mxu0 0.0
    %1850 = vmatpush1.msra.mxu0 0.0
    %1851 = vmatprep.subr.mxu0 0.0
    %1852 = vmatpush1.msra.mxu0 0.0
    %1853 = vmatprep.subr.mxu0 0.0
    %1854 = vmatpush1.msra.mxu0 0.0
    %1855 = vmatprep.subr.mxu0 0.0
    %1856 = vmatpush1.msra.mxu0 0.0
    %1857 = vmatprep.subr.mxu0 0.0
    %1858 = vmatpush1.msra.mxu0 0.0
    %1859 = vmatprep.subr.mxu0 0.0
    %1860 = vmatpush1.msra.mxu0 0.0
    %1861 = vmatprep.subr.mxu0 0.0
    %1862 = vmatpush1.msra.mxu0 0.0
    %1863 = vmatprep.subr.mxu0 0.0
    %1864 = vmatpush1.msra.mxu0 0.0
    %1865 = vmatprep.subr.mxu0 0.0
    %1866 = vmatpush1.msra.mxu0 0.0
    %1867 = vmatprep.subr.mxu0 0.0
    %1868 = vmatpush1.msra.mxu0 0.0
    %1869 = vmatprep.subr.mxu0 0.0
    %1870 = vmatpush1.msra.mxu0 0.0
    %1871 = vmatprep.mubr.f32.mxu0 0.0
    %1872 = vmatmul.mubr.f32.gmra.mrb[0].mxu0 %v1625
    %v1873 = vpop.f32.mrb[0].mxu0
    %v1874 = vadd.f32 0.0, %v1873
    %v1875 = vpop.f32.mrb[0].mxu0
    %1876 = vmatprep.mubr.f32.mxu0 0.0
    %1877 = vmatmul.mubr.f32.gmra.mrb[0].mxu0 %v1628
    %v1878 = vpop.f32.mrb[0].mxu0
    %v1879 = vadd.f32 0.0, %v1878
    %v1880 = vpop.f32.mrb[0].mxu0
    %1881 = vmatprep.mubr.f32.mxu0 0.0
    %1882 = vmatmul.mubr.f32.gmra.mrb[0].mxu0 %v1631
    %v1883 = vpop.f32.mrb[0].mxu0
    %v1884 = vadd.f32 0.0, %v1883
    %v1885 = vpop.f32.mrb[0].mxu0
    %1886 = vdwg.mxu0
    %v1887 = vadd.f32 %v1515, %v1794
    %v1888 = vadd.f32 %v1516, %v1799
    %v1889 = vadd.f32 %v1517, %v1804
    %v1890 = vadd.f32 %v1518, %v1874
    %v1891 = vadd.f32 %v1519, %v1879
    %v1892 = vadd.f32 %v1520, %v1884
    %v1893 = vmax.f32 %v1713, %v1887
    %v1894 = vmax.f32 %v1714, %v1888
    %v1895 = vmax.f32 %v1715, %v1889
    %v1896 = vmax.f32 %v1716, %v1890
    %v1897 = vmax.f32 %v1717, %v1891
    %v1898 = vmax.f32 %v1718, %v1892
    %v1899 = vld [vmem:[%s4] sm:$0xff]
    %v1900 = vld [vmem:[%s4 + $0x8] sm:$0xf]
    %vm1901 = vcmask 195584
    %v1903 = vsel %vm1901, %v1899, 0
    %v1906 = vsel %vm1901, %v1900, 0
    %1908 = vmatprep.subr.mxu0 0.0
    %1909 = vmatpush1.msra.mxu0 %v1893
    %1910 = vmatprep.subr.mxu0 0.0
    %1911 = vmatpush1.msra.mxu0 %v1894
    %1912 = vmatprep.subr.mxu0 0.0
    %1913 = vmatpush1.msra.mxu0 %v1895
    %1914 = vmatprep.subr.mxu0 0.0
    %1915 = vmatpush1.msra.mxu0 0.0
    %1916 = vmatprep.subr.mxu0 0.0
    %1917 = vmatpush1.msra.mxu0 0.0
    %1918 = vmatprep.subr.mxu0 0.0
    %1919 = vmatpush1.msra.mxu0 0.0
    %1920 = vmatprep.subr.mxu0 0.0
    %1921 = vmatpush1.msra.mxu0 0.0
    %1922 = vmatprep.subr.mxu0 0.0
    %1923 = vmatpush1.msra.mxu0 0.0
    %1924 = vmatprep.subr.mxu0 0.0
    %1925 = vmatpush1.msra.mxu0 0.0
    %1926 = vmatprep.subr.mxu0 0.0
    %1927 = vmatpush1.msra.mxu0 0.0
    %1928 = vmatprep.subr.mxu0 0.0
    %1929 = vmatpush1.msra.mxu0 0.0
    %1930 = vmatprep.subr.mxu0 0.0
    %1931 = vmatpush1.msra.mxu0 0.0
    %1932 = vmatprep.subr.mxu0 0.0
    %1933 = vmatpush1.msra.mxu0 0.0
    %1934 = vmatprep.subr.mxu0 0.0
    %1935 = vmatpush1.msra.mxu0 0.0
    %1936 = vmatprep.subr.mxu0 0.0
    %1937 = vmatpush1.msra.mxu0 0.0
    %1938 = vmatprep.subr.mxu0 0.0
    %1939 = vmatpush1.msra.mxu0 0.0
    %1940 = vmatprep.subr.mxu0 0.0
    %1941 = vmatpush1.msra.mxu0 0.0
    %1942 = vmatprep.subr.mxu0 0.0
    %1943 = vmatpush1.msra.mxu0 0.0
    %1944 = vmatprep.subr.mxu0 0.0
    %1945 = vmatpush1.msra.mxu0 0.0
    %1946 = vmatprep.subr.mxu0 0.0
    %1947 = vmatpush1.msra.mxu0 0.0
    %1948 = vmatprep.subr.mxu0 0.0
    %1949 = vmatpush1.msra.mxu0 0.0
    %1950 = vmatprep.subr.mxu0 0.0
    %1951 = vmatpush1.msra.mxu0 0.0
    %1952 = vmatprep.subr.mxu0 0.0
    %1953 = vmatpush1.msra.mxu0 0.0
    %1954 = vmatprep.subr.mxu0 0.0
    %1955 = vmatpush1.msra.mxu0 0.0
    %1956 = vmatprep.subr.mxu0 0.0
    %1957 = vmatpush1.msra.mxu0 0.0
    %1958 = vmatprep.subr.mxu0 0.0
    %1959 = vmatpush1.msra.mxu0 0.0
    %1960 = vmatprep.subr.mxu0 0.0
    %1961 = vmatpush1.msra.mxu0 0.0
    %1962 = vmatprep.subr.mxu0 0.0
    %1963 = vmatpush1.msra.mxu0 0.0
    %1964 = vmatprep.subr.mxu0 0.0
    %1965 = vmatpush1.msra.mxu0 0.0
    %1966 = vmatprep.subr.mxu0 0.0
    %1967 = vmatpush1.msra.mxu0 0.0
    %1968 = vmatprep.subr.mxu0 0.0
    %1969 = vmatpush1.msra.mxu0 0.0
    %1970 = vmatprep.subr.mxu0 0.0
    %1971 = vmatpush1.msra.mxu0 0.0
    %1972 = vmatprep.mubr.f32.mxu0 0.0
    %1973 = vmatmul.mubr.f32.gmra.mrb[0].mxu0 %v1903
    %v1974 = vpop.f32.mrb[0].mxu0
    %v1975 = vadd.f32 0.0, %v1974
    %v1976 = vpop.f32.mrb[0].mxu0
    %1977 = vmatprep.mubr.f32.mxu0 0.0
    %1978 = vmatmul.mubr.f32.gmra.mrb[0].mxu0 %v1906
    %v1979 = vpop.f32.mrb[0].mxu0
    %v1980 = vadd.f32 0.0, %v1979
    %v1981 = vpop.f32.mrb[0].mxu0
    %1982 = vdwg.mxu0
    %1983 = vmatprep.subr.mxu0 0.0
    %1984 = vmatpush1.msra.mxu0 %v1896
    %1985 = vmatprep.subr.mxu0 0.0
    %1986 = vmatpush1.msra.mxu0 %v1897
    %1987 = vmatprep.subr.mxu0 0.0
    %1988 = vmatpush1.msra.mxu0 %v1898
    %1989 = vmatprep.subr.mxu0 0.0
    %1990 = vmatpush1.msra.mxu0 0.0
    %1991 = vmatprep.subr.mxu0 0.0
    %1992 = vmatpush1.msra.mxu0 0.0
    %1993 = vmatprep.subr.mxu0 0.0
    %1994 = vmatpush1.msra.mxu0 0.0
    %1995 = vmatprep.subr.mxu0 0.0
    %1996 = vmatpush1.msra.mxu0 0.0
    %1997 = vmatprep.subr.mxu0 0.0
    %1998 = vmatpush1.msra.mxu0 0.0
    %1999 = vmatprep.subr.mxu0 0.0
    %2000 = vmatpush1.msra.mxu0 0.0
    %2001 = vmatprep.subr.mxu0 0.0
    %2002 = vmatpush1.msra.mxu0 0.0
    %2003 = vmatprep.subr.mxu0 0.0
    %2004 = vmatpush1.msra.mxu0 0.0
    %2005 = vmatprep.subr.mxu0 0.0
    %2006 = vmatpush1.msra.mxu0 0.0
    %2007 = vmatprep.subr.mxu0 0.0
    %2008 = vmatpush1.msra.mxu0 0.0
    %2009 = vmatprep.subr.mxu0 0.0
    %2010 = vmatpush1.msra.mxu0 0.0
    %2011 = vmatprep.subr.mxu0 0.0
    %2012 = vmatpush1.msra.mxu0 0.0
    %2013 = vmatprep.subr.mxu0 0.0
    %2014 = vmatpush1.msra.mxu0 0.0
    %2015 = vmatprep.subr.mxu0 0.0
    %2016 = vmatpush1.msra.mxu0 0.0
    %2017 = vmatprep.subr.mxu0 0.0
    %2018 = vmatpush1.msra.mxu0 0.0
    %2019 = vmatprep.subr.mxu0 0.0
    %2020 = vmatpush1.msra.mxu0 0.0
    %2021 = vmatprep.subr.mxu0 0.0
    %2022 = vmatpush1.msra.mxu0 0.0
    %2023 = vmatprep.subr.mxu0 0.0
    %2024 = vmatpush1.msra.mxu0 0.0
    %2025 = vmatprep.subr.mxu0 0.0
    %2026 = vmatpush1.msra.mxu0 0.0
    %2027 = vmatprep.subr.mxu0 0.0
    %2028 = vmatpush1.msra.mxu0 0.0
    %2029 = vmatprep.subr.mxu0 0.0
    %2030 = vmatpush1.msra.mxu0 0.0
    %2031 = vmatprep.subr.mxu0 0.0
    %2032 = vmatpush1.msra.mxu0 0.0
    %2033 = vmatprep.subr.mxu0 0.0
    %2034 = vmatpush1.msra.mxu0 0.0
    %2035 = vmatprep.subr.mxu0 0.0
    %2036 = vmatpush1.msra.mxu0 0.0
    %2037 = vmatprep.subr.mxu0 0.0
    %2038 = vmatpush1.msra.mxu0 0.0
    %2039 = vmatprep.subr.mxu0 0.0
    %2040 = vmatpush1.msra.mxu0 0.0
    %2041 = vmatprep.subr.mxu0 0.0
    %2042 = vmatpush1.msra.mxu0 0.0
    %2043 = vmatprep.subr.mxu0 0.0
    %2044 = vmatpush1.msra.mxu0 0.0
    %2045 = vmatprep.subr.mxu0 0.0
    %2046 = vmatpush1.msra.mxu0 0.0
    %2047 = vmatprep.mubr.f32.mxu0 0.0
    %2048 = vmatmul.mubr.f32.gmra.mrb[0].mxu0 %v1903
    %v2049 = vpop.f32.mrb[0].mxu0
    %v2050 = vadd.f32 0.0, %v2049
    %v2051 = vpop.f32.mrb[0].mxu0
    %2052 = vmatprep.mubr.f32.mxu0 0.0
    %2053 = vmatmul.mubr.f32.gmra.mrb[0].mxu0 %v1906
    %v2054 = vpop.f32.mrb[0].mxu0
    %v2055 = vadd.f32 0.0, %v2054
    %v2056 = vpop.f32.mrb[0].mxu0
    %2057 = vdwg.mxu0
    %v2058 = vld [vmem:[%s5] sm:$0xff]
    %v2059 = vld [vmem:[%s5 + $0x8] sm:$0xf]
    %v2061 = vsel %vm1901, %v2058, 0
    %v2064 = vsel %vm1901, %v2059, 0
    %2066 = vmatprep.subr.mxu0 0.0
    %2067 = vmatpush1.msra.mxu0 %v1893
    %2068 = vmatprep.subr.mxu0 0.0
    %2069 = vmatpush1.msra.mxu0 %v1894
    %2070 = vmatprep.subr.mxu0 0.0
    %2071 = vmatpush1.msra.mxu0 %v1895
    %2072 = vmatprep.subr.mxu0 0.0
    %2073 = vmatpush1.msra.mxu0 0.0
    %2074 = vmatprep.subr.mxu0 0.0
    %2075 = vmatpush1.msra.mxu0 0.0
    %2076 = vmatprep.subr.mxu0 0.0
    %2077 = vmatpush1.msra.mxu0 0.0
    %2078 = vmatprep.subr.mxu0 0.0
    %2079 = vmatpush1.msra.mxu0 0.0
    %2080 = vmatprep.subr.mxu0 0.0
    %2081 = vmatpush1.msra.mxu0 0.0
    %2082 = vmatprep.subr.mxu0 0.0
    %2083 = vmatpush1.msra.mxu0 0.0
    %2084 = vmatprep.subr.mxu0 0.0
    %2085 = vmatpush1.msra.mxu0 0.0
    %2086 = vmatprep.subr.mxu0 0.0
    %2087 = vmatpush1.msra.mxu0 0.0
    %2088 = vmatprep.subr.mxu0 0.0
    %2089 = vmatpush1.msra.mxu0 0.0
    %2090 = vmatprep.subr.mxu0 0.0
    %2091 = vmatpush1.msra.mxu0 0.0
    %2092 = vmatprep.subr.mxu0 0.0
    %2093 = vmatpush1.msra.mxu0 0.0
    %2094 = vmatprep.subr.mxu0 0.0
    %2095 = vmatpush1.msra.mxu0 0.0
    %2096 = vmatprep.subr.mxu0 0.0
    %2097 = vmatpush1.msra.mxu0 0.0
    %2098 = vmatprep.subr.mxu0 0.0
    %2099 = vmatpush1.msra.mxu0 0.0
    %2100 = vmatprep.subr.mxu0 0.0
    %2101 = vmatpush1.msra.mxu0 0.0
    %2102 = vmatprep.subr.mxu0 0.0
    %2103 = vmatpush1.msra.mxu0 0.0
    %2104 = vmatprep.subr.mxu0 0.0
    %2105 = vmatpush1.msra.mxu0 0.0
    %2106 = vmatprep.subr.mxu0 0.0
    %2107 = vmatpush1.msra.mxu0 0.0
    %2108 = vmatprep.subr.mxu0 0.0
    %2109 = vmatpush1.msra.mxu0 0.0
    %2110 = vmatprep.subr.mxu0 0.0
    %2111 = vmatpush1.msra.mxu0 0.0
    %2112 = vmatprep.subr.mxu0 0.0
    %2113 = vmatpush1.msra.mxu0 0.0
    %2114 = vmatprep.subr.mxu0 0.0
    %2115 = vmatpush1.msra.mxu0 0.0
    %2116 = vmatprep.subr.mxu0 0.0
    %2117 = vmatpush1.msra.mxu0 0.0
    %2118 = vmatprep.subr.mxu0 0.0
    %2119 = vmatpush1.msra.mxu0 0.0
    %2120 = vmatprep.subr.mxu0 0.0
    %2121 = vmatpush1.msra.mxu0 0.0
    %2122 = vmatprep.subr.mxu0 0.0
    %2123 = vmatpush1.msra.mxu0 0.0
    %2124 = vmatprep.subr.mxu0 0.0
    %2125 = vmatpush1.msra.mxu0 0.0
    %2126 = vmatprep.subr.mxu0 0.0
    %2127 = vmatpush1.msra.mxu0 0.0
    %2128 = vmatprep.subr.mxu0 0.0
    %2129 = vmatpush1.msra.mxu0 0.0
    %2130 = vmatprep.mubr.f32.mxu0 0.0
    %2131 = vmatmul.mubr.f32.gmra.mrb[0].mxu0 %v2061
    %v2132 = vpop.f32.mrb[0].mxu0
    %v2133 = vadd.f32 0.0, %v2132
    %v2134 = vpop.f32.mrb[0].mxu0
    %2135 = vmatprep.mubr.f32.mxu0 0.0
    %2136 = vmatmul.mubr.f32.gmra.mrb[0].mxu0 %v2064
    %v2137 = vpop.f32.mrb[0].mxu0
    %v2138 = vadd.f32 0.0, %v2137
    %v2139 = vpop.f32.mrb[0].mxu0
    %2140 = vdwg.mxu0
    %2141 = vmatprep.subr.mxu0 0.0
    %2142 = vmatpush1.msra.mxu0 %v1896
    %2143 = vmatprep.subr.mxu0 0.0
    %2144 = vmatpush1.msra.mxu0 %v1897
    %2145 = vmatprep.subr.mxu0 0.0
    %2146 = vmatpush1.msra.mxu0 %v1898
    %2147 = vmatprep.subr.mxu0 0.0
    %2148 = vmatpush1.msra.mxu0 0.0
    %2149 = vmatprep.subr.mxu0 0.0
    %2150 = vmatpush1.msra.mxu0 0.0
    %2151 = vmatprep.subr.mxu0 0.0
    %2152 = vmatpush1.msra.mxu0 0.0
    %2153 = vmatprep.subr.mxu0 0.0
    %2154 = vmatpush1.msra.mxu0 0.0
    %2155 = vmatprep.subr.mxu0 0.0
    %2156 = vmatpush1.msra.mxu0 0.0
    %2157 = vmatprep.subr.mxu0 0.0
    %2158 = vmatpush1.msra.mxu0 0.0
    %2159 = vmatprep.subr.mxu0 0.0
    %2160 = vmatpush1.msra.mxu0 0.0
    %2161 = vmatprep.subr.mxu0 0.0
    %2162 = vmatpush1.msra.mxu0 0.0
    %2163 = vmatprep.subr.mxu0 0.0
    %2164 = vmatpush1.msra.mxu0 0.0
    %2165 = vmatprep.subr.mxu0 0.0
    %2166 = vmatpush1.msra.mxu0 0.0
    %2167 = vmatprep.subr.mxu0 0.0
    %2168 = vmatpush1.msra.mxu0 0.0
    %2169 = vmatprep.subr.mxu0 0.0
    %2170 = vmatpush1.msra.mxu0 0.0
    %2171 = vmatprep.subr.mxu0 0.0
    %2172 = vmatpush1.msra.mxu0 0.0
    %2173 = vmatprep.subr.mxu0 0.0
    %2174 = vmatpush1.msra.mxu0 0.0
    %2175 = vmatprep.subr.mxu0 0.0
    %2176 = vmatpush1.msra.mxu0 0.0
    %2177 = vmatprep.subr.mxu0 0.0
    %2178 = vmatpush1.msra.mxu0 0.0
    %2179 = vmatprep.subr.mxu0 0.0
    %2180 = vmatpush1.msra.mxu0 0.0
    %2181 = vmatprep.subr.mxu0 0.0
    %2182 = vmatpush1.msra.mxu0 0.0
    %2183 = vmatprep.subr.mxu0 0.0
    %2184 = vmatpush1.msra.mxu0 0.0
    %2185 = vmatprep.subr.mxu0 0.0
    %2186 = vmatpush1.msra.mxu0 0.0
    %2187 = vmatprep.subr.mxu0 0.0
    %2188 = vmatpush1.msra.mxu0 0.0
    %2189 = vmatprep.subr.mxu0 0.0
    %2190 = vmatpush1.msra.mxu0 0.0
    %2191 = vmatprep.subr.mxu0 0.0
    %2192 = vmatpush1.msra.mxu0 0.0
    %2193 = vmatprep.subr.mxu0 0.0
    %2194 = vmatpush1.msra.mxu0 0.0
    %2195 = vmatprep.subr.mxu0 0.0
    %2196 = vmatpush1.msra.mxu0 0.0
    %2197 = vmatprep.subr.mxu0 0.0
    %2198 = vmatpush1.msra.mxu0 0.0
    %2199 = vmatprep.subr.mxu0 0.0
    %2200 = vmatpush1.msra.mxu0 0.0
    %2201 = vmatprep.subr.mxu0 0.0
    %2202 = vmatpush1.msra.mxu0 0.0
    %2203 = vmatprep.subr.mxu0 0.0
    %2204 = vmatpush1.msra.mxu0 0.0
    %2205 = vmatprep.mubr.f32.mxu0 0.0
    %2206 = vmatmul.mubr.f32.gmra.mrb[0].mxu0 %v2061
    %v2207 = vpop.f32.mrb[0].mxu0
    %v2208 = vadd.f32 0.0, %v2207
    %v2209 = vpop.f32.mrb[0].mxu0
    %2210 = vmatprep.mubr.f32.mxu0 0.0
    %2211 = vmatmul.mubr.f32.gmra.mrb[0].mxu0 %v2064
    %v2212 = vpop.f32.mrb[0].mxu0
    %v2213 = vadd.f32 0.0, %v2212
    %v2214 = vpop.f32.mrb[0].mxu0
    %2215 = vdwg.mxu0
    %v2216 = vmax.f32 %v1975, %v2133
    %v2217 = vmax.f32 %v1980, %v2138
    %v2218 = vmax.f32 %v2050, %v2208
    %v2219 = vmax.f32 %v2055, %v2213
    %v2220 = vld [vmem:[%s3] sm:$0x1]
    %v2222 = vlaneseq
    %v2223 = vshrl.u32 %v2222, 7
    %v2224 = vsub.s32 0, %v2223
    %v2225 = vrot.slane %v2220, %v2224
    %v2227 = vadd.f32 %v2216, %v2225
    %v2228 = vadd.f32 %v2217, %v2225
    %v2229 = vadd.f32 %v2218, %v2225
    %v2230 = vadd.f32 %v2219, %v2225
    %v2231 = vtanh.pop %v2227
    %v2232 = vtanh.pop %v2228
    %v2233 = vtanh.pop %v2229
    %v2234 = vtanh.pop %v2230
    %vm2235 = vcmask 588800
    %2236 = vst.msk [vmem:[#allocation2] sm:$0xff] %vm2235, %v2231
    %vm2237 = vcmask 584704
    %2238 = vst.msk [vmem:[#allocation2 + $0x8] sm:$0xf] %vm2237, %v2232
    %2239 = vst.msk [vmem:[#allocation2 + $0x10] sm:$0xff] %vm2235, %v2233
    %2240 = vst.msk [vmem:[#allocation2 + $0x18] sm:$0xf] %vm2237, %v2234
    %v2241 = vld [vmem:[#allocation2] sm:$0xff]
    %v2242 = vld [vmem:[#allocation2 + $0x10] sm:$0xff]
    %v2243 = vld [vmem:[%s6] sm:$0xff]
    %v2244 = vld [vmem:[%s6 + $0x8] sm:$0xff]
    %v2245 = vld [vmem:[%s6 + $0x10] sm:$0xff]
    %v2246 = vld [vmem:[%s6 + $0x18] sm:$0xff]
    %v2247 = vld [vmem:[%s6 + $0x20] sm:$0xff]
    %v2248 = vld [vmem:[%s6 + $0x28] sm:$0xff]
    %v2249 = vld [vmem:[%s6 + $0x30] sm:$0xff]
    %v2250 = vld [vmem:[%s6 + $0x38] sm:$0xff]
    %v2251 = vld [vmem:[%s6 + $0x40] sm:$0xff]
    %v2252 = vld [vmem:[%s7] sm:$0xff]
    %v2253 = vld [vmem:[%s7 + $0x8] sm:$0xff]
    %v2254 = vld [vmem:[%s7 + $0x10] sm:$0xff]
    %v2255 = vld [vmem:[%s7 + $0x18] sm:$0xff]
    %v2256 = vld [vmem:[%s7 + $0x20] sm:$0xff]
    %v2257 = vld [vmem:[%s7 + $0x28] sm:$0xff]
    %v2258 = vld [vmem:[%s7 + $0x30] sm:$0xff]
    %v2259 = vld [vmem:[%s7 + $0x38] sm:$0xff]
    %v2260 = vld [vmem:[%s7 + $0x40] sm:$0xff]
    %v2261 = vld [vmem:[#allocation2 + $0x1] sm:$0xff]
    %v2262 = vld [vmem:[#allocation2 + $0x11] sm:$0xff]
    %s2263 = scalar_lea.vmem %s6, 72
    %v2264 = vld [vmem:[%s2263] sm:$0xff]
    %v2265 = vld [vmem:[%s2263 + $0x8] sm:$0xff]
    %v2266 = vld [vmem:[%s2263 + $0x10] sm:$0xff]
    %v2267 = vld [vmem:[%s2263 + $0x18] sm:$0xff]
    %v2268 = vld [vmem:[%s2263 + $0x20] sm:$0xff]
    %v2269 = vld [vmem:[%s2263 + $0x28] sm:$0xff]
    %v2270 = vld [vmem:[%s2263 + $0x30] sm:$0xff]
    %v2271 = vld [vmem:[%s2263 + $0x38] sm:$0xff]
    %v2272 = vld [vmem:[%s2263 + $0x40] sm:$0xff]
    %v2274 = vsel %vm2235, %v2261, 0
    %2276 = vmatprep.subr.mxu0 0.0
    %2277 = vmatpush1.msra.mxu0 %v2264
    %2278 = vmatprep.subr.mxu0 0.0
    %2279 = vmatpush1.msra.mxu0 %v2265
    %2280 = vmatprep.subr.mxu0 0.0
    %2281 = vmatpush1.msra.mxu0 %v2266
    %2282 = vmatprep.subr.mxu0 0.0
    %2283 = vmatpush1.msra.mxu0 %v2267
    %2284 = vmatprep.subr.mxu0 0.0
    %2285 = vmatpush1.msra.mxu0 %v2268
    %2286 = vmatprep.subr.mxu0 0.0
    %2287 = vmatpush1.msra.mxu0 %v2269
    %2288 = vmatprep.subr.mxu0 0.0
    %2289 = vmatpush1.msra.mxu0 %v2270
    %2290 = vmatprep.subr.mxu0 0.0
    %2291 = vmatpush1.msra.mxu0 %v2271
    %2292 = vmatprep.subr.mxu0 0.0
    %2293 = vmatpush1.msra.mxu0 %v2272
    %2294 = vmatprep.subr.mxu0 0.0
    %2295 = vmatpush1.msra.mxu0 0.0
    %2296 = vmatprep.subr.mxu0 0.0
    %2297 = vmatpush1.msra.mxu0 0.0
    %2298 = vmatprep.subr.mxu0 0.0
    %2299 = vmatpush1.msra.mxu0 0.0
    %2300 = vmatprep.subr.mxu0 0.0
    %2301 = vmatpush1.msra.mxu0 0.0
    %2302 = vmatprep.subr.mxu0 0.0
    %2303 = vmatpush1.msra.mxu0 0.0
    %2304 = vmatprep.subr.mxu0 0.0
    %2305 = vmatpush1.msra.mxu0 0.0
    %2306 = vmatprep.subr.mxu0 0.0
    %2307 = vmatpush1.msra.mxu0 0.0
    %2308 = vmatprep.subr.mxu0 0.0
    %2309 = vmatpush1.msra.mxu0 0.0
    %2310 = vmatprep.subr.mxu0 0.0
    %2311 = vmatpush1.msra.mxu0 0.0
    %2312 = vmatprep.subr.mxu0 0.0
    %2313 = vmatpush1.msra.mxu0 0.0
    %2314 = vmatprep.subr.mxu0 0.0
    %2315 = vmatpush1.msra.mxu0 0.0
    %2316 = vmatprep.subr.mxu0 0.0
    %2317 = vmatpush1.msra.mxu0 0.0
    %2318 = vmatprep.subr.mxu0 0.0
    %2319 = vmatpush1.msra.mxu0 0.0
    %2320 = vmatprep.subr.mxu0 0.0
    %2321 = vmatpush1.msra.mxu0 0.0
    %2322 = vmatprep.subr.mxu0 0.0
    %2323 = vmatpush1.msra.mxu0 0.0
    %2324 = vmatprep.subr.mxu0 0.0
    %2325 = vmatpush1.msra.mxu0 0.0
    %2326 = vmatprep.subr.mxu0 0.0
    %2327 = vmatpush1.msra.mxu0 0.0
    %2328 = vmatprep.subr.mxu0 0.0
    %2329 = vmatpush1.msra.mxu0 0.0
    %2330 = vmatprep.subr.mxu0 0.0
    %2331 = vmatpush1.msra.mxu0 0.0
    %2332 = vmatprep.subr.mxu0 0.0
    %2333 = vmatpush1.msra.mxu0 0.0
    %2334 = vmatprep.subr.mxu0 0.0
    %2335 = vmatpush1.msra.mxu0 0.0
    %2336 = vmatprep.subr.mxu0 0.0
    %2337 = vmatpush1.msra.mxu0 0.0
    %2338 = vmatprep.subr.mxu0 0.0
    %2339 = vmatpush1.msra.mxu0 0.0
    %2340 = vmatprep.mubr.f32.mxu0 0.0
    %2341 = vmatmul.mubr.f32.gmra.mrb[0].mxu0 %v2274
    %v2342 = vpop.f32.mrb[0].mxu0
    %v2343 = vadd.f32 0.0, %v2342
    %v2344 = vpop.f32.mrb[0].mxu0
    %2345 = vdwg.mxu0
    %v2347 = vsel %vm2235, %v2262, 0
    %2349 = vmatprep.subr.mxu0 0.0
    %2350 = vmatpush1.msra.mxu0 %v2264
    %2351 = vmatprep.subr.mxu0 0.0
    %2352 = vmatpush1.msra.mxu0 %v2265
    %2353 = vmatprep.subr.mxu0 0.0
    %2354 = vmatpush1.msra.mxu0 %v2266
    %2355 = vmatprep.subr.mxu0 0.0
    %2356 = vmatpush1.msra.mxu0 %v2267
    %2357 = vmatprep.subr.mxu0 0.0
    %2358 = vmatpush1.msra.mxu0 %v2268
    %2359 = vmatprep.subr.mxu0 0.0
    %2360 = vmatpush1.msra.mxu0 %v2269
    %2361 = vmatprep.subr.mxu0 0.0
    %2362 = vmatpush1.msra.mxu0 %v2270
    %2363 = vmatprep.subr.mxu0 0.0
    %2364 = vmatpush1.msra.mxu0 %v2271
    %2365 = vmatprep.subr.mxu0 0.0
    %2366 = vmatpush1.msra.mxu0 %v2272
    %2367 = vmatprep.subr.mxu0 0.0
    %2368 = vmatpush1.msra.mxu0 0.0
    %2369 = vmatprep.subr.mxu0 0.0
    %2370 = vmatpush1.msra.mxu0 0.0
    %2371 = vmatprep.subr.mxu0 0.0
    %2372 = vmatpush1.msra.mxu0 0.0
    %2373 = vmatprep.subr.mxu0 0.0
    %2374 = vmatpush1.msra.mxu0 0.0
    %2375 = vmatprep.subr.mxu0 0.0
    %2376 = vmatpush1.msra.mxu0 0.0
    %2377 = vmatprep.subr.mxu0 0.0
    %2378 = vmatpush1.msra.mxu0 0.0
    %2379 = vmatprep.subr.mxu0 0.0
    %2380 = vmatpush1.msra.mxu0 0.0
    %2381 = vmatprep.subr.mxu0 0.0
    %2382 = vmatpush1.msra.mxu0 0.0
    %2383 = vmatprep.subr.mxu0 0.0
    %2384 = vmatpush1.msra.mxu0 0.0
    %2385 = vmatprep.subr.mxu0 0.0
    %2386 = vmatpush1.msra.mxu0 0.0
    %2387 = vmatprep.subr.mxu0 0.0
    %2388 = vmatpush1.msra.mxu0 0.0
    %2389 = vmatprep.subr.mxu0 0.0
    %2390 = vmatpush1.msra.mxu0 0.0
    %2391 = vmatprep.subr.mxu0 0.0
    %2392 = vmatpush1.msra.mxu0 0.0
    %2393 = vmatprep.subr.mxu0 0.0
    %2394 = vmatpush1.msra.mxu0 0.0
    %2395 = vmatprep.subr.mxu0 0.0
    %2396 = vmatpush1.msra.mxu0 0.0
    %2397 = vmatprep.subr.mxu0 0.0
    %2398 = vmatpush1.msra.mxu0 0.0
    %2399 = vmatprep.subr.mxu0 0.0
    %2400 = vmatpush1.msra.mxu0 0.0
    %2401 = vmatprep.subr.mxu0 0.0
    %2402 = vmatpush1.msra.mxu0 0.0
    %2403 = vmatprep.subr.mxu0 0.0
    %2404 = vmatpush1.msra.mxu0 0.0
    %2405 = vmatprep.subr.mxu0 0.0
    %2406 = vmatpush1.msra.mxu0 0.0
    %2407 = vmatprep.subr.mxu0 0.0
    %2408 = vmatpush1.msra.mxu0 0.0
    %2409 = vmatprep.subr.mxu0 0.0
    %2410 = vmatpush1.msra.mxu0 0.0
    %2411 = vmatprep.subr.mxu0 0.0
    %2412 = vmatpush1.msra.mxu0 0.0
    %2413 = vmatprep.mubr.f32.mxu0 0.0
    %2414 = vmatmul.mubr.f32.gmra.mrb[0].mxu0 %v2347
    %v2415 = vpop.f32.mrb[0].mxu0
    %v2416 = vadd.f32 0.0, %v2415
    %v2417 = vpop.f32.mrb[0].mxu0
    %2418 = vdwg.mxu0
    %v2420 = vsel %vm2235, %v2241, 0
    %2422 = vmatprep.subr.mxu0 0.0
    %2423 = vmatpush1.msra.mxu0 %v2243
    %2424 = vmatprep.subr.mxu0 0.0
    %2425 = vmatpush1.msra.mxu0 %v2244
    %2426 = vmatprep.subr.mxu0 0.0
    %2427 = vmatpush1.msra.mxu0 %v2245
    %2428 = vmatprep.subr.mxu0 0.0
    %2429 = vmatpush1.msra.mxu0 %v2246
    %2430 = vmatprep.subr.mxu0 0.0
    %2431 = vmatpush1.msra.mxu0 %v2247
    %2432 = vmatprep.subr.mxu0 0.0
    %2433 = vmatpush1.msra.mxu0 %v2248
    %2434 = vmatprep.subr.mxu0 0.0
    %2435 = vmatpush1.msra.mxu0 %v2249
    %2436 = vmatprep.subr.mxu0 0.0
    %2437 = vmatpush1.msra.mxu0 %v2250
    %2438 = vmatprep.subr.mxu0 0.0
    %2439 = vmatpush1.msra.mxu0 %v2251
    %2440 = vmatprep.subr.mxu0 0.0
    %2441 = vmatpush1.msra.mxu0 0.0
    %2442 = vmatprep.subr.mxu0 0.0
    %2443 = vmatpush1.msra.mxu0 0.0
    %2444 = vmatprep.subr.mxu0 0.0
    %2445 = vmatpush1.msra.mxu0 0.0
    %2446 = vmatprep.subr.mxu0 0.0
    %2447 = vmatpush1.msra.mxu0 0.0
    %2448 = vmatprep.subr.mxu0 0.0
    %2449 = vmatpush1.msra.mxu0 0.0
    %2450 = vmatprep.subr.mxu0 0.0
    %2451 = vmatpush1.msra.mxu0 0.0
    %2452 = vmatprep.subr.mxu0 0.0
    %2453 = vmatpush1.msra.mxu0 0.0
    %2454 = vmatprep.subr.mxu0 0.0
    %2455 = vmatpush1.msra.mxu0 0.0
    %2456 = vmatprep.subr.mxu0 0.0
    %2457 = vmatpush1.msra.mxu0 0.0
    %2458 = vmatprep.subr.mxu0 0.0
    %2459 = vmatpush1.msra.mxu0 0.0
    %2460 = vmatprep.subr.mxu0 0.0
    %2461 = vmatpush1.msra.mxu0 0.0
    %2462 = vmatprep.subr.mxu0 0.0
    %2463 = vmatpush1.msra.mxu0 0.0
    %2464 = vmatprep.subr.mxu0 0.0
    %2465 = vmatpush1.msra.mxu0 0.0
    %2466 = vmatprep.subr.mxu0 0.0
    %2467 = vmatpush1.msra.mxu0 0.0
    %2468 = vmatprep.subr.mxu0 0.0
    %2469 = vmatpush1.msra.mxu0 0.0
    %2470 = vmatprep.subr.mxu0 0.0
    %2471 = vmatpush1.msra.mxu0 0.0
    %2472 = vmatprep.subr.mxu0 0.0
    %2473 = vmatpush1.msra.mxu0 0.0
    %2474 = vmatprep.subr.mxu0 0.0
    %2475 = vmatpush1.msra.mxu0 0.0
    %2476 = vmatprep.subr.mxu0 0.0
    %2477 = vmatpush1.msra.mxu0 0.0
    %2478 = vmatprep.subr.mxu0 0.0
    %2479 = vmatpush1.msra.mxu0 0.0
    %2480 = vmatprep.subr.mxu0 0.0
    %2481 = vmatpush1.msra.mxu0 0.0
    %2482 = vmatprep.subr.mxu0 0.0
    %2483 = vmatpush1.msra.mxu0 0.0
    %2484 = vmatprep.subr.mxu0 0.0
    %2485 = vmatpush1.msra.mxu0 0.0
    %2486 = vmatprep.mubr.f32.mxu0 0.0
    %2487 = vmatmul.mubr.f32.gmra.mrb[0].mxu0 %v2420
    %v2488 = vpop.f32.mrb[0].mxu0
    %v2489 = vadd.f32 %v2343, %v2488
    %v2490 = vpop.f32.mrb[0].mxu0
    %2491 = vdwg.mxu0
    %v2493 = vsel %vm2235, %v2242, 0
    %2495 = vmatprep.subr.mxu0 0.0
    %2496 = vmatpush1.msra.mxu0 %v2243
    %2497 = vmatprep.subr.mxu0 0.0
    %2498 = vmatpush1.msra.mxu0 %v2244
    %2499 = vmatprep.subr.mxu0 0.0
    %2500 = vmatpush1.msra.mxu0 %v2245
    %2501 = vmatprep.subr.mxu0 0.0
    %2502 = vmatpush1.msra.mxu0 %v2246
    %2503 = vmatprep.subr.mxu0 0.0
    %2504 = vmatpush1.msra.mxu0 %v2247
    %2505 = vmatprep.subr.mxu0 0.0
    %2506 = vmatpush1.msra.mxu0 %v2248
    %2507 = vmatprep.subr.mxu0 0.0
    %2508 = vmatpush1.msra.mxu0 %v2249
    %2509 = vmatprep.subr.mxu0 0.0
    %2510 = vmatpush1.msra.mxu0 %v2250
    %2511 = vmatprep.subr.mxu0 0.0
    %2512 = vmatpush1.msra.mxu0 %v2251
    %2513 = vmatprep.subr.mxu0 0.0
    %2514 = vmatpush1.msra.mxu0 0.0
    %2515 = vmatprep.subr.mxu0 0.0
    %2516 = vmatpush1.msra.mxu0 0.0
    %2517 = vmatprep.subr.mxu0 0.0
    %2518 = vmatpush1.msra.mxu0 0.0
    %2519 = vmatprep.subr.mxu0 0.0
    %2520 = vmatpush1.msra.mxu0 0.0
    %2521 = vmatprep.subr.mxu0 0.0
    %2522 = vmatpush1.msra.mxu0 0.0
    %2523 = vmatprep.subr.mxu0 0.0
    %2524 = vmatpush1.msra.mxu0 0.0
    %2525 = vmatprep.subr.mxu0 0.0
    %2526 = vmatpush1.msra.mxu0 0.0
    %2527 = vmatprep.subr.mxu0 0.0
    %2528 = vmatpush1.msra.mxu0 0.0
    %2529 = vmatprep.subr.mxu0 0.0
    %2530 = vmatpush1.msra.mxu0 0.0
    %2531 = vmatprep.subr.mxu0 0.0
    %2532 = vmatpush1.msra.mxu0 0.0
    %2533 = vmatprep.subr.mxu0 0.0
    %2534 = vmatpush1.msra.mxu0 0.0
    %2535 = vmatprep.subr.mxu0 0.0
    %2536 = vmatpush1.msra.mxu0 0.0
    %2537 = vmatprep.subr.mxu0 0.0
    %2538 = vmatpush1.msra.mxu0 0.0
    %2539 = vmatprep.subr.mxu0 0.0
    %2540 = vmatpush1.msra.mxu0 0.0
    %2541 = vmatprep.subr.mxu0 0.0
    %2542 = vmatpush1.msra.mxu0 0.0
    %2543 = vmatprep.subr.mxu0 0.0
    %2544 = vmatpush1.msra.mxu0 0.0
    %2545 = vmatprep.subr.mxu0 0.0
    %2546 = vmatpush1.msra.mxu0 0.0
    %2547 = vmatprep.subr.mxu0 0.0
    %2548 = vmatpush1.msra.mxu0 0.0
    %2549 = vmatprep.subr.mxu0 0.0
    %2550 = vmatpush1.msra.mxu0 0.0
    %2551 = vmatprep.subr.mxu0 0.0
    %2552 = vmatpush1.msra.mxu0 0.0
    %2553 = vmatprep.subr.mxu0 0.0
    %2554 = vmatpush1.msra.mxu0 0.0
    %2555 = vmatprep.subr.mxu0 0.0
    %2556 = vmatpush1.msra.mxu0 0.0
    %2557 = vmatprep.subr.mxu0 0.0
    %2558 = vmatpush1.msra.mxu0 0.0
    %2559 = vmatprep.mubr.f32.mxu0 0.0
    %2560 = vmatmul.mubr.f32.gmra.mrb[0].mxu0 %v2493
    %v2561 = vpop.f32.mrb[0].mxu0
    %v2562 = vadd.f32 %v2416, %v2561
    %v2563 = vpop.f32.mrb[0].mxu0
    %2564 = vdwg.mxu0
    %s2565 = scalar_lea.vmem %s7, 72
    %v2566 = vld [vmem:[%s2565] sm:$0xff]
    %v2567 = vld [vmem:[%s2565 + $0x8] sm:$0xff]
    %v2568 = vld [vmem:[%s2565 + $0x10] sm:$0xff]
    %v2569 = vld [vmem:[%s2565 + $0x18] sm:$0xff]
    %v2570 = vld [vmem:[%s2565 + $0x20] sm:$0xff]
    %v2571 = vld [vmem:[%s2565 + $0x28] sm:$0xff]
    %v2572 = vld [vmem:[%s2565 + $0x30] sm:$0xff]
    %v2573 = vld [vmem:[%s2565 + $0x38] sm:$0xff]
    %v2574 = vld [vmem:[%s2565 + $0x40] sm:$0xff]
    %2575 = vmatprep.subr.mxu0 0.0
    %2576 = vmatpush1.msra.mxu0 %v2566
    %2577 = vmatprep.subr.mxu0 0.0
    %2578 = vmatpush1.msra.mxu0 %v2567
    %2579 = vmatprep.subr.mxu0 0.0
    %2580 = vmatpush1.msra.mxu0 %v2568
    %2581 = vmatprep.subr.mxu0 0.0
    %2582 = vmatpush1.msra.mxu0 %v2569
    %2583 = vmatprep.subr.mxu0 0.0
    %2584 = vmatpush1.msra.mxu0 %v2570
    %2585 = vmatprep.subr.mxu0 0.0
    %2586 = vmatpush1.msra.mxu0 %v2571
    %2587 = vmatprep.subr.mxu0 0.0
    %2588 = vmatpush1.msra.mxu0 %v2572
    %2589 = vmatprep.subr.mxu0 0.0
    %2590 = vmatpush1.msra.mxu0 %v2573
    %2591 = vmatprep.subr.mxu0 0.0
    %2592 = vmatpush1.msra.mxu0 %v2574
    %2593 = vmatprep.subr.mxu0 0.0
    %2594 = vmatpush1.msra.mxu0 0.0
    %2595 = vmatprep.subr.mxu0 0.0
    %2596 = vmatpush1.msra.mxu0 0.0
    %2597 = vmatprep.subr.mxu0 0.0
    %2598 = vmatpush1.msra.mxu0 0.0
    %2599 = vmatprep.subr.mxu0 0.0
    %2600 = vmatpush1.msra.mxu0 0.0
    %2601 = vmatprep.subr.mxu0 0.0
    %2602 = vmatpush1.msra.mxu0 0.0
    %2603 = vmatprep.subr.mxu0 0.0
    %2604 = vmatpush1.msra.mxu0 0.0
    %2605 = vmatprep.subr.mxu0 0.0
    %2606 = vmatpush1.msra.mxu0 0.0
    %2607 = vmatprep.subr.mxu0 0.0
    %2608 = vmatpush1.msra.mxu0 0.0
    %2609 = vmatprep.subr.mxu0 0.0
    %2610 = vmatpush1.msra.mxu0 0.0
    %2611 = vmatprep.subr.mxu0 0.0
    %2612 = vmatpush1.msra.mxu0 0.0
    %2613 = vmatprep.subr.mxu0 0.0
    %2614 = vmatpush1.msra.mxu0 0.0
    %2615 = vmatprep.subr.mxu0 0.0
    %2616 = vmatpush1.msra.mxu0 0.0
    %2617 = vmatprep.subr.mxu0 0.0
    %2618 = vmatpush1.msra.mxu0 0.0
    %2619 = vmatprep.subr.mxu0 0.0
    %2620 = vmatpush1.msra.mxu0 0.0
    %2621 = vmatprep.subr.mxu0 0.0
    %2622 = vmatpush1.msra.mxu0 0.0
    %2623 = vmatprep.subr.mxu0 0.0
    %2624 = vmatpush1.msra.mxu0 0.0
    %2625 = vmatprep.subr.mxu0 0.0
    %2626 = vmatpush1.msra.mxu0 0.0
    %2627 = vmatprep.subr.mxu0 0.0
    %2628 = vmatpush1.msra.mxu0 0.0
    %2629 = vmatprep.subr.mxu0 0.0
    %2630 = vmatpush1.msra.mxu0 0.0
    %2631 = vmatprep.subr.mxu0 0.0
    %2632 = vmatpush1.msra.mxu0 0.0
    %2633 = vmatprep.subr.mxu0 0.0
    %2634 = vmatpush1.msra.mxu0 0.0
    %2635 = vmatprep.subr.mxu0 0.0
    %2636 = vmatpush1.msra.mxu0 0.0
    %2637 = vmatprep.subr.mxu0 0.0
    %2638 = vmatpush1.msra.mxu0 0.0
    %2639 = vmatprep.mubr.f32.mxu0 0.0
    %2640 = vmatmul.mubr.f32.gmra.mrb[0].mxu0 %v2274
    %v2641 = vpop.f32.mrb[0].mxu0
    %v2642 = vadd.f32 0.0, %v2641
    %v2643 = vpop.f32.mrb[0].mxu0
    %2644 = vdwg.mxu0
    %2645 = vmatprep.subr.mxu0 0.0
    %2646 = vmatpush1.msra.mxu0 %v2566
    %2647 = vmatprep.subr.mxu0 0.0
    %2648 = vmatpush1.msra.mxu0 %v2567
    %2649 = vmatprep.subr.mxu0 0.0
    %2650 = vmatpush1.msra.mxu0 %v2568
    %2651 = vmatprep.subr.mxu0 0.0
    %2652 = vmatpush1.msra.mxu0 %v2569
    %2653 = vmatprep.subr.mxu0 0.0
    %2654 = vmatpush1.msra.mxu0 %v2570
    %2655 = vmatprep.subr.mxu0 0.0
    %2656 = vmatpush1.msra.mxu0 %v2571
    %2657 = vmatprep.subr.mxu0 0.0
    %2658 = vmatpush1.msra.mxu0 %v2572
    %2659 = vmatprep.subr.mxu0 0.0
    %2660 = vmatpush1.msra.mxu0 %v2573
    %2661 = vmatprep.subr.mxu0 0.0
    %2662 = vmatpush1.msra.mxu0 %v2574
    %2663 = vmatprep.subr.mxu0 0.0
    %2664 = vmatpush1.msra.mxu0 0.0
    %2665 = vmatprep.subr.mxu0 0.0
    %2666 = vmatpush1.msra.mxu0 0.0
    %2667 = vmatprep.subr.mxu0 0.0
    %2668 = vmatpush1.msra.mxu0 0.0
    %2669 = vmatprep.subr.mxu0 0.0
    %2670 = vmatpush1.msra.mxu0 0.0
    %2671 = vmatprep.subr.mxu0 0.0
    %2672 = vmatpush1.msra.mxu0 0.0
    %2673 = vmatprep.subr.mxu0 0.0
    %2674 = vmatpush1.msra.mxu0 0.0
    %2675 = vmatprep.subr.mxu0 0.0
    %2676 = vmatpush1.msra.mxu0 0.0
    %2677 = vmatprep.subr.mxu0 0.0
    %2678 = vmatpush1.msra.mxu0 0.0
    %2679 = vmatprep.subr.mxu0 0.0
    %2680 = vmatpush1.msra.mxu0 0.0
    %2681 = vmatprep.subr.mxu0 0.0
    %2682 = vmatpush1.msra.mxu0 0.0
    %2683 = vmatprep.subr.mxu0 0.0
    %2684 = vmatpush1.msra.mxu0 0.0
    %2685 = vmatprep.subr.mxu0 0.0
    %2686 = vmatpush1.msra.mxu0 0.0
    %2687 = vmatprep.subr.mxu0 0.0
    %2688 = vmatpush1.msra.mxu0 0.0
    %2689 = vmatprep.subr.mxu0 0.0
    %2690 = vmatpush1.msra.mxu0 0.0
    %2691 = vmatprep.subr.mxu0 0.0
    %2692 = vmatpush1.msra.mxu0 0.0
    %2693 = vmatprep.subr.mxu0 0.0
    %2694 = vmatpush1.msra.mxu0 0.0
    %2695 = vmatprep.subr.mxu0 0.0
    %2696 = vmatpush1.msra.mxu0 0.0
    %2697 = vmatprep.subr.mxu0 0.0
    %2698 = vmatpush1.msra.mxu0 0.0
    %2699 = vmatprep.subr.mxu0 0.0
    %2700 = vmatpush1.msra.mxu0 0.0
    %2701 = vmatprep.subr.mxu0 0.0
    %2702 = vmatpush1.msra.mxu0 0.0
    %2703 = vmatprep.subr.mxu0 0.0
    %2704 = vmatpush1.msra.mxu0 0.0
    %2705 = vmatprep.subr.mxu0 0.0
    %2706 = vmatpush1.msra.mxu0 0.0
    %2707 = vmatprep.subr.mxu0 0.0
    %2708 = vmatpush1.msra.mxu0 0.0
    %2709 = vmatprep.mubr.f32.mxu0 0.0
    %2710 = vmatmul.mubr.f32.gmra.mrb[0].mxu0 %v2347
    %v2711 = vpop.f32.mrb[0].mxu0
    %v2712 = vadd.f32 0.0, %v2711
    %v2713 = vpop.f32.mrb[0].mxu0
    %2714 = vdwg.mxu0
    %2715 = vmatprep.subr.mxu0 0.0
    %2716 = vmatpush1.msra.mxu0 %v2252
    %2717 = vmatprep.subr.mxu0 0.0
    %2718 = vmatpush1.msra.mxu0 %v2253
    %2719 = vmatprep.subr.mxu0 0.0
    %2720 = vmatpush1.msra.mxu0 %v2254
    %2721 = vmatprep.subr.mxu0 0.0
    %2722 = vmatpush1.msra.mxu0 %v2255
    %2723 = vmatprep.subr.mxu0 0.0
    %2724 = vmatpush1.msra.mxu0 %v2256
    %2725 = vmatprep.subr.mxu0 0.0
    %2726 = vmatpush1.msra.mxu0 %v2257
    %2727 = vmatprep.subr.mxu0 0.0
    %2728 = vmatpush1.msra.mxu0 %v2258
    %2729 = vmatprep.subr.mxu0 0.0
    %2730 = vmatpush1.msra.mxu0 %v2259
    %2731 = vmatprep.subr.mxu0 0.0
    %2732 = vmatpush1.msra.mxu0 %v2260
    %2733 = vmatprep.subr.mxu0 0.0
    %2734 = vmatpush1.msra.mxu0 0.0
    %2735 = vmatprep.subr.mxu0 0.0
    %2736 = vmatpush1.msra.mxu0 0.0
    %2737 = vmatprep.subr.mxu0 0.0
    %2738 = vmatpush1.msra.mxu0 0.0
    %2739 = vmatprep.subr.mxu0 0.0
    %2740 = vmatpush1.msra.mxu0 0.0
    %2741 = vmatprep.subr.mxu0 0.0
    %2742 = vmatpush1.msra.mxu0 0.0
    %2743 = vmatprep.subr.mxu0 0.0
    %2744 = vmatpush1.msra.mxu0 0.0
    %2745 = vmatprep.subr.mxu0 0.0
    %2746 = vmatpush1.msra.mxu0 0.0
    %2747 = vmatprep.subr.mxu0 0.0
    %2748 = vmatpush1.msra.mxu0 0.0
    %2749 = vmatprep.subr.mxu0 0.0
    %2750 = vmatpush1.msra.mxu0 0.0
    %2751 = vmatprep.subr.mxu0 0.0
    %2752 = vmatpush1.msra.mxu0 0.0
    %2753 = vmatprep.subr.mxu0 0.0
    %2754 = vmatpush1.msra.mxu0 0.0
    %2755 = vmatprep.subr.mxu0 0.0
    %2756 = vmatpush1.msra.mxu0 0.0
    %2757 = vmatprep.subr.mxu0 0.0
    %2758 = vmatpush1.msra.mxu0 0.0
    %2759 = vmatprep.subr.mxu0 0.0
    %2760 = vmatpush1.msra.mxu0 0.0
    %2761 = vmatprep.subr.mxu0 0.0
    %2762 = vmatpush1.msra.mxu0 0.0
    %2763 = vmatprep.subr.mxu0 0.0
    %2764 = vmatpush1.msra.mxu0 0.0
    %2765 = vmatprep.subr.mxu0 0.0
    %2766 = vmatpush1.msra.mxu0 0.0
    %2767 = vmatprep.subr.mxu0 0.0
    %2768 = vmatpush1.msra.mxu0 0.0
    %2769 = vmatprep.subr.mxu0 0.0
    %2770 = vmatpush1.msra.mxu0 0.0
    %2771 = vmatprep.subr.mxu0 0.0
    %2772 = vmatpush1.msra.mxu0 0.0
    %2773 = vmatprep.subr.mxu0 0.0
    %2774 = vmatpush1.msra.mxu0 0.0
    %2775 = vmatprep.subr.mxu0 0.0
    %2776 = vmatpush1.msra.mxu0 0.0
    %2777 = vmatprep.subr.mxu0 0.0
    %2778 = vmatpush1.msra.mxu0 0.0
    %2779 = vmatprep.mubr.f32.mxu0 0.0
    %2780 = vmatmul.mubr.f32.gmra.mrb[0].mxu0 %v2420
    %v2781 = vpop.f32.mrb[0].mxu0
    %v2782 = vadd.f32 %v2642, %v2781
    %v2783 = vpop.f32.mrb[0].mxu0
    %2784 = vdwg.mxu0
    %2785 = vmatprep.subr.mxu0 0.0
    %2786 = vmatpush1.msra.mxu0 %v2252
    %2787 = vmatprep.subr.mxu0 0.0
    %2788 = vmatpush1.msra.mxu0 %v2253
    %2789 = vmatprep.subr.mxu0 0.0
    %2790 = vmatpush1.msra.mxu0 %v2254
    %2791 = vmatprep.subr.mxu0 0.0
    %2792 = vmatpush1.msra.mxu0 %v2255
    %2793 = vmatprep.subr.mxu0 0.0
    %2794 = vmatpush1.msra.mxu0 %v2256
    %2795 = vmatprep.subr.mxu0 0.0
    %2796 = vmatpush1.msra.mxu0 %v2257
    %2797 = vmatprep.subr.mxu0 0.0
    %2798 = vmatpush1.msra.mxu0 %v2258
    %2799 = vmatprep.subr.mxu0 0.0
    %2800 = vmatpush1.msra.mxu0 %v2259
    %2801 = vmatprep.subr.mxu0 0.0
    %2802 = vmatpush1.msra.mxu0 %v2260
    %2803 = vmatprep.subr.mxu0 0.0
    %2804 = vmatpush1.msra.mxu0 0.0
    %2805 = vmatprep.subr.mxu0 0.0
    %2806 = vmatpush1.msra.mxu0 0.0
    %2807 = vmatprep.subr.mxu0 0.0
    %2808 = vmatpush1.msra.mxu0 0.0
    %2809 = vmatprep.subr.mxu0 0.0
    %2810 = vmatpush1.msra.mxu0 0.0
    %2811 = vmatprep.subr.mxu0 0.0
    %2812 = vmatpush1.msra.mxu0 0.0
    %2813 = vmatprep.subr.mxu0 0.0
    %2814 = vmatpush1.msra.mxu0 0.0
    %2815 = vmatprep.subr.mxu0 0.0
    %2816 = vmatpush1.msra.mxu0 0.0
    %2817 = vmatprep.subr.mxu0 0.0
    %2818 = vmatpush1.msra.mxu0 0.0
    %2819 = vmatprep.subr.mxu0 0.0
    %2820 = vmatpush1.msra.mxu0 0.0
    %2821 = vmatprep.subr.mxu0 0.0
    %2822 = vmatpush1.msra.mxu0 0.0
    %2823 = vmatprep.subr.mxu0 0.0
    %2824 = vmatpush1.msra.mxu0 0.0
    %2825 = vmatprep.subr.mxu0 0.0
    %2826 = vmatpush1.msra.mxu0 0.0
    %2827 = vmatprep.subr.mxu0 0.0
    %2828 = vmatpush1.msra.mxu0 0.0
    %2829 = vmatprep.subr.mxu0 0.0
    %2830 = vmatpush1.msra.mxu0 0.0
    %2831 = vmatprep.subr.mxu0 0.0
    %2832 = vmatpush1.msra.mxu0 0.0
    %2833 = vmatprep.subr.mxu0 0.0
    %2834 = vmatpush1.msra.mxu0 0.0
    %2835 = vmatprep.subr.mxu0 0.0
    %2836 = vmatpush1.msra.mxu0 0.0
    %2837 = vmatprep.subr.mxu0 0.0
    %2838 = vmatpush1.msra.mxu0 0.0
    %2839 = vmatprep.subr.mxu0 0.0
    %2840 = vmatpush1.msra.mxu0 0.0
    %2841 = vmatprep.subr.mxu0 0.0
    %2842 = vmatpush1.msra.mxu0 0.0
    %2843 = vmatprep.subr.mxu0 0.0
    %2844 = vmatpush1.msra.mxu0 0.0
    %2845 = vmatprep.subr.mxu0 0.0
    %2846 = vmatpush1.msra.mxu0 0.0
    %2847 = vmatprep.subr.mxu0 0.0
    %2848 = vmatpush1.msra.mxu0 0.0
    %2849 = vmatprep.mubr.f32.mxu0 0.0
    %2850 = vmatmul.mubr.f32.gmra.mrb[0].mxu0 %v2493
    %v2851 = vpop.f32.mrb[0].mxu0
    %v2852 = vadd.f32 %v2712, %v2851
    %v2853 = vpop.f32.mrb[0].mxu0
    %2854 = vdwg.mxu0
    %v2855 = vld [vmem:[#allocation2 + $0x2] sm:$0xff]
    %v2856 = vld [vmem:[#allocation2 + $0x12] sm:$0xff]
    %s2857 = scalar_lea.vmem %s6, 144
    %v2858 = vld [vmem:[%s2857] sm:$0xff]
    %v2859 = vld [vmem:[%s2857 + $0x8] sm:$0xff]
    %v2860 = vld [vmem:[%s2857 + $0x10] sm:$0xff]
    %v2861 = vld [vmem:[%s2857 + $0x18] sm:$0xff]
    %v2862 = vld [vmem:[%s2857 + $0x20] sm:$0xff]
    %v2863 = vld [vmem:[%s2857 + $0x28] sm:$0xff]
    %v2864 = vld [vmem:[%s2857 + $0x30] sm:$0xff]
    %v2865 = vld [vmem:[%s2857 + $0x38] sm:$0xff]
    %v2866 = vld [vmem:[%s2857 + $0x40] sm:$0xff]
    %v2868 = vsel %vm2235, %v2855, 0
    %2870 = vmatprep.subr.mxu0 0.0
    %2871 = vmatpush1.msra.mxu0 %v2858
    %2872 = vmatprep.subr.mxu0 0.0
    %2873 = vmatpush1.msra.mxu0 %v2859
    %2874 = vmatprep.subr.mxu0 0.0
    %2875 = vmatpush1.msra.mxu0 %v2860
    %2876 = vmatprep.subr.mxu0 0.0
    %2877 = vmatpush1.msra.mxu0 %v2861
    %2878 = vmatprep.subr.mxu0 0.0
    %2879 = vmatpush1.msra.mxu0 %v2862
    %2880 = vmatprep.subr.mxu0 0.0
    %2881 = vmatpush1.msra.mxu0 %v2863
    %2882 = vmatprep.subr.mxu0 0.0
    %2883 = vmatpush1.msra.mxu0 %v2864
    %2884 = vmatprep.subr.mxu0 0.0
    %2885 = vmatpush1.msra.mxu0 %v2865
    %2886 = vmatprep.subr.mxu0 0.0
    %2887 = vmatpush1.msra.mxu0 %v2866
    %2888 = vmatprep.subr.mxu0 0.0
    %2889 = vmatpush1.msra.mxu0 0.0
    %2890 = vmatprep.subr.mxu0 0.0
    %2891 = vmatpush1.msra.mxu0 0.0
    %2892 = vmatprep.subr.mxu0 0.0
    %2893 = vmatpush1.msra.mxu0 0.0
    %2894 = vmatprep.subr.mxu0 0.0
    %2895 = vmatpush1.msra.mxu0 0.0
    %2896 = vmatprep.subr.mxu0 0.0
    %2897 = vmatpush1.msra.mxu0 0.0
    %2898 = vmatprep.subr.mxu0 0.0
    %2899 = vmatpush1.msra.mxu0 0.0
    %2900 = vmatprep.subr.mxu0 0.0
    %2901 = vmatpush1.msra.mxu0 0.0
    %2902 = vmatprep.subr.mxu0 0.0
    %2903 = vmatpush1.msra.mxu0 0.0
    %2904 = vmatprep.subr.mxu0 0.0
    %2905 = vmatpush1.msra.mxu0 0.0
    %2906 = vmatprep.subr.mxu0 0.0
    %2907 = vmatpush1.msra.mxu0 0.0
    %2908 = vmatprep.subr.mxu0 0.0
    %2909 = vmatpush1.msra.mxu0 0.0
    %2910 = vmatprep.subr.mxu0 0.0
    %2911 = vmatpush1.msra.mxu0 0.0
    %2912 = vmatprep.subr.mxu0 0.0
    %2913 = vmatpush1.msra.mxu0 0.0
    %2914 = vmatprep.subr.mxu0 0.0
    %2915 = vmatpush1.msra.mxu0 0.0
    %2916 = vmatprep.subr.mxu0 0.0
    %2917 = vmatpush1.msra.mxu0 0.0
    %2918 = vmatprep.subr.mxu0 0.0
    %2919 = vmatpush1.msra.mxu0 0.0
    %2920 = vmatprep.subr.mxu0 0.0
    %2921 = vmatpush1.msra.mxu0 0.0
    %2922 = vmatprep.subr.mxu0 0.0
    %2923 = vmatpush1.msra.mxu0 0.0
    %2924 = vmatprep.subr.mxu0 0.0
    %2925 = vmatpush1.msra.mxu0 0.0
    %2926 = vmatprep.subr.mxu0 0.0
    %2927 = vmatpush1.msra.mxu0 0.0
    %2928 = vmatprep.subr.mxu0 0.0
    %2929 = vmatpush1.msra.mxu0 0.0
    %2930 = vmatprep.subr.mxu0 0.0
    %2931 = vmatpush1.msra.mxu0 0.0
    %2932 = vmatprep.subr.mxu0 0.0
    %2933 = vmatpush1.msra.mxu0 0.0
    %2934 = vmatprep.mubr.f32.mxu0 0.0
    %2935 = vmatmul.mubr.f32.gmra.mrb[0].mxu0 %v2868
    %v2936 = vpop.f32.mrb[0].mxu0
    %v2937 = vadd.f32 0.0, %v2936
    %v2938 = vpop.f32.mrb[0].mxu0
    %2939 = vdwg.mxu0
    %v2941 = vsel %vm2235, %v2856, 0
    %2943 = vmatprep.subr.mxu0 0.0
    %2944 = vmatpush1.msra.mxu0 %v2858
    %2945 = vmatprep.subr.mxu0 0.0
    %2946 = vmatpush1.msra.mxu0 %v2859
    %2947 = vmatprep.subr.mxu0 0.0
    %2948 = vmatpush1.msra.mxu0 %v2860
    %2949 = vmatprep.subr.mxu0 0.0
    %2950 = vmatpush1.msra.mxu0 %v2861
    %2951 = vmatprep.subr.mxu0 0.0
    %2952 = vmatpush1.msra.mxu0 %v2862
    %2953 = vmatprep.subr.mxu0 0.0
    %2954 = vmatpush1.msra.mxu0 %v2863
    %2955 = vmatprep.subr.mxu0 0.0
    %2956 = vmatpush1.msra.mxu0 %v2864
    %2957 = vmatprep.subr.mxu0 0.0
    %2958 = vmatpush1.msra.mxu0 %v2865
    %2959 = vmatprep.subr.mxu0 0.0
    %2960 = vmatpush1.msra.mxu0 %v2866
    %2961 = vmatprep.subr.mxu0 0.0
    %2962 = vmatpush1.msra.mxu0 0.0
    %2963 = vmatprep.subr.mxu0 0.0
    %2964 = vmatpush1.msra.mxu0 0.0
    %2965 = vmatprep.subr.mxu0 0.0
    %2966 = vmatpush1.msra.mxu0 0.0
    %2967 = vmatprep.subr.mxu0 0.0
    %2968 = vmatpush1.msra.mxu0 0.0
    %2969 = vmatprep.subr.mxu0 0.0
    %2970 = vmatpush1.msra.mxu0 0.0
    %2971 = vmatprep.subr.mxu0 0.0
    %2972 = vmatpush1.msra.mxu0 0.0
    %2973 = vmatprep.subr.mxu0 0.0
    %2974 = vmatpush1.msra.mxu0 0.0
    %2975 = vmatprep.subr.mxu0 0.0
    %2976 = vmatpush1.msra.mxu0 0.0
    %2977 = vmatprep.subr.mxu0 0.0
    %2978 = vmatpush1.msra.mxu0 0.0
    %2979 = vmatprep.subr.mxu0 0.0
    %2980 = vmatpush1.msra.mxu0 0.0
    %2981 = vmatprep.subr.mxu0 0.0
    %2982 = vmatpush1.msra.mxu0 0.0
    %2983 = vmatprep.subr.mxu0 0.0
    %2984 = vmatpush1.msra.mxu0 0.0
    %2985 = vmatprep.subr.mxu0 0.0
    %2986 = vmatpush1.msra.mxu0 0.0
    %2987 = vmatprep.subr.mxu0 0.0
    %2988 = vmatpush1.msra.mxu0 0.0
    %2989 = vmatprep.subr.mxu0 0.0
    %2990 = vmatpush1.msra.mxu0 0.0
    %2991 = vmatprep.subr.mxu0 0.0
    %2992 = vmatpush1.msra.mxu0 0.0
    %2993 = vmatprep.subr.mxu0 0.0
    %2994 = vmatpush1.msra.mxu0 0.0
    %2995 = vmatprep.subr.mxu0 0.0
    %2996 = vmatpush1.msra.mxu0 0.0
    %2997 = vmatprep.subr.mxu0 0.0
    %2998 = vmatpush1.msra.mxu0 0.0
    %2999 = vmatprep.subr.mxu0 0.0
    %3000 = vmatpush1.msra.mxu0 0.0
    %3001 = vmatprep.subr.mxu0 0.0
    %3002 = vmatpush1.msra.mxu0 0.0
    %3003 = vmatprep.subr.mxu0 0.0
    %3004 = vmatpush1.msra.mxu0 0.0
    %3005 = vmatprep.subr.mxu0 0.0
    %3006 = vmatpush1.msra.mxu0 0.0
    %3007 = vmatprep.mubr.f32.mxu0 0.0
    %3008 = vmatmul.mubr.f32.gmra.mrb[0].mxu0 %v2941
    %v3009 = vpop.f32.mrb[0].mxu0
    %v3010 = vadd.f32 0.0, %v3009
    %v3011 = vpop.f32.mrb[0].mxu0
    %3012 = vdwg.mxu0
    %v3013 = vadd.f32 %v2489, %v2937
    %v3014 = vadd.f32 %v2562, %v3010
    %s3015 = scalar_lea.vmem %s7, 144
    %v3016 = vld [vmem:[%s3015] sm:$0xff]
    %v3017 = vld [vmem:[%s3015 + $0x8] sm:$0xff]
    %v3018 = vld [vmem:[%s3015 + $0x10] sm:$0xff]
    %v3019 = vld [vmem:[%s3015 + $0x18] sm:$0xff]
    %v3020 = vld [vmem:[%s3015 + $0x20] sm:$0xff]
    %v3021 = vld [vmem:[%s3015 + $0x28] sm:$0xff]
    %v3022 = vld [vmem:[%s3015 + $0x30] sm:$0xff]
    %v3023 = vld [vmem:[%s3015 + $0x38] sm:$0xff]
    %v3024 = vld [vmem:[%s3015 + $0x40] sm:$0xff]
    %3025 = vmatprep.subr.mxu0 0.0
    %3026 = vmatpush1.msra.mxu0 %v3016
    %3027 = vmatprep.subr.mxu0 0.0
    %3028 = vmatpush1.msra.mxu0 %v3017
    %3029 = vmatprep.subr.mxu0 0.0
    %3030 = vmatpush1.msra.mxu0 %v3018
    %3031 = vmatprep.subr.mxu0 0.0
    %3032 = vmatpush1.msra.mxu0 %v3019
    %3033 = vmatprep.subr.mxu0 0.0
    %3034 = vmatpush1.msra.mxu0 %v3020
    %3035 = vmatprep.subr.mxu0 0.0
    %3036 = vmatpush1.msra.mxu0 %v3021
    %3037 = vmatprep.subr.mxu0 0.0
    %3038 = vmatpush1.msra.mxu0 %v3022
    %3039 = vmatprep.subr.mxu0 0.0
    %3040 = vmatpush1.msra.mxu0 %v3023
    %3041 = vmatprep.subr.mxu0 0.0
    %3042 = vmatpush1.msra.mxu0 %v3024
    %3043 = vmatprep.subr.mxu0 0.0
    %3044 = vmatpush1.msra.mxu0 0.0
    %3045 = vmatprep.subr.mxu0 0.0
    %3046 = vmatpush1.msra.mxu0 0.0
    %3047 = vmatprep.subr.mxu0 0.0
    %3048 = vmatpush1.msra.mxu0 0.0
    %3049 = vmatprep.subr.mxu0 0.0
    %3050 = vmatpush1.msra.mxu0 0.0
    %3051 = vmatprep.subr.mxu0 0.0
    %3052 = vmatpush1.msra.mxu0 0.0
    %3053 = vmatprep.subr.mxu0 0.0
    %3054 = vmatpush1.msra.mxu0 0.0
    %3055 = vmatprep.subr.mxu0 0.0
    %3056 = vmatpush1.msra.mxu0 0.0
    %3057 = vmatprep.subr.mxu0 0.0
    %3058 = vmatpush1.msra.mxu0 0.0
    %3059 = vmatprep.subr.mxu0 0.0
    %3060 = vmatpush1.msra.mxu0 0.0
    %3061 = vmatprep.subr.mxu0 0.0
    %3062 = vmatpush1.msra.mxu0 0.0
    %3063 = vmatprep.subr.mxu0 0.0
    %3064 = vmatpush1.msra.mxu0 0.0
    %3065 = vmatprep.subr.mxu0 0.0
    %3066 = vmatpush1.msra.mxu0 0.0
    %3067 = vmatprep.subr.mxu0 0.0
    %3068 = vmatpush1.msra.mxu0 0.0
    %3069 = vmatprep.subr.mxu0 0.0
    %3070 = vmatpush1.msra.mxu0 0.0
    %3071 = vmatprep.subr.mxu0 0.0
    %3072 = vmatpush1.msra.mxu0 0.0
    %3073 = vmatprep.subr.mxu0 0.0
    %3074 = vmatpush1.msra.mxu0 0.0
    %3075 = vmatprep.subr.mxu0 0.0
    %3076 = vmatpush1.msra.mxu0 0.0
    %3077 = vmatprep.subr.mxu0 0.0
    %3078 = vmatpush1.msra.mxu0 0.0
    %3079 = vmatprep.subr.mxu0 0.0
    %3080 = vmatpush1.msra.mxu0 0.0
    %3081 = vmatprep.subr.mxu0 0.0
    %3082 = vmatpush1.msra.mxu0 0.0
    %3083 = vmatprep.subr.mxu0 0.0
    %3084 = vmatpush1.msra.mxu0 0.0
    %3085 = vmatprep.subr.mxu0 0.0
    %3086 = vmatpush1.msra.mxu0 0.0
    %3087 = vmatprep.subr.mxu0 0.0
    %3088 = vmatpush1.msra.mxu0 0.0
    %3089 = vmatprep.mubr.f32.mxu0 0.0
    %3090 = vmatmul.mubr.f32.gmra.mrb[0].mxu0 %v2868
    %v3091 = vpop.f32.mrb[0].mxu0
    %v3092 = vadd.f32 0.0, %v3091
    %v3093 = vpop.f32.mrb[0].mxu0
    %3094 = vdwg.mxu0
    %3095 = vmatprep.subr.mxu0 0.0
    %3096 = vmatpush1.msra.mxu0 %v3016
    %3097 = vmatprep.subr.mxu0 0.0
    %3098 = vmatpush1.msra.mxu0 %v3017
    %3099 = vmatprep.subr.mxu0 0.0
    %3100 = vmatpush1.msra.mxu0 %v3018
    %3101 = vmatprep.subr.mxu0 0.0
    %3102 = vmatpush1.msra.mxu0 %v3019
    %3103 = vmatprep.subr.mxu0 0.0
    %3104 = vmatpush1.msra.mxu0 %v3020
    %3105 = vmatprep.subr.mxu0 0.0
    %3106 = vmatpush1.msra.mxu0 %v3021
    %3107 = vmatprep.subr.mxu0 0.0
    %3108 = vmatpush1.msra.mxu0 %v3022
    %3109 = vmatprep.subr.mxu0 0.0
    %3110 = vmatpush1.msra.mxu0 %v3023
    %3111 = vmatprep.subr.mxu0 0.0
    %3112 = vmatpush1.msra.mxu0 %v3024
    %3113 = vmatprep.subr.mxu0 0.0
    %3114 = vmatpush1.msra.mxu0 0.0
    %3115 = vmatprep.subr.mxu0 0.0
    %3116 = vmatpush1.msra.mxu0 0.0
    %3117 = vmatprep.subr.mxu0 0.0
    %3118 = vmatpush1.msra.mxu0 0.0
    %3119 = vmatprep.subr.mxu0 0.0
    %3120 = vmatpush1.msra.mxu0 0.0
    %3121 = vmatprep.subr.mxu0 0.0
    %3122 = vmatpush1.msra.mxu0 0.0
    %3123 = vmatprep.subr.mxu0 0.0
    %3124 = vmatpush1.msra.mxu0 0.0
    %3125 = vmatprep.subr.mxu0 0.0
    %3126 = vmatpush1.msra.mxu0 0.0
    %3127 = vmatprep.subr.mxu0 0.0
    %3128 = vmatpush1.msra.mxu0 0.0
    %3129 = vmatprep.subr.mxu0 0.0
    %3130 = vmatpush1.msra.mxu0 0.0
    %3131 = vmatprep.subr.mxu0 0.0
    %3132 = vmatpush1.msra.mxu0 0.0
    %3133 = vmatprep.subr.mxu0 0.0
    %3134 = vmatpush1.msra.mxu0 0.0
    %3135 = vmatprep.subr.mxu0 0.0
    %3136 = vmatpush1.msra.mxu0 0.0
    %3137 = vmatprep.subr.mxu0 0.0
    %3138 = vmatpush1.msra.mxu0 0.0
    %3139 = vmatprep.subr.mxu0 0.0
    %3140 = vmatpush1.msra.mxu0 0.0
    %3141 = vmatprep.subr.mxu0 0.0
    %3142 = vmatpush1.msra.mxu0 0.0
    %3143 = vmatprep.subr.mxu0 0.0
    %3144 = vmatpush1.msra.mxu0 0.0
    %3145 = vmatprep.subr.mxu0 0.0
    %3146 = vmatpush1.msra.mxu0 0.0
    %3147 = vmatprep.subr.mxu0 0.0
    %3148 = vmatpush1.msra.mxu0 0.0
    %3149 = vmatprep.subr.mxu0 0.0
    %3150 = vmatpush1.msra.mxu0 0.0
    %3151 = vmatprep.subr.mxu0 0.0
    %3152 = vmatpush1.msra.mxu0 0.0
    %3153 = vmatprep.subr.mxu0 0.0
    %3154 = vmatpush1.msra.mxu0 0.0
    %3155 = vmatprep.subr.mxu0 0.0
    %3156 = vmatpush1.msra.mxu0 0.0
    %3157 = vmatprep.subr.mxu0 0.0
    %3158 = vmatpush1.msra.mxu0 0.0
    %3159 = vmatprep.mubr.f32.mxu0 0.0
    %3160 = vmatmul.mubr.f32.gmra.mrb[0].mxu0 %v2941
    %v3161 = vpop.f32.mrb[0].mxu0
    %v3162 = vadd.f32 0.0, %v3161
    %v3163 = vpop.f32.mrb[0].mxu0
    %3164 = vdwg.mxu0
    %v3165 = vadd.f32 %v2782, %v3092
    %v3166 = vadd.f32 %v2852, %v3162
    %v3167 = vld [vmem:[#allocation2 + $0x3] sm:$0xff]
    %v3168 = vld [vmem:[#allocation2 + $0x13] sm:$0xff]
    %s3169 = scalar_lea.vmem %s6, 216
    %v3170 = vld [vmem:[%s3169] sm:$0xff]
    %v3171 = vld [vmem:[%s3169 + $0x8] sm:$0xff]
    %v3172 = vld [vmem:[%s3169 + $0x10] sm:$0xff]
    %v3173 = vld [vmem:[%s3169 + $0x18] sm:$0xff]
    %v3174 = vld [vmem:[%s3169 + $0x20] sm:$0xff]
    %v3175 = vld [vmem:[%s3169 + $0x28] sm:$0xff]
    %v3176 = vld [vmem:[%s3169 + $0x30] sm:$0xff]
    %v3177 = vld [vmem:[%s3169 + $0x38] sm:$0xff]
    %v3178 = vld [vmem:[%s3169 + $0x40] sm:$0xff]
    %v3180 = vsel %vm2235, %v3167, 0
    %3182 = vmatprep.subr.mxu0 0.0
    %3183 = vmatpush1.msra.mxu0 %v3170
    %3184 = vmatprep.subr.mxu0 0.0
    %3185 = vmatpush1.msra.mxu0 %v3171
    %3186 = vmatprep.subr.mxu0 0.0
    %3187 = vmatpush1.msra.mxu0 %v3172
    %3188 = vmatprep.subr.mxu0 0.0
    %3189 = vmatpush1.msra.mxu0 %v3173
    %3190 = vmatprep.subr.mxu0 0.0
    %3191 = vmatpush1.msra.mxu0 %v3174
    %3192 = vmatprep.subr.mxu0 0.0
    %3193 = vmatpush1.msra.mxu0 %v3175
    %3194 = vmatprep.subr.mxu0 0.0
    %3195 = vmatpush1.msra.mxu0 %v3176
    %3196 = vmatprep.subr.mxu0 0.0
    %3197 = vmatpush1.msra.mxu0 %v3177
    %3198 = vmatprep.subr.mxu0 0.0
    %3199 = vmatpush1.msra.mxu0 %v3178
    %3200 = vmatprep.subr.mxu0 0.0
    %3201 = vmatpush1.msra.mxu0 0.0
    %3202 = vmatprep.subr.mxu0 0.0
    %3203 = vmatpush1.msra.mxu0 0.0
    %3204 = vmatprep.subr.mxu0 0.0
    %3205 = vmatpush1.msra.mxu0 0.0
    %3206 = vmatprep.subr.mxu0 0.0
    %3207 = vmatpush1.msra.mxu0 0.0
    %3208 = vmatprep.subr.mxu0 0.0
    %3209 = vmatpush1.msra.mxu0 0.0
    %3210 = vmatprep.subr.mxu0 0.0
    %3211 = vmatpush1.msra.mxu0 0.0
    %3212 = vmatprep.subr.mxu0 0.0
    %3213 = vmatpush1.msra.mxu0 0.0
    %3214 = vmatprep.subr.mxu0 0.0
    %3215 = vmatpush1.msra.mxu0 0.0
    %3216 = vmatprep.subr.mxu0 0.0
    %3217 = vmatpush1.msra.mxu0 0.0
    %3218 = vmatprep.subr.mxu0 0.0
    %3219 = vmatpush1.msra.mxu0 0.0
    %3220 = vmatprep.subr.mxu0 0.0
    %3221 = vmatpush1.msra.mxu0 0.0
    %3222 = vmatprep.subr.mxu0 0.0
    %3223 = vmatpush1.msra.mxu0 0.0
    %3224 = vmatprep.subr.mxu0 0.0
    %3225 = vmatpush1.msra.mxu0 0.0
    %3226 = vmatprep.subr.mxu0 0.0
    %3227 = vmatpush1.msra.mxu0 0.0
    %3228 = vmatprep.subr.mxu0 0.0
    %3229 = vmatpush1.msra.mxu0 0.0
    %3230 = vmatprep.subr.mxu0 0.0
    %3231 = vmatpush1.msra.mxu0 0.0
    %3232 = vmatprep.subr.mxu0 0.0
    %3233 = vmatpush1.msra.mxu0 0.0
    %3234 = vmatprep.subr.mxu0 0.0
    %3235 = vmatpush1.msra.mxu0 0.0
    %3236 = vmatprep.subr.mxu0 0.0
    %3237 = vmatpush1.msra.mxu0 0.0
    %3238 = vmatprep.subr.mxu0 0.0
    %3239 = vmatpush1.msra.mxu0 0.0
    %3240 = vmatprep.subr.mxu0 0.0
    %3241 = vmatpush1.msra.mxu0 0.0
    %3242 = vmatprep.subr.mxu0 0.0
    %3243 = vmatpush1.msra.mxu0 0.0
    %3244 = vmatprep.subr.mxu0 0.0
    %3245 = vmatpush1.msra.mxu0 0.0
    %3246 = vmatprep.mubr.f32.mxu0 0.0
    %3247 = vmatmul.mubr.f32.gmra.mrb[0].mxu0 %v3180
    %v3248 = vpop.f32.mrb[0].mxu0
    %v3249 = vadd.f32 0.0, %v3248
    %v3250 = vpop.f32.mrb[0].mxu0
    %3251 = vdwg.mxu0
    %v3253 = vsel %vm2235, %v3168, 0
    %3255 = vmatprep.subr.mxu0 0.0
    %3256 = vmatpush1.msra.mxu0 %v3170
    %3257 = vmatprep.subr.mxu0 0.0
    %3258 = vmatpush1.msra.mxu0 %v3171
    %3259 = vmatprep.subr.mxu0 0.0
    %3260 = vmatpush1.msra.mxu0 %v3172
    %3261 = vmatprep.subr.mxu0 0.0
    %3262 = vmatpush1.msra.mxu0 %v3173
    %3263 = vmatprep.subr.mxu0 0.0
    %3264 = vmatpush1.msra.mxu0 %v3174
    %3265 = vmatprep.subr.mxu0 0.0
    %3266 = vmatpush1.msra.mxu0 %v3175
    %3267 = vmatprep.subr.mxu0 0.0
    %3268 = vmatpush1.msra.mxu0 %v3176
    %3269 = vmatprep.subr.mxu0 0.0
    %3270 = vmatpush1.msra.mxu0 %v3177
    %3271 = vmatprep.subr.mxu0 0.0
    %3272 = vmatpush1.msra.mxu0 %v3178
    %3273 = vmatprep.subr.mxu0 0.0
    %3274 = vmatpush1.msra.mxu0 0.0
    %3275 = vmatprep.subr.mxu0 0.0
    %3276 = vmatpush1.msra.mxu0 0.0
    %3277 = vmatprep.subr.mxu0 0.0
    %3278 = vmatpush1.msra.mxu0 0.0
    %3279 = vmatprep.subr.mxu0 0.0
    %3280 = vmatpush1.msra.mxu0 0.0
    %3281 = vmatprep.subr.mxu0 0.0
    %3282 = vmatpush1.msra.mxu0 0.0
    %3283 = vmatprep.subr.mxu0 0.0
    %3284 = vmatpush1.msra.mxu0 0.0
    %3285 = vmatprep.subr.mxu0 0.0
    %3286 = vmatpush1.msra.mxu0 0.0
    %3287 = vmatprep.subr.mxu0 0.0
    %3288 = vmatpush1.msra.mxu0 0.0
    %3289 = vmatprep.subr.mxu0 0.0
    %3290 = vmatpush1.msra.mxu0 0.0
    %3291 = vmatprep.subr.mxu0 0.0
    %3292 = vmatpush1.msra.mxu0 0.0
    %3293 = vmatprep.subr.mxu0 0.0
    %3294 = vmatpush1.msra.mxu0 0.0
    %3295 = vmatprep.subr.mxu0 0.0
    %3296 = vmatpush1.msra.mxu0 0.0
    %3297 = vmatprep.subr.mxu0 0.0
    %3298 = vmatpush1.msra.mxu0 0.0
    %3299 = vmatprep.subr.mxu0 0.0
    %3300 = vmatpush1.msra.mxu0 0.0
    %3301 = vmatprep.subr.mxu0 0.0
    %3302 = vmatpush1.msra.mxu0 0.0
    %3303 = vmatprep.subr.mxu0 0.0
    %3304 = vmatpush1.msra.mxu0 0.0
    %3305 = vmatprep.subr.mxu0 0.0
    %3306 = vmatpush1.msra.mxu0 0.0
    %3307 = vmatprep.subr.mxu0 0.0
    %3308 = vmatpush1.msra.mxu0 0.0
    %3309 = vmatprep.subr.mxu0 0.0
    %3310 = vmatpush1.msra.mxu0 0.0
    %3311 = vmatprep.subr.mxu0 0.0
    %3312 = vmatpush1.msra.mxu0 0.0
    %3313 = vmatprep.subr.mxu0 0.0
    %3314 = vmatpush1.msra.mxu0 0.0
    %3315 = vmatprep.subr.mxu0 0.0
    %3316 = vmatpush1.msra.mxu0 0.0
    %3317 = vmatprep.subr.mxu0 0.0
    %3318 = vmatpush1.msra.mxu0 0.0
    %3319 = vmatprep.mubr.f32.mxu0 0.0
    %3320 = vmatmul.mubr.f32.gmra.mrb[0].mxu0 %v3253
    %v3321 = vpop.f32.mrb[0].mxu0
    %v3322 = vadd.f32 0.0, %v3321
    %v3323 = vpop.f32.mrb[0].mxu0
    %3324 = vdwg.mxu0
    %v3325 = vadd.f32 %v3013, %v3249
    %v3326 = vadd.f32 %v3014, %v3322
    %s3327 = scalar_lea.vmem %s7, 216
    %v3328 = vld [vmem:[%s3327] sm:$0xff]
    %v3329 = vld [vmem:[%s3327 + $0x8] sm:$0xff]
    %v3330 = vld [vmem:[%s3327 + $0x10] sm:$0xff]
    %v3331 = vld [vmem:[%s3327 + $0x18] sm:$0xff]
    %v3332 = vld [vmem:[%s3327 + $0x20] sm:$0xff]
    %v3333 = vld [vmem:[%s3327 + $0x28] sm:$0xff]
    %v3334 = vld [vmem:[%s3327 + $0x30] sm:$0xff]
    %v3335 = vld [vmem:[%s3327 + $0x38] sm:$0xff]
    %v3336 = vld [vmem:[%s3327 + $0x40] sm:$0xff]
    %3337 = vmatprep.subr.mxu0 0.0
    %3338 = vmatpush1.msra.mxu0 %v3328
    %3339 = vmatprep.subr.mxu0 0.0
    %3340 = vmatpush1.msra.mxu0 %v3329
    %3341 = vmatprep.subr.mxu0 0.0
    %3342 = vmatpush1.msra.mxu0 %v3330
    %3343 = vmatprep.subr.mxu0 0.0
    %3344 = vmatpush1.msra.mxu0 %v3331
    %3345 = vmatprep.subr.mxu0 0.0
    %3346 = vmatpush1.msra.mxu0 %v3332
    %3347 = vmatprep.subr.mxu0 0.0
    %3348 = vmatpush1.msra.mxu0 %v3333
    %3349 = vmatprep.subr.mxu0 0.0
    %3350 = vmatpush1.msra.mxu0 %v3334
    %3351 = vmatprep.subr.mxu0 0.0
    %3352 = vmatpush1.msra.mxu0 %v3335
    %3353 = vmatprep.subr.mxu0 0.0
    %3354 = vmatpush1.msra.mxu0 %v3336
    %3355 = vmatprep.subr.mxu0 0.0
    %3356 = vmatpush1.msra.mxu0 0.0
    %3357 = vmatprep.subr.mxu0 0.0
    %3358 = vmatpush1.msra.mxu0 0.0
    %3359 = vmatprep.subr.mxu0 0.0
    %3360 = vmatpush1.msra.mxu0 0.0
    %3361 = vmatprep.subr.mxu0 0.0
    %3362 = vmatpush1.msra.mxu0 0.0
    %3363 = vmatprep.subr.mxu0 0.0
    %3364 = vmatpush1.msra.mxu0 0.0
    %3365 = vmatprep.subr.mxu0 0.0
    %3366 = vmatpush1.msra.mxu0 0.0
    %3367 = vmatprep.subr.mxu0 0.0
    %3368 = vmatpush1.msra.mxu0 0.0
    %3369 = vmatprep.subr.mxu0 0.0
    %3370 = vmatpush1.msra.mxu0 0.0
    %3371 = vmatprep.subr.mxu0 0.0
    %3372 = vmatpush1.msra.mxu0 0.0
    %3373 = vmatprep.subr.mxu0 0.0
    %3374 = vmatpush1.msra.mxu0 0.0
    %3375 = vmatprep.subr.mxu0 0.0
    %3376 = vmatpush1.msra.mxu0 0.0
    %3377 = vmatprep.subr.mxu0 0.0
    %3378 = vmatpush1.msra.mxu0 0.0
    %3379 = vmatprep.subr.mxu0 0.0
    %3380 = vmatpush1.msra.mxu0 0.0
    %3381 = vmatprep.subr.mxu0 0.0
    %3382 = vmatpush1.msra.mxu0 0.0
    %3383 = vmatprep.subr.mxu0 0.0
    %3384 = vmatpush1.msra.mxu0 0.0
    %3385 = vmatprep.subr.mxu0 0.0
    %3386 = vmatpush1.msra.mxu0 0.0
    %3387 = vmatprep.subr.mxu0 0.0
    %3388 = vmatpush1.msra.mxu0 0.0
    %3389 = vmatprep.subr.mxu0 0.0
    %3390 = vmatpush1.msra.mxu0 0.0
    %3391 = vmatprep.subr.mxu0 0.0
    %3392 = vmatpush1.msra.mxu0 0.0
    %3393 = vmatprep.subr.mxu0 0.0
    %3394 = vmatpush1.msra.mxu0 0.0
    %3395 = vmatprep.subr.mxu0 0.0
    %3396 = vmatpush1.msra.mxu0 0.0
    %3397 = vmatprep.subr.mxu0 0.0
    %3398 = vmatpush1.msra.mxu0 0.0
    %3399 = vmatprep.subr.mxu0 0.0
    %3400 = vmatpush1.msra.mxu0 0.0
    %3401 = vmatprep.mubr.f32.mxu0 0.0
    %3402 = vmatmul.mubr.f32.gmra.mrb[0].mxu0 %v3180
    %v3403 = vpop.f32.mrb[0].mxu0
    %v3404 = vadd.f32 0.0, %v3403
    %v3405 = vpop.f32.mrb[0].mxu0
    %3406 = vdwg.mxu0
    %3407 = vmatprep.subr.mxu0 0.0
    %3408 = vmatpush1.msra.mxu0 %v3328
    %3409 = vmatprep.subr.mxu0 0.0
    %3410 = vmatpush1.msra.mxu0 %v3329
    %3411 = vmatprep.subr.mxu0 0.0
    %3412 = vmatpush1.msra.mxu0 %v3330
    %3413 = vmatprep.subr.mxu0 0.0
    %3414 = vmatpush1.msra.mxu0 %v3331
    %3415 = vmatprep.subr.mxu0 0.0
    %3416 = vmatpush1.msra.mxu0 %v3332
    %3417 = vmatprep.subr.mxu0 0.0
    %3418 = vmatpush1.msra.mxu0 %v3333
    %3419 = vmatprep.subr.mxu0 0.0
    %3420 = vmatpush1.msra.mxu0 %v3334
    %3421 = vmatprep.subr.mxu0 0.0
    %3422 = vmatpush1.msra.mxu0 %v3335
    %3423 = vmatprep.subr.mxu0 0.0
    %3424 = vmatpush1.msra.mxu0 %v3336
    %3425 = vmatprep.subr.mxu0 0.0
    %3426 = vmatpush1.msra.mxu0 0.0
    %3427 = vmatprep.subr.mxu0 0.0
    %3428 = vmatpush1.msra.mxu0 0.0
    %3429 = vmatprep.subr.mxu0 0.0
    %3430 = vmatpush1.msra.mxu0 0.0
    %3431 = vmatprep.subr.mxu0 0.0
    %3432 = vmatpush1.msra.mxu0 0.0
    %3433 = vmatprep.subr.mxu0 0.0
    %3434 = vmatpush1.msra.mxu0 0.0
    %3435 = vmatprep.subr.mxu0 0.0
    %3436 = vmatpush1.msra.mxu0 0.0
    %3437 = vmatprep.subr.mxu0 0.0
    %3438 = vmatpush1.msra.mxu0 0.0
    %3439 = vmatprep.subr.mxu0 0.0
    %3440 = vmatpush1.msra.mxu0 0.0
    %3441 = vmatprep.subr.mxu0 0.0
    %3442 = vmatpush1.msra.mxu0 0.0
    %3443 = vmatprep.subr.mxu0 0.0
    %3444 = vmatpush1.msra.mxu0 0.0
    %3445 = vmatprep.subr.mxu0 0.0
    %3446 = vmatpush1.msra.mxu0 0.0
    %3447 = vmatprep.subr.mxu0 0.0
    %3448 = vmatpush1.msra.mxu0 0.0
    %3449 = vmatprep.subr.mxu0 0.0
    %3450 = vmatpush1.msra.mxu0 0.0
    %3451 = vmatprep.subr.mxu0 0.0
    %3452 = vmatpush1.msra.mxu0 0.0
    %3453 = vmatprep.subr.mxu0 0.0
    %3454 = vmatpush1.msra.mxu0 0.0
    %3455 = vmatprep.subr.mxu0 0.0
    %3456 = vmatpush1.msra.mxu0 0.0
    %3457 = vmatprep.subr.mxu0 0.0
    %3458 = vmatpush1.msra.mxu0 0.0
    %3459 = vmatprep.subr.mxu0 0.0
    %3460 = vmatpush1.msra.mxu0 0.0
    %3461 = vmatprep.subr.mxu0 0.0
    %3462 = vmatpush1.msra.mxu0 0.0
    %3463 = vmatprep.subr.mxu0 0.0
    %3464 = vmatpush1.msra.mxu0 0.0
    %3465 = vmatprep.subr.mxu0 0.0
    %3466 = vmatpush1.msra.mxu0 0.0
    %3467 = vmatprep.subr.mxu0 0.0
    %3468 = vmatpush1.msra.mxu0 0.0
    %3469 = vmatprep.subr.mxu0 0.0
    %3470 = vmatpush1.msra.mxu0 0.0
    %3471 = vmatprep.mubr.f32.mxu0 0.0
    %3472 = vmatmul.mubr.f32.gmra.mrb[0].mxu0 %v3253
    %v3473 = vpop.f32.mrb[0].mxu0
    %v3474 = vadd.f32 0.0, %v3473
    %v3475 = vpop.f32.mrb[0].mxu0
    %3476 = vdwg.mxu0
    %v3477 = vadd.f32 %v3165, %v3404
    %v3478 = vadd.f32 %v3166, %v3474
    %v3479 = vld [vmem:[#allocation2 + $0x4] sm:$0xff]
    %v3480 = vld [vmem:[#allocation2 + $0x14] sm:$0xff]
    %s3481 = scalar_lea.vmem %s6, 288
    %v3482 = vld [vmem:[%s3481] sm:$0xff]
    %v3483 = vld [vmem:[%s3481 + $0x8] sm:$0xff]
    %v3484 = vld [vmem:[%s3481 + $0x10] sm:$0xff]
    %v3485 = vld [vmem:[%s3481 + $0x18] sm:$0xff]
    %v3486 = vld [vmem:[%s3481 + $0x20] sm:$0xff]
    %v3487 = vld [vmem:[%s3481 + $0x28] sm:$0xff]
    %v3488 = vld [vmem:[%s3481 + $0x30] sm:$0xff]
    %v3489 = vld [vmem:[%s3481 + $0x38] sm:$0xff]
    %v3490 = vld [vmem:[%s3481 + $0x40] sm:$0xff]
    %v3492 = vsel %vm2235, %v3479, 0
    %3494 = vmatprep.subr.mxu0 0.0
    %3495 = vmatpush1.msra.mxu0 %v3482
    %3496 = vmatprep.subr.mxu0 0.0
    %3497 = vmatpush1.msra.mxu0 %v3483
    %3498 = vmatprep.subr.mxu0 0.0
    %3499 = vmatpush1.msra.mxu0 %v3484
    %3500 = vmatprep.subr.mxu0 0.0
    %3501 = vmatpush1.msra.mxu0 %v3485
    %3502 = vmatprep.subr.mxu0 0.0
    %3503 = vmatpush1.msra.mxu0 %v3486
    %3504 = vmatprep.subr.mxu0 0.0
    %3505 = vmatpush1.msra.mxu0 %v3487
    %3506 = vmatprep.subr.mxu0 0.0
    %3507 = vmatpush1.msra.mxu0 %v3488
    %3508 = vmatprep.subr.mxu0 0.0
    %3509 = vmatpush1.msra.mxu0 %v3489
    %3510 = vmatprep.subr.mxu0 0.0
    %3511 = vmatpush1.msra.mxu0 %v3490
    %3512 = vmatprep.subr.mxu0 0.0
    %3513 = vmatpush1.msra.mxu0 0.0
    %3514 = vmatprep.subr.mxu0 0.0
    %3515 = vmatpush1.msra.mxu0 0.0
    %3516 = vmatprep.subr.mxu0 0.0
    %3517 = vmatpush1.msra.mxu0 0.0
    %3518 = vmatprep.subr.mxu0 0.0
    %3519 = vmatpush1.msra.mxu0 0.0
    %3520 = vmatprep.subr.mxu0 0.0
    %3521 = vmatpush1.msra.mxu0 0.0
    %3522 = vmatprep.subr.mxu0 0.0
    %3523 = vmatpush1.msra.mxu0 0.0
    %3524 = vmatprep.subr.mxu0 0.0
    %3525 = vmatpush1.msra.mxu0 0.0
    %3526 = vmatprep.subr.mxu0 0.0
    %3527 = vmatpush1.msra.mxu0 0.0
    %3528 = vmatprep.subr.mxu0 0.0
    %3529 = vmatpush1.msra.mxu0 0.0
    %3530 = vmatprep.subr.mxu0 0.0
    %3531 = vmatpush1.msra.mxu0 0.0
    %3532 = vmatprep.subr.mxu0 0.0
    %3533 = vmatpush1.msra.mxu0 0.0
    %3534 = vmatprep.subr.mxu0 0.0
    %3535 = vmatpush1.msra.mxu0 0.0
    %3536 = vmatprep.subr.mxu0 0.0
    %3537 = vmatpush1.msra.mxu0 0.0
    %3538 = vmatprep.subr.mxu0 0.0
    %3539 = vmatpush1.msra.mxu0 0.0
    %3540 = vmatprep.subr.mxu0 0.0
    %3541 = vmatpush1.msra.mxu0 0.0
    %3542 = vmatprep.subr.mxu0 0.0
    %3543 = vmatpush1.msra.mxu0 0.0
    %3544 = vmatprep.subr.mxu0 0.0
    %3545 = vmatpush1.msra.mxu0 0.0
    %3546 = vmatprep.subr.mxu0 0.0
    %3547 = vmatpush1.msra.mxu0 0.0
    %3548 = vmatprep.subr.mxu0 0.0
    %3549 = vmatpush1.msra.mxu0 0.0
    %3550 = vmatprep.subr.mxu0 0.0
    %3551 = vmatpush1.msra.mxu0 0.0
    %3552 = vmatprep.subr.mxu0 0.0
    %3553 = vmatpush1.msra.mxu0 0.0
    %3554 = vmatprep.subr.mxu0 0.0
    %3555 = vmatpush1.msra.mxu0 0.0
    %3556 = vmatprep.subr.mxu0 0.0
    %3557 = vmatpush1.msra.mxu0 0.0
    %3558 = vmatprep.mubr.f32.mxu0 0.0
    %3559 = vmatmul.mubr.f32.gmra.mrb[0].mxu0 %v3492
    %v3560 = vpop.f32.mrb[0].mxu0
    %v3561 = vadd.f32 0.0, %v3560
    %v3562 = vpop.f32.mrb[0].mxu0
    %3563 = vdwg.mxu0
    %v3565 = vsel %vm2235, %v3480, 0
    %3567 = vmatprep.subr.mxu0 0.0
    %3568 = vmatpush1.msra.mxu0 %v3482
    %3569 = vmatprep.subr.mxu0 0.0
    %3570 = vmatpush1.msra.mxu0 %v3483
    %3571 = vmatprep.subr.mxu0 0.0
    %3572 = vmatpush1.msra.mxu0 %v3484
    %3573 = vmatprep.subr.mxu0 0.0
    %3574 = vmatpush1.msra.mxu0 %v3485
    %3575 = vmatprep.subr.mxu0 0.0
    %3576 = vmatpush1.msra.mxu0 %v3486
    %3577 = vmatprep.subr.mxu0 0.0
    %3578 = vmatpush1.msra.mxu0 %v3487
    %3579 = vmatprep.subr.mxu0 0.0
    %3580 = vmatpush1.msra.mxu0 %v3488
    %3581 = vmatprep.subr.mxu0 0.0
    %3582 = vmatpush1.msra.mxu0 %v3489
    %3583 = vmatprep.subr.mxu0 0.0
    %3584 = vmatpush1.msra.mxu0 %v3490
    %3585 = vmatprep.subr.mxu0 0.0
    %3586 = vmatpush1.msra.mxu0 0.0
    %3587 = vmatprep.subr.mxu0 0.0
    %3588 = vmatpush1.msra.mxu0 0.0
    %3589 = vmatprep.subr.mxu0 0.0
    %3590 = vmatpush1.msra.mxu0 0.0
    %3591 = vmatprep.subr.mxu0 0.0
    %3592 = vmatpush1.msra.mxu0 0.0
    %3593 = vmatprep.subr.mxu0 0.0
    %3594 = vmatpush1.msra.mxu0 0.0
    %3595 = vmatprep.subr.mxu0 0.0
    %3596 = vmatpush1.msra.mxu0 0.0
    %3597 = vmatprep.subr.mxu0 0.0
    %3598 = vmatpush1.msra.mxu0 0.0
    %3599 = vmatprep.subr.mxu0 0.0
    %3600 = vmatpush1.msra.mxu0 0.0
    %3601 = vmatprep.subr.mxu0 0.0
    %3602 = vmatpush1.msra.mxu0 0.0
    %3603 = vmatprep.subr.mxu0 0.0
    %3604 = vmatpush1.msra.mxu0 0.0
    %3605 = vmatprep.subr.mxu0 0.0
    %3606 = vmatpush1.msra.mxu0 0.0
    %3607 = vmatprep.subr.mxu0 0.0
    %3608 = vmatpush1.msra.mxu0 0.0
    %3609 = vmatprep.subr.mxu0 0.0
    %3610 = vmatpush1.msra.mxu0 0.0
    %3611 = vmatprep.subr.mxu0 0.0
    %3612 = vmatpush1.msra.mxu0 0.0
    %3613 = vmatprep.subr.mxu0 0.0
    %3614 = vmatpush1.msra.mxu0 0.0
    %3615 = vmatprep.subr.mxu0 0.0
    %3616 = vmatpush1.msra.mxu0 0.0
    %3617 = vmatprep.subr.mxu0 0.0
    %3618 = vmatpush1.msra.mxu0 0.0
    %3619 = vmatprep.subr.mxu0 0.0
    %3620 = vmatpush1.msra.mxu0 0.0
    %3621 = vmatprep.subr.mxu0 0.0
    %3622 = vmatpush1.msra.mxu0 0.0
    %3623 = vmatprep.subr.mxu0 0.0
    %3624 = vmatpush1.msra.mxu0 0.0
    %3625 = vmatprep.subr.mxu0 0.0
    %3626 = vmatpush1.msra.mxu0 0.0
    %3627 = vmatprep.subr.mxu0 0.0
    %3628 = vmatpush1.msra.mxu0 0.0
    %3629 = vmatprep.subr.mxu0 0.0
    %3630 = vmatpush1.msra.mxu0 0.0
    %3631 = vmatprep.mubr.f32.mxu0 0.0
    %3632 = vmatmul.mubr.f32.gmra.mrb[0].mxu0 %v3565
    %v3633 = vpop.f32.mrb[0].mxu0
    %v3634 = vadd.f32 0.0, %v3633
    %v3635 = vpop.f32.mrb[0].mxu0
    %3636 = vdwg.mxu0
    %v3637 = vadd.f32 %v3325, %v3561
    %v3638 = vadd.f32 %v3326, %v3634
    %s3639 = scalar_lea.vmem %s7, 288
    %v3640 = vld [vmem:[%s3639] sm:$0xff]
    %v3641 = vld [vmem:[%s3639 + $0x8] sm:$0xff]
    %v3642 = vld [vmem:[%s3639 + $0x10] sm:$0xff]
    %v3643 = vld [vmem:[%s3639 + $0x18] sm:$0xff]
    %v3644 = vld [vmem:[%s3639 + $0x20] sm:$0xff]
    %v3645 = vld [vmem:[%s3639 + $0x28] sm:$0xff]
    %v3646 = vld [vmem:[%s3639 + $0x30] sm:$0xff]
    %v3647 = vld [vmem:[%s3639 + $0x38] sm:$0xff]
    %v3648 = vld [vmem:[%s3639 + $0x40] sm:$0xff]
    %3649 = vmatprep.subr.mxu0 0.0
    %3650 = vmatpush1.msra.mxu0 %v3640
    %3651 = vmatprep.subr.mxu0 0.0
    %3652 = vmatpush1.msra.mxu0 %v3641
    %3653 = vmatprep.subr.mxu0 0.0
    %3654 = vmatpush1.msra.mxu0 %v3642
    %3655 = vmatprep.subr.mxu0 0.0
    %3656 = vmatpush1.msra.mxu0 %v3643
    %3657 = vmatprep.subr.mxu0 0.0
    %3658 = vmatpush1.msra.mxu0 %v3644
    %3659 = vmatprep.subr.mxu0 0.0
    %3660 = vmatpush1.msra.mxu0 %v3645
    %3661 = vmatprep.subr.mxu0 0.0
    %3662 = vmatpush1.msra.mxu0 %v3646
    %3663 = vmatprep.subr.mxu0 0.0
    %3664 = vmatpush1.msra.mxu0 %v3647
    %3665 = vmatprep.subr.mxu0 0.0
    %3666 = vmatpush1.msra.mxu0 %v3648
    %3667 = vmatprep.subr.mxu0 0.0
    %3668 = vmatpush1.msra.mxu0 0.0
    %3669 = vmatprep.subr.mxu0 0.0
    %3670 = vmatpush1.msra.mxu0 0.0
    %3671 = vmatprep.subr.mxu0 0.0
    %3672 = vmatpush1.msra.mxu0 0.0
    %3673 = vmatprep.subr.mxu0 0.0
    %3674 = vmatpush1.msra.mxu0 0.0
    %3675 = vmatprep.subr.mxu0 0.0
    %3676 = vmatpush1.msra.mxu0 0.0
    %3677 = vmatprep.subr.mxu0 0.0
    %3678 = vmatpush1.msra.mxu0 0.0
    %3679 = vmatprep.subr.mxu0 0.0
    %3680 = vmatpush1.msra.mxu0 0.0
    %3681 = vmatprep.subr.mxu0 0.0
    %3682 = vmatpush1.msra.mxu0 0.0
    %3683 = vmatprep.subr.mxu0 0.0
    %3684 = vmatpush1.msra.mxu0 0.0
    %3685 = vmatprep.subr.mxu0 0.0
    %3686 = vmatpush1.msra.mxu0 0.0
    %3687 = vmatprep.subr.mxu0 0.0
    %3688 = vmatpush1.msra.mxu0 0.0
    %3689 = vmatprep.subr.mxu0 0.0
    %3690 = vmatpush1.msra.mxu0 0.0
    %3691 = vmatprep.subr.mxu0 0.0
    %3692 = vmatpush1.msra.mxu0 0.0
    %3693 = vmatprep.subr.mxu0 0.0
    %3694 = vmatpush1.msra.mxu0 0.0
    %3695 = vmatprep.subr.mxu0 0.0
    %3696 = vmatpush1.msra.mxu0 0.0
    %3697 = vmatprep.subr.mxu0 0.0
    %3698 = vmatpush1.msra.mxu0 0.0
    %3699 = vmatprep.subr.mxu0 0.0
    %3700 = vmatpush1.msra.mxu0 0.0
    %3701 = vmatprep.subr.mxu0 0.0
    %3702 = vmatpush1.msra.mxu0 0.0
    %3703 = vmatprep.subr.mxu0 0.0
    %3704 = vmatpush1.msra.mxu0 0.0
    %3705 = vmatprep.subr.mxu0 0.0
    %3706 = vmatpush1.msra.mxu0 0.0
    %3707 = vmatprep.subr.mxu0 0.0
    %3708 = vmatpush1.msra.mxu0 0.0
    %3709 = vmatprep.subr.mxu0 0.0
    %3710 = vmatpush1.msra.mxu0 0.0
    %3711 = vmatprep.subr.mxu0 0.0
    %3712 = vmatpush1.msra.mxu0 0.0
    %3713 = vmatprep.mubr.f32.mxu0 0.0
    %3714 = vmatmul.mubr.f32.gmra.mrb[0].mxu0 %v3492
    %v3715 = vpop.f32.mrb[0].mxu0
    %v3716 = vadd.f32 0.0, %v3715
    %v3717 = vpop.f32.mrb[0].mxu0
    %3718 = vdwg.mxu0
    %3719 = vmatprep.subr.mxu0 0.0
    %3720 = vmatpush1.msra.mxu0 %v3640
    %3721 = vmatprep.subr.mxu0 0.0
    %3722 = vmatpush1.msra.mxu0 %v3641
    %3723 = vmatprep.subr.mxu0 0.0
    %3724 = vmatpush1.msra.mxu0 %v3642
    %3725 = vmatprep.subr.mxu0 0.0
    %3726 = vmatpush1.msra.mxu0 %v3643
    %3727 = vmatprep.subr.mxu0 0.0
    %3728 = vmatpush1.msra.mxu0 %v3644
    %3729 = vmatprep.subr.mxu0 0.0
    %3730 = vmatpush1.msra.mxu0 %v3645
    %3731 = vmatprep.subr.mxu0 0.0
    %3732 = vmatpush1.msra.mxu0 %v3646
    %3733 = vmatprep.subr.mxu0 0.0
    %3734 = vmatpush1.msra.mxu0 %v3647
    %3735 = vmatprep.subr.mxu0 0.0
    %3736 = vmatpush1.msra.mxu0 %v3648
    %3737 = vmatprep.subr.mxu0 0.0
    %3738 = vmatpush1.msra.mxu0 0.0
    %3739 = vmatprep.subr.mxu0 0.0
    %3740 = vmatpush1.msra.mxu0 0.0
    %3741 = vmatprep.subr.mxu0 0.0
    %3742 = vmatpush1.msra.mxu0 0.0
    %3743 = vmatprep.subr.mxu0 0.0
    %3744 = vmatpush1.msra.mxu0 0.0
    %3745 = vmatprep.subr.mxu0 0.0
    %3746 = vmatpush1.msra.mxu0 0.0
    %3747 = vmatprep.subr.mxu0 0.0
    %3748 = vmatpush1.msra.mxu0 0.0
    %3749 = vmatprep.subr.mxu0 0.0
    %3750 = vmatpush1.msra.mxu0 0.0
    %3751 = vmatprep.subr.mxu0 0.0
    %3752 = vmatpush1.msra.mxu0 0.0
    %3753 = vmatprep.subr.mxu0 0.0
    %3754 = vmatpush1.msra.mxu0 0.0
    %3755 = vmatprep.subr.mxu0 0.0
    %3756 = vmatpush1.msra.mxu0 0.0
    %3757 = vmatprep.subr.mxu0 0.0
    %3758 = vmatpush1.msra.mxu0 0.0
    %3759 = vmatprep.subr.mxu0 0.0
    %3760 = vmatpush1.msra.mxu0 0.0
    %3761 = vmatprep.subr.mxu0 0.0
    %3762 = vmatpush1.msra.mxu0 0.0
    %3763 = vmatprep.subr.mxu0 0.0
    %3764 = vmatpush1.msra.mxu0 0.0
    %3765 = vmatprep.subr.mxu0 0.0
    %3766 = vmatpush1.msra.mxu0 0.0
    %3767 = vmatprep.subr.mxu0 0.0
    %3768 = vmatpush1.msra.mxu0 0.0
    %3769 = vmatprep.subr.mxu0 0.0
    %3770 = vmatpush1.msra.mxu0 0.0
    %3771 = vmatprep.subr.mxu0 0.0
    %3772 = vmatpush1.msra.mxu0 0.0
    %3773 = vmatprep.subr.mxu0 0.0
    %3774 = vmatpush1.msra.mxu0 0.0
    %3775 = vmatprep.subr.mxu0 0.0
    %3776 = vmatpush1.msra.mxu0 0.0
    %3777 = vmatprep.subr.mxu0 0.0
    %3778 = vmatpush1.msra.mxu0 0.0
    %3779 = vmatprep.subr.mxu0 0.0
    %3780 = vmatpush1.msra.mxu0 0.0
    %3781 = vmatprep.subr.mxu0 0.0
    %3782 = vmatpush1.msra.mxu0 0.0
    %3783 = vmatprep.mubr.f32.mxu0 0.0
    %3784 = vmatmul.mubr.f32.gmra.mrb[0].mxu0 %v3565
    %v3785 = vpop.f32.mrb[0].mxu0
    %v3786 = vadd.f32 0.0, %v3785
    %v3787 = vpop.f32.mrb[0].mxu0
    %3788 = vdwg.mxu0
    %v3789 = vadd.f32 %v3477, %v3716
    %v3790 = vadd.f32 %v3478, %v3786
    %v3791 = vmax.f32 %v3637, %v3789
    %v3792 = vmax.f32 %v3638, %v3790
    %v3793 = vld [vmem:[%s9] sm:$0xf]
    %vm3794 = vcmask 64512
    %v3796 = vsel %vm3794, %v3793, 0
    %3798 = vmatprep.subr.mxu0 0.0
    %3799 = vmatpush1.msra.mxu0 %v3791
    %3800 = vmatprep.subr.mxu0 0.0
    %3801 = vmatpush1.msra.mxu0 0.0
    %3802 = vmatprep.subr.mxu0 0.0
    %3803 = vmatpush1.msra.mxu0 0.0
    %3804 = vmatprep.subr.mxu0 0.0
    %3805 = vmatpush1.msra.mxu0 0.0
    %3806 = vmatprep.subr.mxu0 0.0
    %3807 = vmatpush1.msra.mxu0 0.0
    %3808 = vmatprep.subr.mxu0 0.0
    %3809 = vmatpush1.msra.mxu0 0.0
    %3810 = vmatprep.subr.mxu0 0.0
    %3811 = vmatpush1.msra.mxu0 0.0
    %3812 = vmatprep.subr.mxu0 0.0
    %3813 = vmatpush1.msra.mxu0 0.0
    %3814 = vmatprep.subr.mxu0 0.0
    %3815 = vmatpush1.msra.mxu0 0.0
    %3816 = vmatprep.subr.mxu0 0.0
    %3817 = vmatpush1.msra.mxu0 0.0
    %3818 = vmatprep.subr.mxu0 0.0
    %3819 = vmatpush1.msra.mxu0 0.0
    %3820 = vmatprep.subr.mxu0 0.0
    %3821 = vmatpush1.msra.mxu0 0.0
    %3822 = vmatprep.subr.mxu0 0.0
    %3823 = vmatpush1.msra.mxu0 0.0
    %3824 = vmatprep.subr.mxu0 0.0
    %3825 = vmatpush1.msra.mxu0 0.0
    %3826 = vmatprep.subr.mxu0 0.0
    %3827 = vmatpush1.msra.mxu0 0.0
    %3828 = vmatprep.subr.mxu0 0.0
    %3829 = vmatpush1.msra.mxu0 0.0
    %3830 = vmatprep.subr.mxu0 0.0
    %3831 = vmatpush1.msra.mxu0 0.0
    %3832 = vmatprep.subr.mxu0 0.0
    %3833 = vmatpush1.msra.mxu0 0.0
    %3834 = vmatprep.subr.mxu0 0.0
    %3835 = vmatpush1.msra.mxu0 0.0
    %3836 = vmatprep.subr.mxu0 0.0
    %3837 = vmatpush1.msra.mxu0 0.0
    %3838 = vmatprep.subr.mxu0 0.0
    %3839 = vmatpush1.msra.mxu0 0.0
    %3840 = vmatprep.subr.mxu0 0.0
    %3841 = vmatpush1.msra.mxu0 0.0
    %3842 = vmatprep.subr.mxu0 0.0
    %3843 = vmatpush1.msra.mxu0 0.0
    %3844 = vmatprep.subr.mxu0 0.0
    %3845 = vmatpush1.msra.mxu0 0.0
    %3846 = vmatprep.subr.mxu0 0.0
    %3847 = vmatpush1.msra.mxu0 0.0
    %3848 = vmatprep.subr.mxu0 0.0
    %3849 = vmatpush1.msra.mxu0 0.0
    %3850 = vmatprep.subr.mxu0 0.0
    %3851 = vmatpush1.msra.mxu0 0.0
    %3852 = vmatprep.subr.mxu0 0.0
    %3853 = vmatpush1.msra.mxu0 0.0
    %3854 = vmatprep.subr.mxu0 0.0
    %3855 = vmatpush1.msra.mxu0 0.0
    %3856 = vmatprep.subr.mxu0 0.0
    %3857 = vmatpush1.msra.mxu0 0.0
    %3858 = vmatprep.subr.mxu0 0.0
    %3859 = vmatpush1.msra.mxu0 0.0
    %3860 = vmatprep.subr.mxu0 0.0
    %3861 = vmatpush1.msra.mxu0 0.0
    %3862 = vmatprep.mubr.f32.mxu0 0.0
    %3863 = vmatmul.mubr.f32.gmra.mrb[0].mxu0 %v3796
    %v3864 = vpop.f32.mrb[0].mxu0
    %v3865 = vadd.f32 0.0, %v3864
    %v3866 = vpop.f32.mrb[0].mxu0
    %3867 = vdwg.mxu0
    %3868 = vmatprep.subr.mxu0 0.0
    %3869 = vmatpush1.msra.mxu0 %v3792
    %3870 = vmatprep.subr.mxu0 0.0
    %3871 = vmatpush1.msra.mxu0 0.0
    %3872 = vmatprep.subr.mxu0 0.0
    %3873 = vmatpush1.msra.mxu0 0.0
    %3874 = vmatprep.subr.mxu0 0.0
    %3875 = vmatpush1.msra.mxu0 0.0
    %3876 = vmatprep.subr.mxu0 0.0
    %3877 = vmatpush1.msra.mxu0 0.0
    %3878 = vmatprep.subr.mxu0 0.0
    %3879 = vmatpush1.msra.mxu0 0.0
    %3880 = vmatprep.subr.mxu0 0.0
    %3881 = vmatpush1.msra.mxu0 0.0
    %3882 = vmatprep.subr.mxu0 0.0
    %3883 = vmatpush1.msra.mxu0 0.0
    %3884 = vmatprep.subr.mxu0 0.0
    %3885 = vmatpush1.msra.mxu0 0.0
    %3886 = vmatprep.subr.mxu0 0.0
    %3887 = vmatpush1.msra.mxu0 0.0
    %3888 = vmatprep.subr.mxu0 0.0
    %3889 = vmatpush1.msra.mxu0 0.0
    %3890 = vmatprep.subr.mxu0 0.0
    %3891 = vmatpush1.msra.mxu0 0.0
    %3892 = vmatprep.subr.mxu0 0.0
    %3893 = vmatpush1.msra.mxu0 0.0
    %3894 = vmatprep.subr.mxu0 0.0
    %3895 = vmatpush1.msra.mxu0 0.0
    %3896 = vmatprep.subr.mxu0 0.0
    %3897 = vmatpush1.msra.mxu0 0.0
    %3898 = vmatprep.subr.mxu0 0.0
    %3899 = vmatpush1.msra.mxu0 0.0
    %3900 = vmatprep.subr.mxu0 0.0
    %3901 = vmatpush1.msra.mxu0 0.0
    %3902 = vmatprep.subr.mxu0 0.0
    %3903 = vmatpush1.msra.mxu0 0.0
    %3904 = vmatprep.subr.mxu0 0.0
    %3905 = vmatpush1.msra.mxu0 0.0
    %3906 = vmatprep.subr.mxu0 0.0
    %3907 = vmatpush1.msra.mxu0 0.0
    %3908 = vmatprep.subr.mxu0 0.0
    %3909 = vmatpush1.msra.mxu0 0.0
    %3910 = vmatprep.subr.mxu0 0.0
    %3911 = vmatpush1.msra.mxu0 0.0
    %3912 = vmatprep.subr.mxu0 0.0
    %3913 = vmatpush1.msra.mxu0 0.0
    %3914 = vmatprep.subr.mxu0 0.0
    %3915 = vmatpush1.msra.mxu0 0.0
    %3916 = vmatprep.subr.mxu0 0.0
    %3917 = vmatpush1.msra.mxu0 0.0
    %3918 = vmatprep.subr.mxu0 0.0
    %3919 = vmatpush1.msra.mxu0 0.0
    %3920 = vmatprep.subr.mxu0 0.0
    %3921 = vmatpush1.msra.mxu0 0.0
    %3922 = vmatprep.subr.mxu0 0.0
    %3923 = vmatpush1.msra.mxu0 0.0
    %3924 = vmatprep.subr.mxu0 0.0
    %3925 = vmatpush1.msra.mxu0 0.0
    %3926 = vmatprep.subr.mxu0 0.0
    %3927 = vmatpush1.msra.mxu0 0.0
    %3928 = vmatprep.subr.mxu0 0.0
    %3929 = vmatpush1.msra.mxu0 0.0
    %3930 = vmatprep.subr.mxu0 0.0
    %3931 = vmatpush1.msra.mxu0 0.0
    %3932 = vmatprep.mubr.f32.mxu0 0.0
    %3933 = vmatmul.mubr.f32.gmra.mrb[0].mxu0 %v3796
    %v3934 = vpop.f32.mrb[0].mxu0
    %v3935 = vadd.f32 0.0, %v3934
    %v3936 = vpop.f32.mrb[0].mxu0
    %3937 = vdwg.mxu0
    %v3938 = vld [vmem:[%s10] sm:$0xf]
    %v3940 = vsel %vm3794, %v3938, 0
    %3942 = vmatprep.subr.mxu0 0.0
    %3943 = vmatpush1.msra.mxu0 %v3791
    %3944 = vmatprep.subr.mxu0 0.0
    %3945 = vmatpush1.msra.mxu0 0.0
    %3946 = vmatprep.subr.mxu0 0.0
    %3947 = vmatpush1.msra.mxu0 0.0
    %3948 = vmatprep.subr.mxu0 0.0
    %3949 = vmatpush1.msra.mxu0 0.0
    %3950 = vmatprep.subr.mxu0 0.0
    %3951 = vmatpush1.msra.mxu0 0.0
    %3952 = vmatprep.subr.mxu0 0.0
    %3953 = vmatpush1.msra.mxu0 0.0
    %3954 = vmatprep.subr.mxu0 0.0
    %3955 = vmatpush1.msra.mxu0 0.0
    %3956 = vmatprep.subr.mxu0 0.0
    %3957 = vmatpush1.msra.mxu0 0.0
    %3958 = vmatprep.subr.mxu0 0.0
    %3959 = vmatpush1.msra.mxu0 0.0
    %3960 = vmatprep.subr.mxu0 0.0
    %3961 = vmatpush1.msra.mxu0 0.0
    %3962 = vmatprep.subr.mxu0 0.0
    %3963 = vmatpush1.msra.mxu0 0.0
    %3964 = vmatprep.subr.mxu0 0.0
    %3965 = vmatpush1.msra.mxu0 0.0
    %3966 = vmatprep.subr.mxu0 0.0
    %3967 = vmatpush1.msra.mxu0 0.0
    %3968 = vmatprep.subr.mxu0 0.0
    %3969 = vmatpush1.msra.mxu0 0.0
    %3970 = vmatprep.subr.mxu0 0.0
    %3971 = vmatpush1.msra.mxu0 0.0
    %3972 = vmatprep.subr.mxu0 0.0
    %3973 = vmatpush1.msra.mxu0 0.0
    %3974 = vmatprep.subr.mxu0 0.0
    %3975 = vmatpush1.msra.mxu0 0.0
    %3976 = vmatprep.subr.mxu0 0.0
    %3977 = vmatpush1.msra.mxu0 0.0
    %3978 = vmatprep.subr.mxu0 0.0
    %3979 = vmatpush1.msra.mxu0 0.0
    %3980 = vmatprep.subr.mxu0 0.0
    %3981 = vmatpush1.msra.mxu0 0.0
    %3982 = vmatprep.subr.mxu0 0.0
    %3983 = vmatpush1.msra.mxu0 0.0
    %3984 = vmatprep.subr.mxu0 0.0
    %3985 = vmatpush1.msra.mxu0 0.0
    %3986 = vmatprep.subr.mxu0 0.0
    %3987 = vmatpush1.msra.mxu0 0.0
    %3988 = vmatprep.subr.mxu0 0.0
    %3989 = vmatpush1.msra.mxu0 0.0
    %3990 = vmatprep.subr.mxu0 0.0
    %3991 = vmatpush1.msra.mxu0 0.0
    %3992 = vmatprep.subr.mxu0 0.0
    %3993 = vmatpush1.msra.mxu0 0.0
    %3994 = vmatprep.subr.mxu0 0.0
    %3995 = vmatpush1.msra.mxu0 0.0
    %3996 = vmatprep.subr.mxu0 0.0
    %3997 = vmatpush1.msra.mxu0 0.0
    %3998 = vmatprep.subr.mxu0 0.0
    %3999 = vmatpush1.msra.mxu0 0.0
    %4000 = vmatprep.subr.mxu0 0.0
    %4001 = vmatpush1.msra.mxu0 0.0
    %4002 = vmatprep.subr.mxu0 0.0
    %4003 = vmatpush1.msra.mxu0 0.0
    %4004 = vmatprep.subr.mxu0 0.0
    %4005 = vmatpush1.msra.mxu0 0.0
    %4006 = vmatprep.mubr.f32.mxu0 0.0
    %4007 = vmatmul.mubr.f32.gmra.mrb[0].mxu0 %v3940
    %v4008 = vpop.f32.mrb[0].mxu0
    %v4009 = vadd.f32 0.0, %v4008
    %v4010 = vpop.f32.mrb[0].mxu0
    %4011 = vdwg.mxu0
    %4012 = vmatprep.subr.mxu0 0.0
    %4013 = vmatpush1.msra.mxu0 %v3792
    %4014 = vmatprep.subr.mxu0 0.0
    %4015 = vmatpush1.msra.mxu0 0.0
    %4016 = vmatprep.subr.mxu0 0.0
    %4017 = vmatpush1.msra.mxu0 0.0
    %4018 = vmatprep.subr.mxu0 0.0
    %4019 = vmatpush1.msra.mxu0 0.0
    %4020 = vmatprep.subr.mxu0 0.0
    %4021 = vmatpush1.msra.mxu0 0.0
    %4022 = vmatprep.subr.mxu0 0.0
    %4023 = vmatpush1.msra.mxu0 0.0
    %4024 = vmatprep.subr.mxu0 0.0
    %4025 = vmatpush1.msra.mxu0 0.0
    %4026 = vmatprep.subr.mxu0 0.0
    %4027 = vmatpush1.msra.mxu0 0.0
    %4028 = vmatprep.subr.mxu0 0.0
    %4029 = vmatpush1.msra.mxu0 0.0
    %4030 = vmatprep.subr.mxu0 0.0
    %4031 = vmatpush1.msra.mxu0 0.0
    %4032 = vmatprep.subr.mxu0 0.0
    %4033 = vmatpush1.msra.mxu0 0.0
    %4034 = vmatprep.subr.mxu0 0.0
    %4035 = vmatpush1.msra.mxu0 0.0
    %4036 = vmatprep.subr.mxu0 0.0
    %4037 = vmatpush1.msra.mxu0 0.0
    %4038 = vmatprep.subr.mxu0 0.0
    %4039 = vmatpush1.msra.mxu0 0.0
    %4040 = vmatprep.subr.mxu0 0.0
    %4041 = vmatpush1.msra.mxu0 0.0
    %4042 = vmatprep.subr.mxu0 0.0
    %4043 = vmatpush1.msra.mxu0 0.0
    %4044 = vmatprep.subr.mxu0 0.0
    %4045 = vmatpush1.msra.mxu0 0.0
    %4046 = vmatprep.subr.mxu0 0.0
    %4047 = vmatpush1.msra.mxu0 0.0
    %4048 = vmatprep.subr.mxu0 0.0
    %4049 = vmatpush1.msra.mxu0 0.0
    %4050 = vmatprep.subr.mxu0 0.0
    %4051 = vmatpush1.msra.mxu0 0.0
    %4052 = vmatprep.subr.mxu0 0.0
    %4053 = vmatpush1.msra.mxu0 0.0
    %4054 = vmatprep.subr.mxu0 0.0
    %4055 = vmatpush1.msra.mxu0 0.0
    %4056 = vmatprep.subr.mxu0 0.0
    %4057 = vmatpush1.msra.mxu0 0.0
    %4058 = vmatprep.subr.mxu0 0.0
    %4059 = vmatpush1.msra.mxu0 0.0
    %4060 = vmatprep.subr.mxu0 0.0
    %4061 = vmatpush1.msra.mxu0 0.0
    %4062 = vmatprep.subr.mxu0 0.0
    %4063 = vmatpush1.msra.mxu0 0.0
    %4064 = vmatprep.subr.mxu0 0.0
    %4065 = vmatpush1.msra.mxu0 0.0
    %4066 = vmatprep.subr.mxu0 0.0
    %4067 = vmatpush1.msra.mxu0 0.0
    %4068 = vmatprep.subr.mxu0 0.0
    %4069 = vmatpush1.msra.mxu0 0.0
    %4070 = vmatprep.subr.mxu0 0.0
    %4071 = vmatpush1.msra.mxu0 0.0
    %4072 = vmatprep.subr.mxu0 0.0
    %4073 = vmatpush1.msra.mxu0 0.0
    %4074 = vmatprep.subr.mxu0 0.0
    %4075 = vmatpush1.msra.mxu0 0.0
    %4076 = vmatprep.mubr.f32.mxu0 0.0
    %4077 = vmatmul.mubr.f32.gmra.mrb[0].mxu0 %v3940
    %v4078 = vpop.f32.mrb[0].mxu0
    %v4079 = vadd.f32 0.0, %v4078
    %v4080 = vpop.f32.mrb[0].mxu0
    %4081 = vdwg.mxu0
    %v4082 = vmax.f32 %v3865, %v4009
    %v4083 = vmax.f32 %v3935, %v4079
    %v4084 = vld [vmem:[%s8] sm:$0x1]
    %v4086 = vlaneseq
    %v4087 = vshrl.u32 %v4086, 7
    %v4088 = vsub.s32 0, %v4087
    %v4089 = vrot.slane %v4084, %v4088
    %v4091 = vadd.f32 %v4082, %v4089
    %v4092 = vadd.f32 %v4083, %v4089
    %v4093 = vtanh.pop %v4091
    %v4094 = vtanh.pop %v4092
    %vm4095 = vcmask 519168
    %4096 = vst.msk [vmem:[#allocation3] sm:$0xf] %vm4095, %v4093
    %4097 = vst.msk [vmem:[#allocation3 + $0x4] sm:$0xf] %vm4095, %v4094
    %v4098 = vld [vmem:[#allocation3] sm:$0x1]
    %v4099 = vld [vmem:[#allocation3 + $0x4] sm:$0x1]
    %v4100 = vld [vmem:[%s11] sm:$0xff]
    %v4101 = vld [vmem:[%s11 + $0x8] sm:$0xff]
    %v4102 = vld [vmem:[%s11 + $0x10] sm:$0xff]
    %v4103 = vld [vmem:[%s11 + $0x18] sm:$0xff]
    %v4104 = vld [vmem:[%s11 + $0x20] sm:$0xff]
    %v4105 = vld [vmem:[%s11 + $0x28] sm:$0xff]
    %v4106 = vld [vmem:[%s11 + $0x30] sm:$0xff]
    %v4107 = vld [vmem:[%s11 + $0x38] sm:$0xff]
    %v4108 = vld [vmem:[#allocation3 + $0x1] sm:$0x1]
    %v4109 = vld [vmem:[#allocation3 + $0x5] sm:$0x1]
    %s4110 = scalar_lea.vmem %s11, 64
    %v4111 = vld [vmem:[%s4110] sm:$0xff]
    %v4112 = vld [vmem:[%s4110 + $0x8] sm:$0xff]
    %v4113 = vld [vmem:[%s4110 + $0x10] sm:$0xff]
    %v4114 = vld [vmem:[%s4110 + $0x18] sm:$0xff]
    %v4115 = vld [vmem:[%s4110 + $0x20] sm:$0xff]
    %v4116 = vld [vmem:[%s4110 + $0x28] sm:$0xff]
    %v4117 = vld [vmem:[%s4110 + $0x30] sm:$0xff]
    %v4118 = vld [vmem:[%s4110 + $0x38] sm:$0xff]
    %vm4119 = vcmask 523264
    %v4121 = vsel %vm4119, %v4108, 0
    %4123 = vmatprep.subr.mxu0 0.0
    %4124 = vmatpush1.msra.mxu0 %v4111
    %4125 = vmatprep.subr.mxu0 0.0
    %4126 = vmatpush1.msra.mxu0 %v4112
    %4127 = vmatprep.subr.mxu0 0.0
    %4128 = vmatpush1.msra.mxu0 %v4113
    %4129 = vmatprep.subr.mxu0 0.0
    %4130 = vmatpush1.msra.mxu0 %v4114
    %4131 = vmatprep.subr.mxu0 0.0
    %4132 = vmatpush1.msra.mxu0 %v4115
    %4133 = vmatprep.subr.mxu0 0.0
    %4134 = vmatpush1.msra.mxu0 %v4116
    %4135 = vmatprep.subr.mxu0 0.0
    %4136 = vmatpush1.msra.mxu0 %v4117
    %4137 = vmatprep.subr.mxu0 0.0
    %4138 = vmatpush1.msra.mxu0 %v4118
    %4139 = vmatprep.subr.mxu0 0.0
    %4140 = vmatpush1.msra.mxu0 0.0
    %4141 = vmatprep.subr.mxu0 0.0
    %4142 = vmatpush1.msra.mxu0 0.0
    %4143 = vmatprep.subr.mxu0 0.0
    %4144 = vmatpush1.msra.mxu0 0.0
    %4145 = vmatprep.subr.mxu0 0.0
    %4146 = vmatpush1.msra.mxu0 0.0
    %4147 = vmatprep.subr.mxu0 0.0
    %4148 = vmatpush1.msra.mxu0 0.0
    %4149 = vmatprep.subr.mxu0 0.0
    %4150 = vmatpush1.msra.mxu0 0.0
    %4151 = vmatprep.subr.mxu0 0.0
    %4152 = vmatpush1.msra.mxu0 0.0
    %4153 = vmatprep.subr.mxu0 0.0
    %4154 = vmatpush1.msra.mxu0 0.0
    %4155 = vmatprep.subr.mxu0 0.0
    %4156 = vmatpush1.msra.mxu0 0.0
    %4157 = vmatprep.subr.mxu0 0.0
    %4158 = vmatpush1.msra.mxu0 0.0
    %4159 = vmatprep.subr.mxu0 0.0
    %4160 = vmatpush1.msra.mxu0 0.0
    %4161 = vmatprep.subr.mxu0 0.0
    %4162 = vmatpush1.msra.mxu0 0.0
    %4163 = vmatprep.subr.mxu0 0.0
    %4164 = vmatpush1.msra.mxu0 0.0
    %4165 = vmatprep.subr.mxu0 0.0
    %4166 = vmatpush1.msra.mxu0 0.0
    %4167 = vmatprep.subr.mxu0 0.0
    %4168 = vmatpush1.msra.mxu0 0.0
    %4169 = vmatprep.subr.mxu0 0.0
    %4170 = vmatpush1.msra.mxu0 0.0
    %4171 = vmatprep.subr.mxu0 0.0
    %4172 = vmatpush1.msra.mxu0 0.0
    %4173 = vmatprep.subr.mxu0 0.0
    %4174 = vmatpush1.msra.mxu0 0.0
    %4175 = vmatprep.subr.mxu0 0.0
    %4176 = vmatpush1.msra.mxu0 0.0
    %4177 = vmatprep.subr.mxu0 0.0
    %4178 = vmatpush1.msra.mxu0 0.0
    %4179 = vmatprep.subr.mxu0 0.0
    %4180 = vmatpush1.msra.mxu0 0.0
    %4181 = vmatprep.subr.mxu0 0.0
    %4182 = vmatpush1.msra.mxu0 0.0
    %4183 = vmatprep.subr.mxu0 0.0
    %4184 = vmatpush1.msra.mxu0 0.0
    %4185 = vmatprep.subr.mxu0 0.0
    %4186 = vmatpush1.msra.mxu0 0.0
    %4187 = vmatprep.mubr.f32.mxu0 0.0
    %4188 = vmatmul.mubr.f32.gmra.mrb[0].mxu0 %v4121
    %v4189 = vpop.f32.mrb[0].mxu0
    %v4190 = vadd.f32 0.0, %v4189
    %v4191 = vpop.f32.mrb[0].mxu0
    %4192 = vdwg.mxu0
    %v4194 = vsel %vm4119, %v4109, 0
    %4196 = vmatprep.subr.mxu0 0.0
    %4197 = vmatpush1.msra.mxu0 %v4111
    %4198 = vmatprep.subr.mxu0 0.0
    %4199 = vmatpush1.msra.mxu0 %v4112
    %4200 = vmatprep.subr.mxu0 0.0
    %4201 = vmatpush1.msra.mxu0 %v4113
    %4202 = vmatprep.subr.mxu0 0.0
    %4203 = vmatpush1.msra.mxu0 %v4114
    %4204 = vmatprep.subr.mxu0 0.0
    %4205 = vmatpush1.msra.mxu0 %v4115
    %4206 = vmatprep.subr.mxu0 0.0
    %4207 = vmatpush1.msra.mxu0 %v4116
    %4208 = vmatprep.subr.mxu0 0.0
    %4209 = vmatpush1.msra.mxu0 %v4117
    %4210 = vmatprep.subr.mxu0 0.0
    %4211 = vmatpush1.msra.mxu0 %v4118
    %4212 = vmatprep.subr.mxu0 0.0
    %4213 = vmatpush1.msra.mxu0 0.0
    %4214 = vmatprep.subr.mxu0 0.0
    %4215 = vmatpush1.msra.mxu0 0.0
    %4216 = vmatprep.subr.mxu0 0.0
    %4217 = vmatpush1.msra.mxu0 0.0
    %4218 = vmatprep.subr.mxu0 0.0
    %4219 = vmatpush1.msra.mxu0 0.0
    %4220 = vmatprep.subr.mxu0 0.0
    %4221 = vmatpush1.msra.mxu0 0.0
    %4222 = vmatprep.subr.mxu0 0.0
    %4223 = vmatpush1.msra.mxu0 0.0
    %4224 = vmatprep.subr.mxu0 0.0
    %4225 = vmatpush1.msra.mxu0 0.0
    %4226 = vmatprep.subr.mxu0 0.0
    %4227 = vmatpush1.msra.mxu0 0.0
    %4228 = vmatprep.subr.mxu0 0.0
    %4229 = vmatpush1.msra.mxu0 0.0
    %4230 = vmatprep.subr.mxu0 0.0
    %4231 = vmatpush1.msra.mxu0 0.0
    %4232 = vmatprep.subr.mxu0 0.0
    %4233 = vmatpush1.msra.mxu0 0.0
    %4234 = vmatprep.subr.mxu0 0.0
    %4235 = vmatpush1.msra.mxu0 0.0
    %4236 = vmatprep.subr.mxu0 0.0
    %4237 = vmatpush1.msra.mxu0 0.0
    %4238 = vmatprep.subr.mxu0 0.0
    %4239 = vmatpush1.msra.mxu0 0.0
    %4240 = vmatprep.subr.mxu0 0.0
    %4241 = vmatpush1.msra.mxu0 0.0
    %4242 = vmatprep.subr.mxu0 0.0
    %4243 = vmatpush1.msra.mxu0 0.0
    %4244 = vmatprep.subr.mxu0 0.0
    %4245 = vmatpush1.msra.mxu0 0.0
    %4246 = vmatprep.subr.mxu0 0.0
    %4247 = vmatpush1.msra.mxu0 0.0
    %4248 = vmatprep.subr.mxu0 0.0
    %4249 = vmatpush1.msra.mxu0 0.0
    %4250 = vmatprep.subr.mxu0 0.0
    %4251 = vmatpush1.msra.mxu0 0.0
    %4252 = vmatprep.subr.mxu0 0.0
    %4253 = vmatpush1.msra.mxu0 0.0
    %4254 = vmatprep.subr.mxu0 0.0
    %4255 = vmatpush1.msra.mxu0 0.0
    %4256 = vmatprep.subr.mxu0 0.0
    %4257 = vmatpush1.msra.mxu0 0.0
    %4258 = vmatprep.subr.mxu0 0.0
    %4259 = vmatpush1.msra.mxu0 0.0
    %4260 = vmatprep.mubr.f32.mxu0 0.0
    %4261 = vmatmul.mubr.f32.gmra.mrb[0].mxu0 %v4194
    %v4262 = vpop.f32.mrb[0].mxu0
    %v4263 = vadd.f32 0.0, %v4262
    %v4264 = vpop.f32.mrb[0].mxu0
    %4265 = vdwg.mxu0
    %v4267 = vsel %vm4119, %v4098, 0
    %4269 = vmatprep.subr.mxu0 0.0
    %4270 = vmatpush1.msra.mxu0 %v4100
    %4271 = vmatprep.subr.mxu0 0.0
    %4272 = vmatpush1.msra.mxu0 %v4101
    %4273 = vmatprep.subr.mxu0 0.0
    %4274 = vmatpush1.msra.mxu0 %v4102
    %4275 = vmatprep.subr.mxu0 0.0
    %4276 = vmatpush1.msra.mxu0 %v4103
    %4277 = vmatprep.subr.mxu0 0.0
    %4278 = vmatpush1.msra.mxu0 %v4104
    %4279 = vmatprep.subr.mxu0 0.0
    %4280 = vmatpush1.msra.mxu0 %v4105
    %4281 = vmatprep.subr.mxu0 0.0
    %4282 = vmatpush1.msra.mxu0 %v4106
    %4283 = vmatprep.subr.mxu0 0.0
    %4284 = vmatpush1.msra.mxu0 %v4107
    %4285 = vmatprep.subr.mxu0 0.0
    %4286 = vmatpush1.msra.mxu0 0.0
    %4287 = vmatprep.subr.mxu0 0.0
    %4288 = vmatpush1.msra.mxu0 0.0
    %4289 = vmatprep.subr.mxu0 0.0
    %4290 = vmatpush1.msra.mxu0 0.0
    %4291 = vmatprep.subr.mxu0 0.0
    %4292 = vmatpush1.msra.mxu0 0.0
    %4293 = vmatprep.subr.mxu0 0.0
    %4294 = vmatpush1.msra.mxu0 0.0
    %4295 = vmatprep.subr.mxu0 0.0
    %4296 = vmatpush1.msra.mxu0 0.0
    %4297 = vmatprep.subr.mxu0 0.0
    %4298 = vmatpush1.msra.mxu0 0.0
    %4299 = vmatprep.subr.mxu0 0.0
    %4300 = vmatpush1.msra.mxu0 0.0
    %4301 = vmatprep.subr.mxu0 0.0
    %4302 = vmatpush1.msra.mxu0 0.0
    %4303 = vmatprep.subr.mxu0 0.0
    %4304 = vmatpush1.msra.mxu0 0.0
    %4305 = vmatprep.subr.mxu0 0.0
    %4306 = vmatpush1.msra.mxu0 0.0
    %4307 = vmatprep.subr.mxu0 0.0
    %4308 = vmatpush1.msra.mxu0 0.0
    %4309 = vmatprep.subr.mxu0 0.0
    %4310 = vmatpush1.msra.mxu0 0.0
    %4311 = vmatprep.subr.mxu0 0.0
    %4312 = vmatpush1.msra.mxu0 0.0
    %4313 = vmatprep.subr.mxu0 0.0
    %4314 = vmatpush1.msra.mxu0 0.0
    %4315 = vmatprep.subr.mxu0 0.0
    %4316 = vmatpush1.msra.mxu0 0.0
    %4317 = vmatprep.subr.mxu0 0.0
    %4318 = vmatpush1.msra.mxu0 0.0
    %4319 = vmatprep.subr.mxu0 0.0
    %4320 = vmatpush1.msra.mxu0 0.0
    %4321 = vmatprep.subr.mxu0 0.0
    %4322 = vmatpush1.msra.mxu0 0.0
    %4323 = vmatprep.subr.mxu0 0.0
    %4324 = vmatpush1.msra.mxu0 0.0
    %4325 = vmatprep.subr.mxu0 0.0
    %4326 = vmatpush1.msra.mxu0 0.0
    %4327 = vmatprep.subr.mxu0 0.0
    %4328 = vmatpush1.msra.mxu0 0.0
    %4329 = vmatprep.subr.mxu0 0.0
    %4330 = vmatpush1.msra.mxu0 0.0
    %4331 = vmatprep.subr.mxu0 0.0
    %4332 = vmatpush1.msra.mxu0 0.0
    %4333 = vmatprep.mubr.f32.mxu0 0.0
    %4334 = vmatmul.mubr.f32.gmra.mrb[0].mxu0 %v4267
    %v4335 = vpop.f32.mrb[0].mxu0
    %v4336 = vadd.f32 %v4190, %v4335
    %v4337 = vpop.f32.mrb[0].mxu0
    %4338 = vdwg.mxu0
    %v4340 = vsel %vm4119, %v4099, 0
    %4342 = vmatprep.subr.mxu0 0.0
    %4343 = vmatpush1.msra.mxu0 %v4100
    %4344 = vmatprep.subr.mxu0 0.0
    %4345 = vmatpush1.msra.mxu0 %v4101
    %4346 = vmatprep.subr.mxu0 0.0
    %4347 = vmatpush1.msra.mxu0 %v4102
    %4348 = vmatprep.subr.mxu0 0.0
    %4349 = vmatpush1.msra.mxu0 %v4103
    %4350 = vmatprep.subr.mxu0 0.0
    %4351 = vmatpush1.msra.mxu0 %v4104
    %4352 = vmatprep.subr.mxu0 0.0
    %4353 = vmatpush1.msra.mxu0 %v4105
    %4354 = vmatprep.subr.mxu0 0.0
    %4355 = vmatpush1.msra.mxu0 %v4106
    %4356 = vmatprep.subr.mxu0 0.0
    %4357 = vmatpush1.msra.mxu0 %v4107
    %4358 = vmatprep.subr.mxu0 0.0
    %4359 = vmatpush1.msra.mxu0 0.0
    %4360 = vmatprep.subr.mxu0 0.0
    %4361 = vmatpush1.msra.mxu0 0.0
    %4362 = vmatprep.subr.mxu0 0.0
    %4363 = vmatpush1.msra.mxu0 0.0
    %4364 = vmatprep.subr.mxu0 0.0
    %4365 = vmatpush1.msra.mxu0 0.0
    %4366 = vmatprep.subr.mxu0 0.0
    %4367 = vmatpush1.msra.mxu0 0.0
    %4368 = vmatprep.subr.mxu0 0.0
    %4369 = vmatpush1.msra.mxu0 0.0
    %4370 = vmatprep.subr.mxu0 0.0
    %4371 = vmatpush1.msra.mxu0 0.0
    %4372 = vmatprep.subr.mxu0 0.0
    %4373 = vmatpush1.msra.mxu0 0.0
    %4374 = vmatprep.subr.mxu0 0.0
    %4375 = vmatpush1.msra.mxu0 0.0
    %4376 = vmatprep.subr.mxu0 0.0
    %4377 = vmatpush1.msra.mxu0 0.0
    %4378 = vmatprep.subr.mxu0 0.0
    %4379 = vmatpush1.msra.mxu0 0.0
    %4380 = vmatprep.subr.mxu0 0.0
    %4381 = vmatpush1.msra.mxu0 0.0
    %4382 = vmatprep.subr.mxu0 0.0
    %4383 = vmatpush1.msra.mxu0 0.0
    %4384 = vmatprep.subr.mxu0 0.0
    %4385 = vmatpush1.msra.mxu0 0.0
    %4386 = vmatprep.subr.mxu0 0.0
    %4387 = vmatpush1.msra.mxu0 0.0
    %4388 = vmatprep.subr.mxu0 0.0
    %4389 = vmatpush1.msra.mxu0 0.0
    %4390 = vmatprep.subr.mxu0 0.0
    %4391 = vmatpush1.msra.mxu0 0.0
    %4392 = vmatprep.subr.mxu0 0.0
    %4393 = vmatpush1.msra.mxu0 0.0
    %4394 = vmatprep.subr.mxu0 0.0
    %4395 = vmatpush1.msra.mxu0 0.0
    %4396 = vmatprep.subr.mxu0 0.0
    %4397 = vmatpush1.msra.mxu0 0.0
    %4398 = vmatprep.subr.mxu0 0.0
    %4399 = vmatpush1.msra.mxu0 0.0
    %4400 = vmatprep.subr.mxu0 0.0
    %4401 = vmatpush1.msra.mxu0 0.0
    %4402 = vmatprep.subr.mxu0 0.0
    %4403 = vmatpush1.msra.mxu0 0.0
    %4404 = vmatprep.subr.mxu0 0.0
    %4405 = vmatpush1.msra.mxu0 0.0
    %4406 = vmatprep.mubr.f32.mxu0 0.0
    %4407 = vmatmul.mubr.f32.gmra.mrb[0].mxu0 %v4340
    %v4408 = vpop.f32.mrb[0].mxu0
    %v4409 = vadd.f32 %v4263, %v4408
    %v4410 = vpop.f32.mrb[0].mxu0
    %4411 = vdwg.mxu0
    %v4412 = vld [vmem:[#allocation3 + $0x2] sm:$0x1]
    %v4413 = vld [vmem:[#allocation3 + $0x6] sm:$0x1]
    %s4414 = scalar_lea.vmem %s11, 128
    %v4415 = vld [vmem:[%s4414] sm:$0xff]
    %v4416 = vld [vmem:[%s4414 + $0x8] sm:$0xff]
    %v4417 = vld [vmem:[%s4414 + $0x10] sm:$0xff]
    %v4418 = vld [vmem:[%s4414 + $0x18] sm:$0xff]
    %v4419 = vld [vmem:[%s4414 + $0x20] sm:$0xff]
    %v4420 = vld [vmem:[%s4414 + $0x28] sm:$0xff]
    %v4421 = vld [vmem:[%s4414 + $0x30] sm:$0xff]
    %v4422 = vld [vmem:[%s4414 + $0x38] sm:$0xff]
    %v4424 = vsel %vm4119, %v4412, 0
    %4426 = vmatprep.subr.mxu0 0.0
    %4427 = vmatpush1.msra.mxu0 %v4415
    %4428 = vmatprep.subr.mxu0 0.0
    %4429 = vmatpush1.msra.mxu0 %v4416
    %4430 = vmatprep.subr.mxu0 0.0
    %4431 = vmatpush1.msra.mxu0 %v4417
    %4432 = vmatprep.subr.mxu0 0.0
    %4433 = vmatpush1.msra.mxu0 %v4418
    %4434 = vmatprep.subr.mxu0 0.0
    %4435 = vmatpush1.msra.mxu0 %v4419
    %4436 = vmatprep.subr.mxu0 0.0
    %4437 = vmatpush1.msra.mxu0 %v4420
    %4438 = vmatprep.subr.mxu0 0.0
    %4439 = vmatpush1.msra.mxu0 %v4421
    %4440 = vmatprep.subr.mxu0 0.0
    %4441 = vmatpush1.msra.mxu0 %v4422
    %4442 = vmatprep.subr.mxu0 0.0
    %4443 = vmatpush1.msra.mxu0 0.0
    %4444 = vmatprep.subr.mxu0 0.0
    %4445 = vmatpush1.msra.mxu0 0.0
    %4446 = vmatprep.subr.mxu0 0.0
    %4447 = vmatpush1.msra.mxu0 0.0
    %4448 = vmatprep.subr.mxu0 0.0
    %4449 = vmatpush1.msra.mxu0 0.0
    %4450 = vmatprep.subr.mxu0 0.0
    %4451 = vmatpush1.msra.mxu0 0.0
    %4452 = vmatprep.subr.mxu0 0.0
    %4453 = vmatpush1.msra.mxu0 0.0
    %4454 = vmatprep.subr.mxu0 0.0
    %4455 = vmatpush1.msra.mxu0 0.0
    %4456 = vmatprep.subr.mxu0 0.0
    %4457 = vmatpush1.msra.mxu0 0.0
    %4458 = vmatprep.subr.mxu0 0.0
    %4459 = vmatpush1.msra.mxu0 0.0
    %4460 = vmatprep.subr.mxu0 0.0
    %4461 = vmatpush1.msra.mxu0 0.0
    %4462 = vmatprep.subr.mxu0 0.0
    %4463 = vmatpush1.msra.mxu0 0.0
    %4464 = vmatprep.subr.mxu0 0.0
    %4465 = vmatpush1.msra.mxu0 0.0
    %4466 = vmatprep.subr.mxu0 0.0
    %4467 = vmatpush1.msra.mxu0 0.0
    %4468 = vmatprep.subr.mxu0 0.0
    %4469 = vmatpush1.msra.mxu0 0.0
    %4470 = vmatprep.subr.mxu0 0.0
    %4471 = vmatpush1.msra.mxu0 0.0
    %4472 = vmatprep.subr.mxu0 0.0
    %4473 = vmatpush1.msra.mxu0 0.0
    %4474 = vmatprep.subr.mxu0 0.0
    %4475 = vmatpush1.msra.mxu0 0.0
    %4476 = vmatprep.subr.mxu0 0.0
    %4477 = vmatpush1.msra.mxu0 0.0
    %4478 = vmatprep.subr.mxu0 0.0
    %4479 = vmatpush1.msra.mxu0 0.0
    %4480 = vmatprep.subr.mxu0 0.0
    %4481 = vmatpush1.msra.mxu0 0.0
    %4482 = vmatprep.subr.mxu0 0.0
    %4483 = vmatpush1.msra.mxu0 0.0
    %4484 = vmatprep.subr.mxu0 0.0
    %4485 = vmatpush1.msra.mxu0 0.0
    %4486 = vmatprep.subr.mxu0 0.0
    %4487 = vmatpush1.msra.mxu0 0.0
    %4488 = vmatprep.subr.mxu0 0.0
    %4489 = vmatpush1.msra.mxu0 0.0
    %4490 = vmatprep.mubr.f32.mxu0 0.0
    %4491 = vmatmul.mubr.f32.gmra.mrb[0].mxu0 %v4424
    %v4492 = vpop.f32.mrb[0].mxu0
    %v4493 = vadd.f32 0.0, %v4492
    %v4494 = vpop.f32.mrb[0].mxu0
    %4495 = vdwg.mxu0
    %v4497 = vsel %vm4119, %v4413, 0
    %4499 = vmatprep.subr.mxu0 0.0
    %4500 = vmatpush1.msra.mxu0 %v4415
    %4501 = vmatprep.subr.mxu0 0.0
    %4502 = vmatpush1.msra.mxu0 %v4416
    %4503 = vmatprep.subr.mxu0 0.0
    %4504 = vmatpush1.msra.mxu0 %v4417
    %4505 = vmatprep.subr.mxu0 0.0
    %4506 = vmatpush1.msra.mxu0 %v4418
    %4507 = vmatprep.subr.mxu0 0.0
    %4508 = vmatpush1.msra.mxu0 %v4419
    %4509 = vmatprep.subr.mxu0 0.0
    %4510 = vmatpush1.msra.mxu0 %v4420
    %4511 = vmatprep.subr.mxu0 0.0
    %4512 = vmatpush1.msra.mxu0 %v4421
    %4513 = vmatprep.subr.mxu0 0.0
    %4514 = vmatpush1.msra.mxu0 %v4422
    %4515 = vmatprep.subr.mxu0 0.0
    %4516 = vmatpush1.msra.mxu0 0.0
    %4517 = vmatprep.subr.mxu0 0.0
    %4518 = vmatpush1.msra.mxu0 0.0
    %4519 = vmatprep.subr.mxu0 0.0
    %4520 = vmatpush1.msra.mxu0 0.0
    %4521 = vmatprep.subr.mxu0 0.0
    %4522 = vmatpush1.msra.mxu0 0.0
    %4523 = vmatprep.subr.mxu0 0.0
    %4524 = vmatpush1.msra.mxu0 0.0
    %4525 = vmatprep.subr.mxu0 0.0
    %4526 = vmatpush1.msra.mxu0 0.0
    %4527 = vmatprep.subr.mxu0 0.0
    %4528 = vmatpush1.msra.mxu0 0.0
    %4529 = vmatprep.subr.mxu0 0.0
    %4530 = vmatpush1.msra.mxu0 0.0
    %4531 = vmatprep.subr.mxu0 0.0
    %4532 = vmatpush1.msra.mxu0 0.0
    %4533 = vmatprep.subr.mxu0 0.0
    %4534 = vmatpush1.msra.mxu0 0.0
    %4535 = vmatprep.subr.mxu0 0.0
    %4536 = vmatpush1.msra.mxu0 0.0
    %4537 = vmatprep.subr.mxu0 0.0
    %4538 = vmatpush1.msra.mxu0 0.0
    %4539 = vmatprep.subr.mxu0 0.0
    %4540 = vmatpush1.msra.mxu0 0.0
    %4541 = vmatprep.subr.mxu0 0.0
    %4542 = vmatpush1.msra.mxu0 0.0
    %4543 = vmatprep.subr.mxu0 0.0
    %4544 = vmatpush1.msra.mxu0 0.0
    %4545 = vmatprep.subr.mxu0 0.0
    %4546 = vmatpush1.msra.mxu0 0.0
    %4547 = vmatprep.subr.mxu0 0.0
    %4548 = vmatpush1.msra.mxu0 0.0
    %4549 = vmatprep.subr.mxu0 0.0
    %4550 = vmatpush1.msra.mxu0 0.0
    %4551 = vmatprep.subr.mxu0 0.0
    %4552 = vmatpush1.msra.mxu0 0.0
    %4553 = vmatprep.subr.mxu0 0.0
    %4554 = vmatpush1.msra.mxu0 0.0
    %4555 = vmatprep.subr.mxu0 0.0
    %4556 = vmatpush1.msra.mxu0 0.0
    %4557 = vmatprep.subr.mxu0 0.0
    %4558 = vmatpush1.msra.mxu0 0.0
    %4559 = vmatprep.subr.mxu0 0.0
    %4560 = vmatpush1.msra.mxu0 0.0
    %4561 = vmatprep.subr.mxu0 0.0
    %4562 = vmatpush1.msra.mxu0 0.0
    %4563 = vmatprep.mubr.f32.mxu0 0.0
    %4564 = vmatmul.mubr.f32.gmra.mrb[0].mxu0 %v4497
    %v4565 = vpop.f32.mrb[0].mxu0
    %v4566 = vadd.f32 0.0, %v4565
    %v4567 = vpop.f32.mrb[0].mxu0
    %4568 = vdwg.mxu0
    %v4569 = vadd.f32 %v4336, %v4493
    %v4570 = vadd.f32 %v4409, %v4566
    %v4571 = vld [vmem:[#allocation3 + $0x3] sm:$0x1]
    %v4572 = vld [vmem:[#allocation3 + $0x7] sm:$0x1]
    %s4573 = scalar_lea.vmem %s11, 192
    %v4574 = vld [vmem:[%s4573] sm:$0xff]
    %v4575 = vld [vmem:[%s4573 + $0x8] sm:$0xff]
    %v4576 = vld [vmem:[%s4573 + $0x10] sm:$0xff]
    %v4577 = vld [vmem:[%s4573 + $0x18] sm:$0xff]
    %v4578 = vld [vmem:[%s4573 + $0x20] sm:$0xff]
    %v4579 = vld [vmem:[%s4573 + $0x28] sm:$0xff]
    %v4580 = vld [vmem:[%s4573 + $0x30] sm:$0xff]
    %v4581 = vld [vmem:[%s4573 + $0x38] sm:$0xff]
    %v4583 = vsel %vm4119, %v4571, 0
    %4585 = vmatprep.subr.mxu0 0.0
    %4586 = vmatpush1.msra.mxu0 %v4574
    %4587 = vmatprep.subr.mxu0 0.0
    %4588 = vmatpush1.msra.mxu0 %v4575
    %4589 = vmatprep.subr.mxu0 0.0
    %4590 = vmatpush1.msra.mxu0 %v4576
    %4591 = vmatprep.subr.mxu0 0.0
    %4592 = vmatpush1.msra.mxu0 %v4577
    %4593 = vmatprep.subr.mxu0 0.0
    %4594 = vmatpush1.msra.mxu0 %v4578
    %4595 = vmatprep.subr.mxu0 0.0
    %4596 = vmatpush1.msra.mxu0 %v4579
    %4597 = vmatprep.subr.mxu0 0.0
    %4598 = vmatpush1.msra.mxu0 %v4580
    %4599 = vmatprep.subr.mxu0 0.0
    %4600 = vmatpush1.msra.mxu0 %v4581
    %4601 = vmatprep.subr.mxu0 0.0
    %4602 = vmatpush1.msra.mxu0 0.0
    %4603 = vmatprep.subr.mxu0 0.0
    %4604 = vmatpush1.msra.mxu0 0.0
    %4605 = vmatprep.subr.mxu0 0.0
    %4606 = vmatpush1.msra.mxu0 0.0
    %4607 = vmatprep.subr.mxu0 0.0
    %4608 = vmatpush1.msra.mxu0 0.0
    %4609 = vmatprep.subr.mxu0 0.0
    %4610 = vmatpush1.msra.mxu0 0.0
    %4611 = vmatprep.subr.mxu0 0.0
    %4612 = vmatpush1.msra.mxu0 0.0
    %4613 = vmatprep.subr.mxu0 0.0
    %4614 = vmatpush1.msra.mxu0 0.0
    %4615 = vmatprep.subr.mxu0 0.0
    %4616 = vmatpush1.msra.mxu0 0.0
    %4617 = vmatprep.subr.mxu0 0.0
    %4618 = vmatpush1.msra.mxu0 0.0
    %4619 = vmatprep.subr.mxu0 0.0
    %4620 = vmatpush1.msra.mxu0 0.0
    %4621 = vmatprep.subr.mxu0 0.0
    %4622 = vmatpush1.msra.mxu0 0.0
    %4623 = vmatprep.subr.mxu0 0.0
    %4624 = vmatpush1.msra.mxu0 0.0
    %4625 = vmatprep.subr.mxu0 0.0
    %4626 = vmatpush1.msra.mxu0 0.0
    %4627 = vmatprep.subr.mxu0 0.0
    %4628 = vmatpush1.msra.mxu0 0.0
    %4629 = vmatprep.subr.mxu0 0.0
    %4630 = vmatpush1.msra.mxu0 0.0
    %4631 = vmatprep.subr.mxu0 0.0
    %4632 = vmatpush1.msra.mxu0 0.0
    %4633 = vmatprep.subr.mxu0 0.0
    %4634 = vmatpush1.msra.mxu0 0.0
    %4635 = vmatprep.subr.mxu0 0.0
    %4636 = vmatpush1.msra.mxu0 0.0
    %4637 = vmatprep.subr.mxu0 0.0
    %4638 = vmatpush1.msra.mxu0 0.0
    %4639 = vmatprep.subr.mxu0 0.0
    %4640 = vmatpush1.msra.mxu0 0.0
    %4641 = vmatprep.subr.mxu0 0.0
    %4642 = vmatpush1.msra.mxu0 0.0
    %4643 = vmatprep.subr.mxu0 0.0
    %4644 = vmatpush1.msra.mxu0 0.0
    %4645 = vmatprep.subr.mxu0 0.0
    %4646 = vmatpush1.msra.mxu0 0.0
    %4647 = vmatprep.subr.mxu0 0.0
    %4648 = vmatpush1.msra.mxu0 0.0
    %4649 = vmatprep.mubr.f32.mxu0 0.0
    %4650 = vmatmul.mubr.f32.gmra.mrb[0].mxu0 %v4583
    %v4651 = vpop.f32.mrb[0].mxu0
    %v4652 = vadd.f32 0.0, %v4651
    %v4653 = vpop.f32.mrb[0].mxu0
    %4654 = vdwg.mxu0
    %v4656 = vsel %vm4119, %v4572, 0
    %4658 = vmatprep.subr.mxu0 0.0
    %4659 = vmatpush1.msra.mxu0 %v4574
    %4660 = vmatprep.subr.mxu0 0.0
    %4661 = vmatpush1.msra.mxu0 %v4575
    %4662 = vmatprep.subr.mxu0 0.0
    %4663 = vmatpush1.msra.mxu0 %v4576
    %4664 = vmatprep.subr.mxu0 0.0
    %4665 = vmatpush1.msra.mxu0 %v4577
    %4666 = vmatprep.subr.mxu0 0.0
    %4667 = vmatpush1.msra.mxu0 %v4578
    %4668 = vmatprep.subr.mxu0 0.0
    %4669 = vmatpush1.msra.mxu0 %v4579
    %4670 = vmatprep.subr.mxu0 0.0
    %4671 = vmatpush1.msra.mxu0 %v4580
    %4672 = vmatprep.subr.mxu0 0.0
    %4673 = vmatpush1.msra.mxu0 %v4581
    %4674 = vmatprep.subr.mxu0 0.0
    %4675 = vmatpush1.msra.mxu0 0.0
    %4676 = vmatprep.subr.mxu0 0.0
    %4677 = vmatpush1.msra.mxu0 0.0
    %4678 = vmatprep.subr.mxu0 0.0
    %4679 = vmatpush1.msra.mxu0 0.0
    %4680 = vmatprep.subr.mxu0 0.0
    %4681 = vmatpush1.msra.mxu0 0.0
    %4682 = vmatprep.subr.mxu0 0.0
    %4683 = vmatpush1.msra.mxu0 0.0
    %4684 = vmatprep.subr.mxu0 0.0
    %4685 = vmatpush1.msra.mxu0 0.0
    %4686 = vmatprep.subr.mxu0 0.0
    %4687 = vmatpush1.msra.mxu0 0.0
    %4688 = vmatprep.subr.mxu0 0.0
    %4689 = vmatpush1.msra.mxu0 0.0
    %4690 = vmatprep.subr.mxu0 0.0
    %4691 = vmatpush1.msra.mxu0 0.0
    %4692 = vmatprep.subr.mxu0 0.0
    %4693 = vmatpush1.msra.mxu0 0.0
    %4694 = vmatprep.subr.mxu0 0.0
    %4695 = vmatpush1.msra.mxu0 0.0
    %4696 = vmatprep.subr.mxu0 0.0
    %4697 = vmatpush1.msra.mxu0 0.0
    %4698 = vmatprep.subr.mxu0 0.0
    %4699 = vmatpush1.msra.mxu0 0.0
    %4700 = vmatprep.subr.mxu0 0.0
    %4701 = vmatpush1.msra.mxu0 0.0
    %4702 = vmatprep.subr.mxu0 0.0
    %4703 = vmatpush1.msra.mxu0 0.0
    %4704 = vmatprep.subr.mxu0 0.0
    %4705 = vmatpush1.msra.mxu0 0.0
    %4706 = vmatprep.subr.mxu0 0.0
    %4707 = vmatpush1.msra.mxu0 0.0
    %4708 = vmatprep.subr.mxu0 0.0
    %4709 = vmatpush1.msra.mxu0 0.0
    %4710 = vmatprep.subr.mxu0 0.0
    %4711 = vmatpush1.msra.mxu0 0.0
    %4712 = vmatprep.subr.mxu0 0.0
    %4713 = vmatpush1.msra.mxu0 0.0
    %4714 = vmatprep.subr.mxu0 0.0
    %4715 = vmatpush1.msra.mxu0 0.0
    %4716 = vmatprep.subr.mxu0 0.0
    %4717 = vmatpush1.msra.mxu0 0.0
    %4718 = vmatprep.subr.mxu0 0.0
    %4719 = vmatpush1.msra.mxu0 0.0
    %4720 = vmatprep.subr.mxu0 0.0
    %4721 = vmatpush1.msra.mxu0 0.0
    %4722 = vmatprep.mubr.f32.mxu0 0.0
    %4723 = vmatmul.mubr.f32.gmra.mrb[0].mxu0 %v4656
    %v4724 = vpop.f32.mrb[0].mxu0
    %v4725 = vadd.f32 0.0, %v4724
    %v4726 = vpop.f32.mrb[0].mxu0
    %4727 = vdwg.mxu0
    %v4728 = vadd.f32 %v4569, %v4652
    %v4729 = vadd.f32 %v4570, %v4725
    %v4730 = vld [vmem:[%s12] sm:$0x1]
    %v4731 = vadd.f32 %v4728, %v4730
    %v4732 = vadd.f32 %v4729, %v4730
    %v4733 = vtanh.pop %v4731
    %v4734 = vtanh.pop %v4732
    %v4735 = vld [vmem:[%s13] sm:$0xff]
    %v4736 = vld [vmem:[%s13 + $0x8] sm:$0xff]
    %v4737 = vld [vmem:[%s13 + $0x10] sm:$0xff]
    %v4738 = vld [vmem:[%s13 + $0x18] sm:$0xff]
    %v4739 = vld [vmem:[%s13 + $0x20] sm:$0xff]
    %v4740 = vld [vmem:[%s13 + $0x28] sm:$0xff]
    %v4741 = vld [vmem:[%s13 + $0x30] sm:$0xff]
    %v4742 = vld [vmem:[%s13 + $0x38] sm:$0xff]
    %v4743 = vld [vmem:[%s13 + $0x40] sm:$0xff]
    %v4744 = vld [vmem:[%s13 + $0x48] sm:$0xff]
    %v4745 = vld [vmem:[%s13 + $0x50] sm:$0xff]
    %v4746 = vld [vmem:[%s13 + $0x58] sm:$0xff]
    %v4747 = vld [vmem:[%s13 + $0x60] sm:$0xff]
    %v4748 = vld [vmem:[%s13 + $0x68] sm:$0xff]
    %v4749 = vld [vmem:[%s13 + $0x70] sm:$0xff]
    %v4750 = vld [vmem:[%s14] sm:$0x1]
    %vm4751 = vcmask 982016
    %v4753 = vsel %vm4751, %v4733, 0
    %4755 = vmatprep.subr.mxu0 0.0
    %4756 = vmatpush1.msra.mxu0 %v4735
    %4757 = vmatprep.subr.mxu0 0.0
    %4758 = vmatpush1.msra.mxu0 %v4736
    %4759 = vmatprep.subr.mxu0 0.0
    %4760 = vmatpush1.msra.mxu0 %v4737
    %4761 = vmatprep.subr.mxu0 0.0
    %4762 = vmatpush1.msra.mxu0 %v4738
    %4763 = vmatprep.subr.mxu0 0.0
    %4764 = vmatpush1.msra.mxu0 %v4739
    %4765 = vmatprep.subr.mxu0 0.0
    %4766 = vmatpush1.msra.mxu0 %v4740
    %4767 = vmatprep.subr.mxu0 0.0
    %4768 = vmatpush1.msra.mxu0 %v4741
    %4769 = vmatprep.subr.mxu0 0.0
    %4770 = vmatpush1.msra.mxu0 %v4742
    %4771 = vmatprep.subr.mxu0 0.0
    %4772 = vmatpush1.msra.mxu0 %v4743
    %4773 = vmatprep.subr.mxu0 0.0
    %4774 = vmatpush1.msra.mxu0 %v4744
    %4775 = vmatprep.subr.mxu0 0.0
    %4776 = vmatpush1.msra.mxu0 %v4745
    %4777 = vmatprep.subr.mxu0 0.0
    %4778 = vmatpush1.msra.mxu0 %v4746
    %4779 = vmatprep.subr.mxu0 0.0
    %4780 = vmatpush1.msra.mxu0 %v4747
    %4781 = vmatprep.subr.mxu0 0.0
    %4782 = vmatpush1.msra.mxu0 %v4748
    %4783 = vmatprep.subr.mxu0 0.0
    %4784 = vmatpush1.msra.mxu0 %v4749
    %4785 = vmatprep.subr.mxu0 0.0
    %4786 = vmatpush1.msra.mxu0 0.0
    %4787 = vmatprep.subr.mxu0 0.0
    %4788 = vmatpush1.msra.mxu0 0.0
    %4789 = vmatprep.subr.mxu0 0.0
    %4790 = vmatpush1.msra.mxu0 0.0
    %4791 = vmatprep.subr.mxu0 0.0
    %4792 = vmatpush1.msra.mxu0 0.0
    %4793 = vmatprep.subr.mxu0 0.0
    %4794 = vmatpush1.msra.mxu0 0.0
    %4795 = vmatprep.subr.mxu0 0.0
    %4796 = vmatpush1.msra.mxu0 0.0
    %4797 = vmatprep.subr.mxu0 0.0
    %4798 = vmatpush1.msra.mxu0 0.0
    %4799 = vmatprep.subr.mxu0 0.0
    %4800 = vmatpush1.msra.mxu0 0.0
    %4801 = vmatprep.subr.mxu0 0.0
    %4802 = vmatpush1.msra.mxu0 0.0
    %4803 = vmatprep.subr.mxu0 0.0
    %4804 = vmatpush1.msra.mxu0 0.0
    %4805 = vmatprep.subr.mxu0 0.0
    %4806 = vmatpush1.msra.mxu0 0.0
    %4807 = vmatprep.subr.mxu0 0.0
    %4808 = vmatpush1.msra.mxu0 0.0
    %4809 = vmatprep.subr.mxu0 0.0
    %4810 = vmatpush1.msra.mxu0 0.0
    %4811 = vmatprep.subr.mxu0 0.0
    %4812 = vmatpush1.msra.mxu0 0.0
    %4813 = vmatprep.subr.mxu0 0.0
    %4814 = vmatpush1.msra.mxu0 0.0
    %4815 = vmatprep.subr.mxu0 0.0
    %4816 = vmatpush1.msra.mxu0 0.0
    %4817 = vmatprep.subr.mxu0 0.0
    %4818 = vmatpush1.msra.mxu0 0.0
    %4819 = vmatprep.mubr.f32.mxu0 0.0
    %4820 = vmatmul.mubr.f32.gmra.mrb[0].mxu0 %v4753
    %v4821 = vpop.f32.mrb[0].mxu0
    %v4822 = vadd.f32 %v4750, %v4821
    %v4823 = vpop.f32.mrb[0].mxu0
    %4824 = vdwg.mxu0
    %v4826 = vsel %vm4751, %v4734, 0
    %4828 = vmatprep.subr.mxu0 0.0
    %4829 = vmatpush1.msra.mxu0 %v4735
    %4830 = vmatprep.subr.mxu0 0.0
    %4831 = vmatpush1.msra.mxu0 %v4736
    %4832 = vmatprep.subr.mxu0 0.0
    %4833 = vmatpush1.msra.mxu0 %v4737
    %4834 = vmatprep.subr.mxu0 0.0
    %4835 = vmatpush1.msra.mxu0 %v4738
    %4836 = vmatprep.subr.mxu0 0.0
    %4837 = vmatpush1.msra.mxu0 %v4739
    %4838 = vmatprep.subr.mxu0 0.0
    %4839 = vmatpush1.msra.mxu0 %v4740
    %4840 = vmatprep.subr.mxu0 0.0
    %4841 = vmatpush1.msra.mxu0 %v4741
    %4842 = vmatprep.subr.mxu0 0.0
    %4843 = vmatpush1.msra.mxu0 %v4742
    %4844 = vmatprep.subr.mxu0 0.0
    %4845 = vmatpush1.msra.mxu0 %v4743
    %4846 = vmatprep.subr.mxu0 0.0
    %4847 = vmatpush1.msra.mxu0 %v4744
    %4848 = vmatprep.subr.mxu0 0.0
    %4849 = vmatpush1.msra.mxu0 %v4745
    %4850 = vmatprep.subr.mxu0 0.0
    %4851 = vmatpush1.msra.mxu0 %v4746
    %4852 = vmatprep.subr.mxu0 0.0
    %4853 = vmatpush1.msra.mxu0 %v4747
    %4854 = vmatprep.subr.mxu0 0.0
    %4855 = vmatpush1.msra.mxu0 %v4748
    %4856 = vmatprep.subr.mxu0 0.0
    %4857 = vmatpush1.msra.mxu0 %v4749
    %4858 = vmatprep.subr.mxu0 0.0
    %4859 = vmatpush1.msra.mxu0 0.0
    %4860 = vmatprep.subr.mxu0 0.0
    %4861 = vmatpush1.msra.mxu0 0.0
    %4862 = vmatprep.subr.mxu0 0.0
    %4863 = vmatpush1.msra.mxu0 0.0
    %4864 = vmatprep.subr.mxu0 0.0
    %4865 = vmatpush1.msra.mxu0 0.0
    %4866 = vmatprep.subr.mxu0 0.0
    %4867 = vmatpush1.msra.mxu0 0.0
    %4868 = vmatprep.subr.mxu0 0.0
    %4869 = vmatpush1.msra.mxu0 0.0
    %4870 = vmatprep.subr.mxu0 0.0
    %4871 = vmatpush1.msra.mxu0 0.0
    %4872 = vmatprep.subr.mxu0 0.0
    %4873 = vmatpush1.msra.mxu0 0.0
    %4874 = vmatprep.subr.mxu0 0.0
    %4875 = vmatpush1.msra.mxu0 0.0
    %4876 = vmatprep.subr.mxu0 0.0
    %4877 = vmatpush1.msra.mxu0 0.0
    %4878 = vmatprep.subr.mxu0 0.0
    %4879 = vmatpush1.msra.mxu0 0.0
    %4880 = vmatprep.subr.mxu0 0.0
    %4881 = vmatpush1.msra.mxu0 0.0
    %4882 = vmatprep.subr.mxu0 0.0
    %4883 = vmatpush1.msra.mxu0 0.0
    %4884 = vmatprep.subr.mxu0 0.0
    %4885 = vmatpush1.msra.mxu0 0.0
    %4886 = vmatprep.subr.mxu0 0.0
    %4887 = vmatpush1.msra.mxu0 0.0
    %4888 = vmatprep.subr.mxu0 0.0
    %4889 = vmatpush1.msra.mxu0 0.0
    %4890 = vmatprep.subr.mxu0 0.0
    %4891 = vmatpush1.msra.mxu0 0.0
    %4892 = vmatprep.mubr.f32.mxu0 0.0
    %4893 = vmatmul.mubr.f32.gmra.mrb[0].mxu0 %v4826
    %v4894 = vpop.f32.mrb[0].mxu0
    %v4895 = vadd.f32 %v4750, %v4894
    %v4896 = vpop.f32.mrb[0].mxu0
    %4897 = vdwg.mxu0
    %v4898 = vtanh.pop %v4822
    %v4899 = vtanh.pop %v4895
    %v4900 = vld [vmem:[%s15] sm:$0xff]
    %v4901 = vld [vmem:[%s15 + $0x8] sm:$0xff]
    %v4902 = vld [vmem:[%s15 + $0x10] sm:$0xff]
    %v4903 = vld [vmem:[%s15 + $0x18] sm:$0xff]
    %v4904 = vld [vmem:[%s15 + $0x20] sm:$0xff]
    %v4905 = vld [vmem:[%s15 + $0x28] sm:$0xff]
    %v4906 = vld [vmem:[%s15 + $0x30] sm:$0xff]
    %v4907 = vld [vmem:[%s15 + $0x38] sm:$0xff]
    %v4908 = vld [vmem:[%s15 + $0x40] sm:$0xff]
    %v4909 = vld [vmem:[%s15 + $0x48] sm:$0xff]
    %v4910 = vld [vmem:[%s15 + $0x50] sm:$0xf]
    %v4911 = vld [vmem:[%s16] sm:$0x1]
    %vm4912 = vcmask 687104
    %v4914 = vsel %vm4912, %v4898, 0
    %v4917 = vsel %vm92, %v4910, 0
    %4919 = vmatprep.subr.mxu0 0.0
    %4920 = vmatpush1.msra.mxu0 %v4900
    %4921 = vmatprep.subr.mxu0 0.0
    %4922 = vmatpush1.msra.mxu0 %v4901
    %4923 = vmatprep.subr.mxu0 0.0
    %4924 = vmatpush1.msra.mxu0 %v4902
    %4925 = vmatprep.subr.mxu0 0.0
    %4926 = vmatpush1.msra.mxu0 %v4903
    %4927 = vmatprep.subr.mxu0 0.0
    %4928 = vmatpush1.msra.mxu0 %v4904
    %4929 = vmatprep.subr.mxu0 0.0
    %4930 = vmatpush1.msra.mxu0 %v4905
    %4931 = vmatprep.subr.mxu0 0.0
    %4932 = vmatpush1.msra.mxu0 %v4906
    %4933 = vmatprep.subr.mxu0 0.0
    %4934 = vmatpush1.msra.mxu0 %v4907
    %4935 = vmatprep.subr.mxu0 0.0
    %4936 = vmatpush1.msra.mxu0 %v4908
    %4937 = vmatprep.subr.mxu0 0.0
    %4938 = vmatpush1.msra.mxu0 %v4909
    %4939 = vmatprep.subr.mxu0 0.0
    %4940 = vmatpush1.msra.mxu0 %v4917
    %4941 = vmatprep.subr.mxu0 0.0
    %4942 = vmatpush1.msra.mxu0 0.0
    %4943 = vmatprep.subr.mxu0 0.0
    %4944 = vmatpush1.msra.mxu0 0.0
    %4945 = vmatprep.subr.mxu0 0.0
    %4946 = vmatpush1.msra.mxu0 0.0
    %4947 = vmatprep.subr.mxu0 0.0
    %4948 = vmatpush1.msra.mxu0 0.0
    %4949 = vmatprep.subr.mxu0 0.0
    %4950 = vmatpush1.msra.mxu0 0.0
    %4951 = vmatprep.subr.mxu0 0.0
    %4952 = vmatpush1.msra.mxu0 0.0
    %4953 = vmatprep.subr.mxu0 0.0
    %4954 = vmatpush1.msra.mxu0 0.0
    %4955 = vmatprep.subr.mxu0 0.0
    %4956 = vmatpush1.msra.mxu0 0.0
    %4957 = vmatprep.subr.mxu0 0.0
    %4958 = vmatpush1.msra.mxu0 0.0
    %4959 = vmatprep.subr.mxu0 0.0
    %4960 = vmatpush1.msra.mxu0 0.0
    %4961 = vmatprep.subr.mxu0 0.0
    %4962 = vmatpush1.msra.mxu0 0.0
    %4963 = vmatprep.subr.mxu0 0.0
    %4964 = vmatpush1.msra.mxu0 0.0
    %4965 = vmatprep.subr.mxu0 0.0
    %4966 = vmatpush1.msra.mxu0 0.0
    %4967 = vmatprep.subr.mxu0 0.0
    %4968 = vmatpush1.msra.mxu0 0.0
    %4969 = vmatprep.subr.mxu0 0.0
    %4970 = vmatpush1.msra.mxu0 0.0
    %4971 = vmatprep.subr.mxu0 0.0
    %4972 = vmatpush1.msra.mxu0 0.0
    %4973 = vmatprep.subr.mxu0 0.0
    %4974 = vmatpush1.msra.mxu0 0.0
    %4975 = vmatprep.subr.mxu0 0.0
    %4976 = vmatpush1.msra.mxu0 0.0
    %4977 = vmatprep.subr.mxu0 0.0
    %4978 = vmatpush1.msra.mxu0 0.0
    %4979 = vmatprep.subr.mxu0 0.0
    %4980 = vmatpush1.msra.mxu0 0.0
    %4981 = vmatprep.subr.mxu0 0.0
    %4982 = vmatpush1.msra.mxu0 0.0
    %4983 = vmatprep.mubr.f32.mxu0 0.0
    %4984 = vmatmul.mubr.f32.gmra.mrb[0].mxu0 %v4914
    %v4985 = vpop.f32.mrb[0].mxu0
    %v4986 = vadd.f32 %v4911, %v4985
    %v4987 = vpop.f32.mrb[0].mxu0
    %4988 = vdwg.mxu0
    %v4990 = vsel %vm4912, %v4899, 0
    %4992 = vmatprep.subr.mxu0 0.0
    %4993 = vmatpush1.msra.mxu0 %v4900
    %4994 = vmatprep.subr.mxu0 0.0
    %4995 = vmatpush1.msra.mxu0 %v4901
    %4996 = vmatprep.subr.mxu0 0.0
    %4997 = vmatpush1.msra.mxu0 %v4902
    %4998 = vmatprep.subr.mxu0 0.0
    %4999 = vmatpush1.msra.mxu0 %v4903
    %5000 = vmatprep.subr.mxu0 0.0
    %5001 = vmatpush1.msra.mxu0 %v4904
    %5002 = vmatprep.subr.mxu0 0.0
    %5003 = vmatpush1.msra.mxu0 %v4905
    %5004 = vmatprep.subr.mxu0 0.0
    %5005 = vmatpush1.msra.mxu0 %v4906
    %5006 = vmatprep.subr.mxu0 0.0
    %5007 = vmatpush1.msra.mxu0 %v4907
    %5008 = vmatprep.subr.mxu0 0.0
    %5009 = vmatpush1.msra.mxu0 %v4908
    %5010 = vmatprep.subr.mxu0 0.0
    %5011 = vmatpush1.msra.mxu0 %v4909
    %5012 = vmatprep.subr.mxu0 0.0
    %5013 = vmatpush1.msra.mxu0 %v4917
    %5014 = vmatprep.subr.mxu0 0.0
    %5015 = vmatpush1.msra.mxu0 0.0
    %5016 = vmatprep.subr.mxu0 0.0
    %5017 = vmatpush1.msra.mxu0 0.0
    %5018 = vmatprep.subr.mxu0 0.0
    %5019 = vmatpush1.msra.mxu0 0.0
    %5020 = vmatprep.subr.mxu0 0.0
    %5021 = vmatpush1.msra.mxu0 0.0
    %5022 = vmatprep.subr.mxu0 0.0
    %5023 = vmatpush1.msra.mxu0 0.0
    %5024 = vmatprep.subr.mxu0 0.0
    %5025 = vmatpush1.msra.mxu0 0.0
    %5026 = vmatprep.subr.mxu0 0.0
    %5027 = vmatpush1.msra.mxu0 0.0
    %5028 = vmatprep.subr.mxu0 0.0
    %5029 = vmatpush1.msra.mxu0 0.0
    %5030 = vmatprep.subr.mxu0 0.0
    %5031 = vmatpush1.msra.mxu0 0.0
    %5032 = vmatprep.subr.mxu0 0.0
    %5033 = vmatpush1.msra.mxu0 0.0
    %5034 = vmatprep.subr.mxu0 0.0
    %5035 = vmatpush1.msra.mxu0 0.0
    %5036 = vmatprep.subr.mxu0 0.0
    %5037 = vmatpush1.msra.mxu0 0.0
    %5038 = vmatprep.subr.mxu0 0.0
    %5039 = vmatpush1.msra.mxu0 0.0
    %5040 = vmatprep.subr.mxu0 0.0
    %5041 = vmatpush1.msra.mxu0 0.0
    %5042 = vmatprep.subr.mxu0 0.0
    %5043 = vmatpush1.msra.mxu0 0.0
    %5044 = vmatprep.subr.mxu0 0.0
    %5045 = vmatpush1.msra.mxu0 0.0
    %5046 = vmatprep.subr.mxu0 0.0
    %5047 = vmatpush1.msra.mxu0 0.0
    %5048 = vmatprep.subr.mxu0 0.0
    %5049 = vmatpush1.msra.mxu0 0.0
    %5050 = vmatprep.subr.mxu0 0.0
    %5051 = vmatpush1.msra.mxu0 0.0
    %5052 = vmatprep.subr.mxu0 0.0
    %5053 = vmatpush1.msra.mxu0 0.0
    %5054 = vmatprep.subr.mxu0 0.0
    %5055 = vmatpush1.msra.mxu0 0.0
    %5056 = vmatprep.mubr.f32.mxu0 0.0
    %5057 = vmatmul.mubr.f32.gmra.mrb[0].mxu0 %v4990
    %v5058 = vpop.f32.mrb[0].mxu0
    %v5059 = vadd.f32 %v4911, %v5058
    %v5060 = vpop.f32.mrb[0].mxu0
    %5061 = vdwg.mxu0
    %vm5062 = vcmask 73728
    %v5063 = vsel %vm5062, %v4986, -inf
    %5064 = vmax.xlane.f32.xlu0 %v5063
    %v5065 = vpop.xlane.xlu0 %5064
    %v5066 = vsel %vm5062, %v5059, -inf
    %5067 = vmax.xlane.f32.xlu0 %v5066
    %v5068 = vpop.xlane.xlu0 %5067
    %v5069 = vsub.f32 %v4986, %v5065
    %v5070 = vsub.f32 %v5059, %v5068
    %v5071 = vmul.f32 %v5069, 1.442695
    %v5072 = vpow.pop %v5071
    %v5073 = vmul.f32 %v5070, 1.442695
    %v5074 = vpow.pop %v5073
    %v5075 = vsel %vm5062, %v5072, 0.0
    %5076 = vadd.xlane.f32.xlu0 %v5075
    %v5077 = vpop.xlane.xlu0 %5076
    %v5078 = vsel %vm5062, %v5074, 0.0
    %5079 = vadd.xlane.f32.xlu0 %v5078
    %v5080 = vpop.xlane.xlu0 %5079
    %v5081 = vrcp.pop %v5077
    %v5082 = vrcp.pop %v5080
    %v5083 = vmul.f32 %v5072, %v5081
    %v5084 = vmul.f32 %v5074, %v5082
    %5085 = vst.msk [vmem:[#allocation4] sm:$0x1] %vm5062, %v5083
    %5086 = vst.msk [vmem:[#allocation4 + $0x1] sm:$0x1] %vm5062, %v5084
    // Predicated region
    $region70: #{lenet5_forward.1} parent=1 // pred_check
      _
    $region71: #{lenet5_forward.1} parent=1 // pred_check_branch
      %5088 = sbr.rel (0) target = $region73
    $region72: #{lenet5_forward.1} parent=1 // pred_region
      %s5090 = ssub.s32 32, 32
      %5091 = vsyncadd [#allocation5], %s5090
      %s5092 = sshll.u32 [#allocation4], 4
      %s5093 = int_to_ptr.vmem [resolvable:$true] %s5092
      %5098 = dma.vmem_to_hbm [thread:$0]  %s5093, 32, %s17, [#allocation5], 16, 16, 1
    $region73: #{lenet5_forward.1} parent=1 // pred_fallthru
      _
    // Predicated region
    $region74: #{lenet5_forward.1} parent=1 // pred_check
      _
    $region75: #{lenet5_forward.1} parent=1 // pred_check_branch
      %5100 = sbr.rel (0) target = $region77
    $region76: #{lenet5_forward.1} parent=1 // pred_region
      %5101 = dma.done [#allocation5], 32
    $region77: #{lenet5_forward.1} parent=1 // pred_fallthru
      _
    %5102 = vsyncpa [#allocation5], 1

</llo_original>
